<compile_context>
chip_gen: v6e
topology: v6e:2x2x1
jax: 0.10.0
libtpu: 0.0.40
codegen_flags: <defaults>
</compile_context>

<pallas_src>
import functools

import jax
import jax.numpy as jnp
from jax import lax
from jax.experimental import pallas as pl
from jax.experimental.pallas import tpu as pltpu


def _round_up(x, m):
    return (x + m - 1) // m * m


def _mlp_kernel(x_ref,            # (T, D_pad)   bf16   batch tile, features on lanes
                w1_ref, b1_ref,   # (512, D_pad) bf16 / (512, 1) f32
                w2_ref, b2_ref,   # (128, 512)   bf16 / (128, 1) f32
                w3_ref, b3_ref,   # (16, 128)    bf16 / (16, 1)  f32
                w4_ref,           # (16, 1)      f32
                b4_ref,           # (1, 1)       f32, SMEM scalar
                o_ref):           # (1, T)       f32, lane-dense output row
    # Layer 1: input -> 512, ReLU.  W1[o, d] · x[t, d]ᵀ -> (512, T); the
    # transposed contraction happens on the MXU (no host-side x transpose).
    # Dropout(0.1) == identity in eval mode.
    h = lax.dot_general(w1_ref[...], x_ref[...],
                        dimension_numbers=(((1,), (1,)), ((), ())),
                        preferred_element_type=jnp.float32)
    h = jnp.maximum(h + b1_ref[...], 0.0)                        # (512, T) f32

    # Layer 2: 512 -> 128, ReLU
    h = jnp.dot(w2_ref[...], h.astype(jnp.bfloat16),
                preferred_element_type=jnp.float32)
    h = jnp.maximum(h + b2_ref[...], 0.0)                        # (128, T) f32

    # Layer 3: 128 -> 16, ReLU (no 128-row padding: epilogue stays 16 rows)
    h = jnp.dot(w3_ref[...], h.astype(jnp.bfloat16),
                preferred_element_type=jnp.float32)
    h = jnp.maximum(h + b3_ref[...], 0.0)                        # (16, T) f32

    # Layer 4: 16 -> 1 on the VPU/XLU (an MXU pass here would be ~all padding):
    # weighted sublane reduction gives a lane-dense (1, T) logit row directly.
    logit = jnp.sum(h * w4_ref[...], axis=0, keepdims=True) + b4_ref[0, 0]

    # Sigmoid: exp on the EUP, exact reciprocal so outputs stay within [0, 1].
    o_ref[...] = pl.reciprocal(1.0 + jnp.exp(-logit), approx=False)


def fraud_detection_forward(x, params, *, batch_tile=2048):
    """Fused MLP forward.

    x:      [B, input_size] float32
    params: [(W1,b1), (W2,b2), (W3,b3), (W4,b4)], W in PyTorch layout [out, in]
    returns [B, 1] float32 probabilities.
    """
    (w1, b1), (w2, b2), (w3, b3), (w4, b4) = params
    B, D = x.shape
    h1, h2, h3 = w1.shape[0], w2.shape[0], w3.shape[0]   # 512, 128, 16
    D_pad = _round_up(D, 128)                            # lane-aligned K for layer 1

    # Effective batch tile: capped at `batch_tile`, multiple of 256 (v6e/v7x
    # MXU N), and sized so meaningful B gives >= 2 grid steps (v7x megacore).
    tile = min(batch_tile, max(256, _round_up(B, 512) // 2))
    B_pad = _round_up(B, tile)
    num_tiles = B_pad // tile

    # ---- host-side layout plumbing (cheap XLA ops, not compute hoisting) ----
    xp = jnp.pad(x.astype(jnp.bfloat16),                 # cast first: half traffic
                 ((0, B_pad - B), (0, D_pad - D)))       # (B_pad, D_pad) bf16
    w1p = jnp.pad(w1, ((0, 0), (0, D_pad - D))).astype(jnp.bfloat16)
    w2p = w2.astype(jnp.bfloat16)
    w3p = w3.astype(jnp.bfloat16)                        # (16, 128)
    w4p = w4.reshape(h3, 1).astype(jnp.float32)          # (16, 1)
    b1c = b1.reshape(h1, 1).astype(jnp.float32)
    b2c = b2.reshape(h2, 1).astype(jnp.float32)
    b3c = b3.reshape(h3, 1).astype(jnp.float32)
    b4c = b4.reshape(1, 1).astype(jnp.float32)

    def resident(shape):
        nd = len(shape)
        return pl.BlockSpec(shape, lambda i: (0,) * nd)

    flops = 2 * B_pad * (D_pad * h1 + h1 * h2 + h2 * h3 + h3)
    bytes_accessed = (xp.size * 2
                      + (w1p.size + w2p.size + w3p.size) * 2
                      + (w4p.size + b1c.size + b2c.size + b3c.size + 1) * 4
                      + B_pad * 4)

    out_row = pl.pallas_call(
        _mlp_kernel,
        out_shape=jax.ShapeDtypeStruct((1, B_pad), jnp.float32),
        grid_spec=pltpu.PrefetchScalarGridSpec(
            num_scalar_prefetch=0,
            grid=(num_tiles,),
            in_specs=[
                pl.BlockSpec((tile, D_pad), lambda i: (i, 0)),         # x tile
                resident(w1p.shape), resident(b1c.shape),
                resident(w2p.shape), resident(b2c.shape),
                resident(w3p.shape), resident(b3c.shape),
                resident(w4p.shape),
                pl.BlockSpec(memory_space=pltpu.MemorySpace.SMEM),     # b4 scalar
            ],
            out_specs=pl.BlockSpec((1, tile), lambda i: (0, i)),
        ),
        compiler_params=pltpu.CompilerParams(
            # batch axis is embarrassingly parallel -> megacore split on v7x.
            dimension_semantics=("parallel",),
            # ~10 MB of VMEM at tile=2048 -> fits every generation's scoped
            # default (incl. v5e's 16 MiB); no vmem_limit override needed.
        ),
        cost_estimate=pl.CostEstimate(flops=int(flops),
                                      transcendentals=int(2 * B_pad),
                                      bytes_accessed=int(bytes_accessed)),
    )(xp, w1p, b1c, w2p, b2c, w3p, b3c, w4p, b4c)

    return out_row[0, :B].reshape(B, 1)


def init_params(key, input_size):
    """Deterministic init mimicking nn.Linear (PyTorch layout W: [out, in])."""
    sizes = [(input_size, 512), (512, 128), (128, 16), (16, 1)]
    params = []
    for fan_in, fan_out in sizes:
        key, kw, kb = jax.random.split(key, 3)
        bound = 1.0 / jnp.sqrt(fan_in)
        w = jax.random.uniform(kw, (fan_out, fan_in), jnp.float32,
                               minval=-bound, maxval=bound)
        b = jax.random.uniform(kb, (fan_out,), jnp.float32,
                               minval=-bound, maxval=bound)
        params.append((w, b))
    return params


def reference_forward(x, params):
    """Plain-JAX f32 reference (PyTorch semantics, eval mode)."""
    (w1, b1), (w2, b2), (w3, b3), (w4, b4) = params
    h = jnp.maximum(x @ w1.T + b1, 0.0)
    h = jnp.maximum(h @ w2.T + b2, 0.0)
    h = jnp.maximum(h @ w3.T + b3, 0.0)
    return jax.nn.sigmoid(h @ w4.T + b4)


if __name__ == "__main__":
    key = jax.random.PRNGKey(0)
    batch = 1000        # not a tile multiple -> exercises padding + 2-tile grid
    input_size = 30     # stand-in for X_train_tensor.shape[1]

    key, kx = jax.random.split(key)
    x = jax.random.normal(kx, (batch, input_size), jnp.float32)
    params = init_params(key, input_size)

    fwd = jax.jit(functools.partial(fraud_detection_forward, batch_tile=2048))
    out = jax.block_until_ready(fwd(x, params))

    ref = reference_forward(x, params)
    assert out.shape == (batch, 1)
    # bf16 MXU inputs (f32 accumulation) -> compare loosely vs the f32 reference
    assert jnp.allclose(out, ref, atol=2e-2, rtol=2e-2), "mismatch vs reference"
    assert bool(jnp.all((out >= 0.0) & (out <= 1.0))), "sigmoid out of range"

    print("KERNEL_OK")
</pallas_src>

<mosaic_0001>
module attributes {stable_mosaic.version = 11 : i64} {
  func.func @_mlp_kernel(%arg0: i32, %arg1: memref<512x128xbf16, #tpu.memory_space<vmem>>, %arg2: memref<512x128xbf16, #tpu.memory_space<vmem>>, %arg3: memref<512x1xf32, #tpu.memory_space<vmem>>, %arg4: memref<128x512xbf16, #tpu.memory_space<vmem>>, %arg5: memref<128x1xf32, #tpu.memory_space<vmem>>, %arg6: memref<16x128xbf16, #tpu.memory_space<vmem>>, %arg7: memref<16x1xf32, #tpu.memory_space<vmem>>, %arg8: memref<16x1xf32, #tpu.memory_space<vmem>>, %arg9: memref<1x1xf32, #tpu.memory_space<smem>>, %arg10: memref<1x512xf32, #tpu.memory_space<vmem>>) attributes {dimension_semantics = [#tpu.dimension_semantics<parallel>], iteration_bounds = array<i64: 2>, scalar_prefetch = 0 : i64, scratch_operands = 0 : i64, tpu.core_type = #tpu.core_type<tc>, window_params = [{transform_indices = @transform_0, window_bounds = array<i64: 512, 128>}, {pipeline_mode = #tpu.pipeline_mode<synchronous>, transform_indices = @transform_1, window_bounds = array<i64: 512, 128>}, {pipeline_mode = #tpu.pipeline_mode<synchronous>, transform_indices = @transform_2, window_bounds = array<i64: 512, 1>}, {pipeline_mode = #tpu.pipeline_mode<synchronous>, transform_indices = @transform_3, window_bounds = array<i64: 128, 512>}, {pipeline_mode = #tpu.pipeline_mode<synchronous>, transform_indices = @transform_4, window_bounds = array<i64: 128, 1>}, {pipeline_mode = #tpu.pipeline_mode<synchronous>, transform_indices = @transform_5, window_bounds = array<i64: 16, 128>}, {pipeline_mode = #tpu.pipeline_mode<synchronous>, transform_indices = @transform_6, window_bounds = array<i64: 16, 1>}, {pipeline_mode = #tpu.pipeline_mode<synchronous>, transform_indices = @transform_7, window_bounds = array<i64: 16, 1>}, {transform_indices = @transform_8, window_bounds = array<i64: 1, 1>}, {transform_indices = @transform_9, window_bounds = array<i64: 1, 512>}]} {
    %c0 = arith.constant 0 : index
    %c0_0 = arith.constant 0 : index
    %0 = vector.load %arg2[%c0, %c0_0] : memref<512x128xbf16, #tpu.memory_space<vmem>>, vector<512x128xbf16>
    %c0_1 = arith.constant 0 : index
    %c0_2 = arith.constant 0 : index
    %1 = vector.load %arg1[%c0_1, %c0_2] : memref<512x128xbf16, #tpu.memory_space<vmem>>, vector<512x128xbf16>
    %cst = arith.constant dense<0.000000e+00> : vector<512x512xf32>
    %2 = tpu.matmul %0, %1, %cst {dimension_numbers = #tpu.dot_dimension_numbers<[1], [1], [0], [0], [0, 0, 1, 0], [], []>} : vector<512x128xbf16>, vector<512x128xbf16>, vector<512x512xf32> -> vector<512x512xf32>
    %c0_3 = arith.constant 0 : index
    %c0_4 = arith.constant 0 : index
    %3 = vector.load %arg3[%c0_3, %c0_4] : memref<512x1xf32, #tpu.memory_space<vmem>>, vector<512x1xf32>
    %4 = vector.broadcast %3 : vector<512x1xf32> to vector<512x512xf32>
    %5 = arith.addf %2, %4 : vector<512x512xf32>
    %cst_5 = arith.constant 0.000000e+00 : f32
    %6 = vector.broadcast %cst_5 : f32 to vector<512x512xf32>
    %7 = arith.maximumf %5, %6 : vector<512x512xf32>
    %c0_6 = arith.constant 0 : index
    %c0_7 = arith.constant 0 : index
    %8 = vector.load %arg4[%c0_6, %c0_7] : memref<128x512xbf16, #tpu.memory_space<vmem>>, vector<128x512xbf16>
    %9 = arith.truncf %7 : vector<512x512xf32> to vector<512x512xbf16>
    %cst_8 = arith.constant dense<0.000000e+00> : vector<128x512xf32>
    %10 = tpu.matmul %8, %9, %cst_8 {dimension_numbers = #tpu.dot_dimension_numbers<[1], [0], [0], [1], [0, 0, 1, 1], [], []>} : vector<128x512xbf16>, vector<512x512xbf16>, vector<128x512xf32> -> vector<128x512xf32>
    %c0_9 = arith.constant 0 : index
    %c0_10 = arith.constant 0 : index
    %11 = vector.load %arg5[%c0_9, %c0_10] : memref<128x1xf32, #tpu.memory_space<vmem>>, vector<128x1xf32>
    %12 = vector.broadcast %11 : vector<128x1xf32> to vector<128x512xf32>
    %13 = arith.addf %10, %12 : vector<128x512xf32>
    %cst_11 = arith.constant 0.000000e+00 : f32
    %14 = vector.broadcast %cst_11 : f32 to vector<128x512xf32>
    %15 = arith.maximumf %13, %14 : vector<128x512xf32>
    %c0_12 = arith.constant 0 : index
    %c0_13 = arith.constant 0 : index
    %16 = vector.load %arg6[%c0_12, %c0_13] : memref<16x128xbf16, #tpu.memory_space<vmem>>, vector<16x128xbf16>
    %17 = arith.truncf %15 : vector<128x512xf32> to vector<128x512xbf16>
    %cst_14 = arith.constant dense<0.000000e+00> : vector<16x512xf32>
    %18 = tpu.matmul %16, %17, %cst_14 {dimension_numbers = #tpu.dot_dimension_numbers<[1], [0], [0], [1], [0, 0, 1, 1], [], []>} : vector<16x128xbf16>, vector<128x512xbf16>, vector<16x512xf32> -> vector<16x512xf32>
    %c0_15 = arith.constant 0 : index
    %c0_16 = arith.constant 0 : index
    %19 = vector.load %arg7[%c0_15, %c0_16] : memref<16x1xf32, #tpu.memory_space<vmem>>, vector<16x1xf32>
    %20 = vector.broadcast %19 : vector<16x1xf32> to vector<16x512xf32>
    %21 = arith.addf %18, %20 : vector<16x512xf32>
    %cst_17 = arith.constant 0.000000e+00 : f32
    %22 = vector.broadcast %cst_17 : f32 to vector<16x512xf32>
    %23 = arith.maximumf %21, %22 : vector<16x512xf32>
    %c0_18 = arith.constant 0 : index
    %c0_19 = arith.constant 0 : index
    %24 = vector.load %arg8[%c0_18, %c0_19] : memref<16x1xf32, #tpu.memory_space<vmem>>, vector<16x1xf32>
    %25 = vector.broadcast %24 : vector<16x1xf32> to vector<16x512xf32>
    %26 = arith.mulf %23, %25 : vector<16x512xf32>
    %cst_20 = arith.constant dense<0.000000e+00> : vector<512xf32>
    %27 = vector.multi_reduction <add>, %26, %cst_20 [0] : vector<16x512xf32> to vector<512xf32>
    %28 = vector.shape_cast %27 : vector<512xf32> to vector<1x512xf32>
    %c0_21 = arith.constant 0 : index
    %c0_22 = arith.constant 0 : index
    %29 = memref.load %arg9[%c0_21, %c0_22] : memref<1x1xf32, #tpu.memory_space<smem>>
    %30 = vector.broadcast %29 : f32 to vector<1x512xf32>
    %31 = arith.addf %28, %30 : vector<1x512xf32>
    %cst_23 = arith.constant 0.000000e+00 : f32
    %32 = vector.broadcast %cst_23 : f32 to vector<1x512xf32>
    %33 = arith.subf %32, %31 : vector<1x512xf32>
    %34 = math.exp %33 : vector<1x512xf32>
    %cst_24 = arith.constant 1.000000e+00 : f32
    %35 = vector.broadcast %cst_24 : f32 to vector<1x512xf32>
    %36 = arith.addf %35, %34 : vector<1x512xf32>
    %37 = tpu.reciprocal %36 : vector<1x512xf32> -> vector<1x512xf32>
    %c0_25 = arith.constant 0 : index
    %c0_26 = arith.constant 0 : index
    %38 = vector.load %arg10[%c0_25, %c0_26] : memref<1x512xf32, #tpu.memory_space<vmem>>, vector<1x512xf32>
    tpu.vector_store %arg10[%c0_25, %c0_26], %37 {strides = array<i32>} : memref<1x512xf32, #tpu.memory_space<vmem>>, vector<1x512xf32>,
    return
  }
  func.func @transform_0(%arg0: i32) -> (i32, i32) {
    %c0_i32 = arith.constant 0 : i32
    %c0_i32_0 = arith.constant 0 : i32
    return %arg0, %c0_i32 : i32, i32
  }
  func.func @transform_1(%arg0: i32) -> (i32, i32) {
    %c0_i32 = arith.constant 0 : i32
    %c0_i32_0 = arith.constant 0 : i32
    %c0_i32_1 = arith.constant 0 : i32
    return %c0_i32, %c0_i32_0 : i32, i32
  }
  func.func @transform_2(%arg0: i32) -> (i32, i32) {
    %c0_i32 = arith.constant 0 : i32
    %c0_i32_0 = arith.constant 0 : i32
    %c0_i32_1 = arith.constant 0 : i32
    return %c0_i32, %c0_i32_0 : i32, i32
  }
  func.func @transform_3(%arg0: i32) -> (i32, i32) {
    %c0_i32 = arith.constant 0 : i32
    %c0_i32_0 = arith.constant 0 : i32
    %c0_i32_1 = arith.constant 0 : i32
    return %c0_i32, %c0_i32_0 : i32, i32
  }
  func.func @transform_4(%arg0: i32) -> (i32, i32) {
    %c0_i32 = arith.constant 0 : i32
    %c0_i32_0 = arith.constant 0 : i32
    %c0_i32_1 = arith.constant 0 : i32
    return %c0_i32, %c0_i32_0 : i32, i32
  }
  func.func @transform_5(%arg0: i32) -> (i32, i32) {
    %c0_i32 = arith.constant 0 : i32
    %c0_i32_0 = arith.constant 0 : i32
    %c0_i32_1 = arith.constant 0 : i32
    return %c0_i32, %c0_i32_0 : i32, i32
  }
  func.func @transform_6(%arg0: i32) -> (i32, i32) {
    %c0_i32 = arith.constant 0 : i32
    %c0_i32_0 = arith.constant 0 : i32
    %c0_i32_1 = arith.constant 0 : i32
    return %c0_i32, %c0_i32_0 : i32, i32
  }
  func.func @transform_7(%arg0: i32) -> (i32, i32) {
    %c0_i32 = arith.constant 0 : i32
    %c0_i32_0 = arith.constant 0 : i32
    %c0_i32_1 = arith.constant 0 : i32
    return %c0_i32, %c0_i32_0 : i32, i32
  }
  func.func @transform_8(%arg0: i32) -> (i32, i32) {
    %c0_i32 = arith.constant 0 : i32
    %c0_i32_0 = arith.constant 0 : i32
    %c0_i32_1 = arith.constant 0 : i32
    return %c0_i32, %c0_i32_0 : i32, i32
  }
  func.func @transform_9(%arg0: i32) -> (i32, i32) {
    %c0_i32 = arith.constant 0 : i32
    %c0_i32_0 = arith.constant 0 : i32
    return %c0_i32, %arg0 : i32, i32
  }
}

</mosaic_0001>

<llo_original>
// kernel: fraud_detection_forward.1
$region0: #{fraud_detection_forward.1}
  #allocation0 [shape = 'u32[]', space=smem, size = 0x4, offset = 0x4, fixed_abs, tag = 'smem constant byte address 0x4 - core index']
  #allocation1 [shape = 'u32[144,128]{1,0:T(1,128)}', space=vmem, size = 0x12000, scoped, tag = 'internal scratch']
  #allocation2 [shape = 'f32[1,1]{1,0:T(1,128)S(6)}', space=smem, size = 0x200, scoped, tag = 'scoped memory for fraud_detection_forward.1']
  %s0 = inlined_call_operand.vmem [shape: bf16[1024,128], index: 0, kind: input, shape index: {}]
  %s1 = inlined_call_operand.vmem [shape: bf16[512,128], index: 1, kind: input, shape index: {}]
  %s2 = inlined_call_operand.vmem [shape: f32[512,1], index: 2, kind: input, shape index: {}]
  %s3 = inlined_call_operand.vmem [shape: bf16[128,512], index: 3, kind: input, shape index: {}]
  %s4 = inlined_call_operand.vmem [shape: f32[128,1], index: 4, kind: input, shape index: {}]
  %s5 = inlined_call_operand.vmem [shape: bf16[16,128], index: 5, kind: input, shape index: {}]
  %s6 = inlined_call_operand.vmem [shape: f32[16,1], index: 6, kind: input, shape index: {}]
  %s7 = inlined_call_operand.vmem [shape: f32[16,1], index: 7, kind: input, shape index: {}]
  %s8 = inlined_call_operand.<no memory space> [shape: f32[1,1], index: 8, kind: input, shape index: {}]
  %s9 = inlined_call_operand.vmem [shape: f32[1,1024], index: 9, kind: output, shape index: {}]
  %s10 = sld [smem:[#allocation0]]
  $region69: #{fraud_detection_forward.1} parent=0
    _
  %s12 = ssub.s32 1, %s10
  %s13 = scalar_select 0, %s12, %s10
  %14 = sst [smem:[#allocation2]] %s8
  loop: start=0, step=1, limit=4
  $region2: #{fraud_detection_forward.1} parent=0 // loop_pre_header
    _
  $region3: #{fraud_detection_forward.1} parent=0 // loop_header
    %s16 = sphi 0, %s20
    %p17 = scmp.ge.s32.totalorder %s16, 4
    %s26 = sphi 0, %s28
    %s29 = sphi 0, %s26
    %s30 = sphi 0, %s29
    %s46 = sphi 0, %s30
    %s50 = sphi 0, %s50
    %s52 = sphi 0, %s50
    %s53 = sphi 0, %s52
    %s67 = sphi 0, %s53
    %s71 = sphi 0, %s71
    %s73 = sphi 0, %s71
    %s74 = sphi 0, %s73
    %s88 = sphi 0, %s74
    %s92 = sphi 0, %s92
    %s94 = sphi 0, %s92
    %s95 = sphi 0, %s94
    %s109 = sphi 0, %s95
    %s113 = sphi 0, %s113
    %s115 = sphi 0, %s113
    %s116 = sphi 0, %s115
    %s130 = sphi 0, %s116
    %s134 = sphi 0, %s134
    %s136 = sphi 0, %s134
    %s137 = sphi 0, %s136
    %s151 = sphi 0, %s137
    %s155 = sphi 0, %s155
    %s157 = sphi 0, %s155
    %s158 = sphi 0, %s157
    %s172 = sphi 0, %s158
    %s176 = sphi 0, %s176
    %s178 = sphi 0, %s176
    %s179 = sphi 0, %s178
    %s193 = sphi 0, %s179
    %s197 = sphi 0, %s197
    %s199 = sphi 0, %s197
    %s200 = sphi 0, %s199
    %s214 = sphi 0, %s200
    %s220 = sphi 0, %s222
    %s223 = sphi 0, %s220
    %s224 = sphi 0, %s223
    %s240 = sphi 0, %s224
  $region4: #{fraud_detection_forward.1} parent=0 // loop_header_branch
    %19 = sbr.rel (%p17) target = $region8
  $region5: #{fraud_detection_forward.1} parent=0 // loop_body
    %s21 = ssub.s32 %s16, 1
    %s22 = ssub.s32 %s16, 2
    %s23 = sadd.s32 %s16, 1
    %s24 = ssub.s32 %s16, %s23
    %p25 = scmp.eq.s32.totalorder %s24, 0
    %s27 = sadd.s32 %s26, 1
    %s28 = scalar_select %p25, %s26, %s27
    %p31 = pneg %p25
    %p32 = scmp.eq.s32.totalorder %s16, 1
    %p33 = por %p31, %p32
    %p34 = scmp.ne.s32.totalorder %s26, %s29
    %p35 = scmp.eq.s32.totalorder %s16, 0
    %p36 = por %p34, %p35
    %p37 = scmp.ne.s32.totalorder %s26, %s29
    %p38 = scmp.eq.s32.totalorder %s21, 1
    %p39 = por %p37, %p38
    %p40 = scmp.ne.s32.totalorder %s29, %s30
    %p41 = scmp.eq.s32.totalorder %s21, 0
    %p42 = por %p40, %p41
    %p43 = scmp.ne.s32.totalorder %s29, %s30
    %p44 = scmp.eq.s32.totalorder %s22, 1
    %p45 = por %p43, %p44
    %p47 = scmp.ne.s32.totalorder %s30, %s46
    %p48 = scmp.eq.s32.totalorder %s22, 0
    %p49 = por %p47, %p48
    %s51 = sadd.s32 %s50, 1
    %p54 = scmp.eq.s32.totalorder %s16, 1
    %p55 = scmp.ne.s32.totalorder %s50, %s52
    %p56 = scmp.eq.s32.totalorder %s16, 0
    %p57 = por %p55, %p56
    %p58 = scmp.ne.s32.totalorder %s50, %s52
    %p59 = scmp.eq.s32.totalorder %s21, 1
    %p60 = por %p58, %p59
    %p61 = scmp.ne.s32.totalorder %s52, %s53
    %p62 = scmp.eq.s32.totalorder %s21, 0
    %p63 = por %p61, %p62
    %p64 = scmp.ne.s32.totalorder %s52, %s53
    %p65 = scmp.eq.s32.totalorder %s22, 1
    %p66 = por %p64, %p65
    %p68 = scmp.ne.s32.totalorder %s53, %s67
    %p69 = scmp.eq.s32.totalorder %s22, 0
    %p70 = por %p68, %p69
    %s72 = sadd.s32 %s71, 1
    %p75 = scmp.eq.s32.totalorder %s16, 1
    %p76 = scmp.ne.s32.totalorder %s71, %s73
    %p77 = scmp.eq.s32.totalorder %s16, 0
    %p78 = por %p76, %p77
    %p79 = scmp.ne.s32.totalorder %s71, %s73
    %p80 = scmp.eq.s32.totalorder %s21, 1
    %p81 = por %p79, %p80
    %p82 = scmp.ne.s32.totalorder %s73, %s74
    %p83 = scmp.eq.s32.totalorder %s21, 0
    %p84 = por %p82, %p83
    %p85 = scmp.ne.s32.totalorder %s73, %s74
    %p86 = scmp.eq.s32.totalorder %s22, 1
    %p87 = por %p85, %p86
    %p89 = scmp.ne.s32.totalorder %s74, %s88
    %p90 = scmp.eq.s32.totalorder %s22, 0
    %p91 = por %p89, %p90
    %s93 = sadd.s32 %s92, 1
    %p96 = scmp.eq.s32.totalorder %s16, 1
    %p97 = scmp.ne.s32.totalorder %s92, %s94
    %p98 = scmp.eq.s32.totalorder %s16, 0
    %p99 = por %p97, %p98
    %p100 = scmp.ne.s32.totalorder %s92, %s94
    %p101 = scmp.eq.s32.totalorder %s21, 1
    %p102 = por %p100, %p101
    %p103 = scmp.ne.s32.totalorder %s94, %s95
    %p104 = scmp.eq.s32.totalorder %s21, 0
    %p105 = por %p103, %p104
    %p106 = scmp.ne.s32.totalorder %s94, %s95
    %p107 = scmp.eq.s32.totalorder %s22, 1
    %p108 = por %p106, %p107
    %p110 = scmp.ne.s32.totalorder %s95, %s109
    %p111 = scmp.eq.s32.totalorder %s22, 0
    %p112 = por %p110, %p111
    %s114 = sadd.s32 %s113, 1
    %p117 = scmp.eq.s32.totalorder %s16, 1
    %p118 = scmp.ne.s32.totalorder %s113, %s115
    %p119 = scmp.eq.s32.totalorder %s16, 0
    %p120 = por %p118, %p119
    %p121 = scmp.ne.s32.totalorder %s113, %s115
    %p122 = scmp.eq.s32.totalorder %s21, 1
    %p123 = por %p121, %p122
    %p124 = scmp.ne.s32.totalorder %s115, %s116
    %p125 = scmp.eq.s32.totalorder %s21, 0
    %p126 = por %p124, %p125
    %p127 = scmp.ne.s32.totalorder %s115, %s116
    %p128 = scmp.eq.s32.totalorder %s22, 1
    %p129 = por %p127, %p128
    %p131 = scmp.ne.s32.totalorder %s116, %s130
    %p132 = scmp.eq.s32.totalorder %s22, 0
    %p133 = por %p131, %p132
    %s135 = sadd.s32 %s134, 1
    %p138 = scmp.eq.s32.totalorder %s16, 1
    %p139 = scmp.ne.s32.totalorder %s134, %s136
    %p140 = scmp.eq.s32.totalorder %s16, 0
    %p141 = por %p139, %p140
    %p142 = scmp.ne.s32.totalorder %s134, %s136
    %p143 = scmp.eq.s32.totalorder %s21, 1
    %p144 = por %p142, %p143
    %p145 = scmp.ne.s32.totalorder %s136, %s137
    %p146 = scmp.eq.s32.totalorder %s21, 0
    %p147 = por %p145, %p146
    %p148 = scmp.ne.s32.totalorder %s136, %s137
    %p149 = scmp.eq.s32.totalorder %s22, 1
    %p150 = por %p148, %p149
    %p152 = scmp.ne.s32.totalorder %s137, %s151
    %p153 = scmp.eq.s32.totalorder %s22, 0
    %p154 = por %p152, %p153
    %s156 = sadd.s32 %s155, 1
    %p159 = scmp.eq.s32.totalorder %s16, 1
    %p160 = scmp.ne.s32.totalorder %s155, %s157
    %p161 = scmp.eq.s32.totalorder %s16, 0
    %p162 = por %p160, %p161
    %p163 = scmp.ne.s32.totalorder %s155, %s157
    %p164 = scmp.eq.s32.totalorder %s21, 1
    %p165 = por %p163, %p164
    %p166 = scmp.ne.s32.totalorder %s157, %s158
    %p167 = scmp.eq.s32.totalorder %s21, 0
    %p168 = por %p166, %p167
    %p169 = scmp.ne.s32.totalorder %s157, %s158
    %p170 = scmp.eq.s32.totalorder %s22, 1
    %p171 = por %p169, %p170
    %p173 = scmp.ne.s32.totalorder %s158, %s172
    %p174 = scmp.eq.s32.totalorder %s22, 0
    %p175 = por %p173, %p174
    %s177 = sadd.s32 %s176, 1
    %p180 = scmp.eq.s32.totalorder %s16, 1
    %p181 = scmp.ne.s32.totalorder %s176, %s178
    %p182 = scmp.eq.s32.totalorder %s16, 0
    %p183 = por %p181, %p182
    %p184 = scmp.ne.s32.totalorder %s176, %s178
    %p185 = scmp.eq.s32.totalorder %s21, 1
    %p186 = por %p184, %p185
    %p187 = scmp.ne.s32.totalorder %s178, %s179
    %p188 = scmp.eq.s32.totalorder %s21, 0
    %p189 = por %p187, %p188
    %p190 = scmp.ne.s32.totalorder %s178, %s179
    %p191 = scmp.eq.s32.totalorder %s22, 1
    %p192 = por %p190, %p191
    %p194 = scmp.ne.s32.totalorder %s179, %s193
    %p195 = scmp.eq.s32.totalorder %s22, 0
    %p196 = por %p194, %p195
    %s198 = sadd.s32 %s197, 1
    %p201 = scmp.eq.s32.totalorder %s16, 1
    %p202 = scmp.ne.s32.totalorder %s197, %s199
    %p203 = scmp.eq.s32.totalorder %s16, 0
    %p204 = por %p202, %p203
    %p205 = scmp.ne.s32.totalorder %s197, %s199
    %p206 = scmp.eq.s32.totalorder %s21, 1
    %p207 = por %p205, %p206
    %p208 = scmp.ne.s32.totalorder %s199, %s200
    %p209 = scmp.eq.s32.totalorder %s21, 0
    %p210 = por %p208, %p209
    %p211 = scmp.ne.s32.totalorder %s199, %s200
    %p212 = scmp.eq.s32.totalorder %s22, 1
    %p213 = por %p211, %p212
    %p215 = scmp.ne.s32.totalorder %s200, %s214
    %p216 = scmp.eq.s32.totalorder %s22, 0
    %p217 = por %p215, %p216
    %s218 = ssub.s32 %s16, %s23
    %p219 = scmp.eq.s32.totalorder %s218, 0
    %s221 = sadd.s32 %s220, 1
    %s222 = scalar_select %p219, %s220, %s221
    %p225 = pneg %p219
    %p226 = scmp.eq.s32.totalorder %s16, 1
    %p227 = por %p225, %p226
    %p228 = scmp.ne.s32.totalorder %s220, %s223
    %p229 = scmp.eq.s32.totalorder %s16, 0
    %p230 = por %p228, %p229
    %p231 = scmp.ne.s32.totalorder %s220, %s223
    %p232 = scmp.eq.s32.totalorder %s21, 1
    %p233 = por %p231, %p232
    %p234 = scmp.ne.s32.totalorder %s223, %s224
    %p235 = scmp.eq.s32.totalorder %s21, 0
    %p236 = por %p234, %p235
    %p237 = scmp.ne.s32.totalorder %s223, %s224
    %p238 = scmp.eq.s32.totalorder %s22, 1
    %p239 = por %p237, %p238
    %p241 = scmp.ne.s32.totalorder %s224, %s240
    %p242 = scmp.eq.s32.totalorder %s22, 0
    %p243 = por %p241, %p242
    %p244 = scmp.le.s32.totalorder 1, %s16
    %p245 = scmp.lt.s32.totalorder %s16, 3
    %p246 = pnand %p244, %p245
    %p247 = pneg %p246
    // Predicated region
    $region9: #{fraud_detection_forward.1} parent=5 // pred_check
      _
    $region10: #{fraud_detection_forward.1} parent=5 // pred_check_branch
      %249 = sbr.rel (%p246) target = $region12
    $region11: #{fraud_detection_forward.1} parent=5 // pred_region
      %s250 = ssub.s32 %s16, 1
      // Predicated region
      $region13: #{fraud_detection_forward.1} parent=11 // pred_check
        %p251 = pneg %p63
      $region14: #{fraud_detection_forward.1} parent=11 // pred_check_branch
        %253 = sbr.rel (%p251) target = $region16
      $region15: #{fraud_detection_forward.1} parent=11 // pred_region
        _
      $region16: #{fraud_detection_forward.1} parent=11 // pred_fallthru
        _
      // Predicated region
      $region17: #{fraud_detection_forward.1} parent=11 // pred_check
        %p254 = pneg %p84
      $region18: #{fraud_detection_forward.1} parent=11 // pred_check_branch
        %256 = sbr.rel (%p254) target = $region20
      $region19: #{fraud_detection_forward.1} parent=11 // pred_region
        _
      $region20: #{fraud_detection_forward.1} parent=11 // pred_fallthru
        _
      // Predicated region
      $region21: #{fraud_detection_forward.1} parent=11 // pred_check
        %p257 = pneg %p105
      $region22: #{fraud_detection_forward.1} parent=11 // pred_check_branch
        %259 = sbr.rel (%p257) target = $region24
      $region23: #{fraud_detection_forward.1} parent=11 // pred_region
        _
      $region24: #{fraud_detection_forward.1} parent=11 // pred_fallthru
        _
      // Predicated region
      $region25: #{fraud_detection_forward.1} parent=11 // pred_check
        %p260 = pneg %p126
      $region26: #{fraud_detection_forward.1} parent=11 // pred_check_branch
        %262 = sbr.rel (%p260) target = $region28
      $region27: #{fraud_detection_forward.1} parent=11 // pred_region
        _
      $region28: #{fraud_detection_forward.1} parent=11 // pred_fallthru
        _
      // Predicated region
      $region29: #{fraud_detection_forward.1} parent=11 // pred_check
        %p263 = pneg %p147
      $region30: #{fraud_detection_forward.1} parent=11 // pred_check_branch
        %265 = sbr.rel (%p263) target = $region32
      $region31: #{fraud_detection_forward.1} parent=11 // pred_region
        _
      $region32: #{fraud_detection_forward.1} parent=11 // pred_fallthru
        _
      // Predicated region
      $region33: #{fraud_detection_forward.1} parent=11 // pred_check
        %p266 = pneg %p168
      $region34: #{fraud_detection_forward.1} parent=11 // pred_check_branch
        %268 = sbr.rel (%p266) target = $region36
      $region35: #{fraud_detection_forward.1} parent=11 // pred_region
        _
      $region36: #{fraud_detection_forward.1} parent=11 // pred_fallthru
        _
      // Predicated region
      $region37: #{fraud_detection_forward.1} parent=11 // pred_check
        %p269 = pneg %p189
      $region38: #{fraud_detection_forward.1} parent=11 // pred_check_branch
        %271 = sbr.rel (%p269) target = $region40
      $region39: #{fraud_detection_forward.1} parent=11 // pred_region
        _
      $region40: #{fraud_detection_forward.1} parent=11 // pred_fallthru
        _
      // Predicated region
      $region41: #{fraud_detection_forward.1} parent=11 // pred_check
        %p272 = pneg %p210
      $region42: #{fraud_detection_forward.1} parent=11 // pred_check_branch
        %274 = sbr.rel (%p272) target = $region44
      $region43: #{fraud_detection_forward.1} parent=11 // pred_region
        _
      $region44: #{fraud_detection_forward.1} parent=11 // pred_fallthru
        _
    $region12: #{fraud_detection_forward.1} parent=5 // pred_fallthru
      _
    %p275 = scmp.lt.s32.totalorder %s16, 2
    // Predicated region
    $region45: #{fraud_detection_forward.1} parent=5 // pred_check
      %p276 = pneg %p275
    $region46: #{fraud_detection_forward.1} parent=5 // pred_check_branch
      %278 = sbr.rel (%p276) target = $region48
    $region47: #{fraud_detection_forward.1} parent=5 // pred_region
      // Predicated region
      $region49: #{fraud_detection_forward.1} parent=47 // pred_check
        %p279 = pneg %p36
      $region50: #{fraud_detection_forward.1} parent=47 // pred_check_branch
        %281 = sbr.rel (%p279) target = $region52
      $region51: #{fraud_detection_forward.1} parent=47 // pred_region
        %s282 = smul.u32 64, %s16
        %p283 = scmp.lt.s32.totalorder %s282, 127
        %s284 = scalar_select %p283, %s282, 127
        %s285 = smul.addr %s284, 4
        %s286 = scalar_lea.vmem %s0, %s285
        %s287 = smul.u32 64, %s16
      $region52: #{fraud_detection_forward.1} parent=47 // pred_fallthru
        _
    $region48: #{fraud_detection_forward.1} parent=5 // pred_fallthru
      _
    %p288 = scmp.le.s32.totalorder 1, %s16
    %p289 = scmp.lt.s32.totalorder %s16, 3
    %p290 = pnand %p288, %p289
    %p291 = pneg %p290
    // Predicated region
    $region53: #{fraud_detection_forward.1} parent=5 // pred_check
      _
    $region54: #{fraud_detection_forward.1} parent=5 // pred_check_branch
      %293 = sbr.rel (%p290) target = $region56
    $region55: #{fraud_detection_forward.1} parent=5 // pred_region
      %s294 = ssub.s32 %s16, 1
      %s295 = smul.u32 64, %s21
      %p296 = scmp.lt.s32.totalorder %s295, 127
      %s297 = scalar_select %p296, %s295, 127
      %s298 = smul.addr %s297, 4
      %s299 = scalar_lea.vmem %s0, %s298
      %p300 = pneg %p42
      %p301 = pneg %p39
      %p302 = pneg %p63
      %p303 = pneg %p60
      %p304 = pneg %p84
      %p305 = pneg %p81
      %p306 = pneg %p105
      %p307 = pneg %p102
      %p308 = pneg %p126
      %p309 = pneg %p123
      %p310 = pneg %p147
      %p311 = pneg %p144
      %p312 = pneg %p168
      %p313 = pneg %p165
      %p314 = pneg %p189
      %p315 = pneg %p186
      %p316 = pneg %p210
      %p317 = pneg %p207
      %p318 = pneg %p236
      %p319 = pneg %p233
      %s320 = smul.u32 4, %s21
      %p321 = scmp.lt.s32.totalorder %s320, 7
      %s322 = scalar_select %p321, %s320, 7
      %s323 = scalar_lea.vmem %s9, %s322
      %s324 = smul.u32 64, %s21
      %p325 = scmp.lt.s32.totalorder %s324, 127
      %s326 = scalar_select %p325, %s324, 127
      %s327 = smul.addr %s326, 4
      %s328 = scalar_lea.vmem %s0, %s327
      %s329 = smul.u32 64, %s21
      %s330 = smul.u32 4, %s21
      %p331 = scmp.lt.s32.totalorder %s330, 7
      %s332 = scalar_select %p331, %s330, 7
      %s333 = scalar_lea.vmem %s9, %s332
      %s334 = smul.u32 4, %s21
      %v336 = vld [vmem:[%s1] sm:$0xf]
      %v337 = vld [vmem:[%s1 + $0x4] sm:$0xf]
      %v338 = vld [vmem:[%s1 + $0x8] sm:$0xf]
      %v339 = vld [vmem:[%s1 + $0xc] sm:$0xf]
      %v340 = vld [vmem:[%s1 + $0x10] sm:$0xf]
      %v341 = vld [vmem:[%s1 + $0x14] sm:$0xf]
      %v342 = vld [vmem:[%s1 + $0x18] sm:$0xf]
      %v343 = vld [vmem:[%s1 + $0x1c] sm:$0xf]
      %v344 = vld [vmem:[%s1 + $0x20] sm:$0xf]
      %v345 = vld [vmem:[%s1 + $0x24] sm:$0xf]
      %v346 = vld [vmem:[%s1 + $0x28] sm:$0xf]
      %v347 = vld [vmem:[%s1 + $0x2c] sm:$0xf]
      %v348 = vld [vmem:[%s1 + $0x30] sm:$0xf]
      %v349 = vld [vmem:[%s1 + $0x34] sm:$0xf]
      %v350 = vld [vmem:[%s1 + $0x38] sm:$0xf]
      %v351 = vld [vmem:[%s1 + $0x3c] sm:$0xf]
      %v352 = vld [vmem:[%s1 + $0x40] sm:$0xf]
      %v353 = vld [vmem:[%s1 + $0x44] sm:$0xf]
      %v354 = vld [vmem:[%s1 + $0x48] sm:$0xf]
      %v355 = vld [vmem:[%s1 + $0x4c] sm:$0xf]
      %v356 = vld [vmem:[%s1 + $0x50] sm:$0xf]
      %v357 = vld [vmem:[%s1 + $0x54] sm:$0xf]
      %v358 = vld [vmem:[%s1 + $0x58] sm:$0xf]
      %v359 = vld [vmem:[%s1 + $0x5c] sm:$0xf]
      %v360 = vld [vmem:[%s1 + $0x60] sm:$0xf]
      %v361 = vld [vmem:[%s1 + $0x64] sm:$0xf]
      %v362 = vld [vmem:[%s1 + $0x68] sm:$0xf]
      %v363 = vld [vmem:[%s1 + $0x6c] sm:$0xf]
      %v364 = vld [vmem:[%s1 + $0x70] sm:$0xf]
      %v365 = vld [vmem:[%s1 + $0x74] sm:$0xf]
      %v366 = vld [vmem:[%s1 + $0x78] sm:$0xf]
      %v367 = vld [vmem:[%s1 + $0x7c] sm:$0xf]
      %v368 = vld [vmem:[%s1 + $0x80] sm:$0xf]
      %v369 = vld [vmem:[%s1 + $0x84] sm:$0xf]
      %v370 = vld [vmem:[%s1 + $0x88] sm:$0xf]
      %v371 = vld [vmem:[%s1 + $0x8c] sm:$0xf]
      %v372 = vld [vmem:[%s1 + $0x90] sm:$0xf]
      %v373 = vld [vmem:[%s1 + $0x94] sm:$0xf]
      %v374 = vld [vmem:[%s1 + $0x98] sm:$0xf]
      %v375 = vld [vmem:[%s1 + $0x9c] sm:$0xf]
      %v376 = vld [vmem:[%s1 + $0xa0] sm:$0xf]
      %v377 = vld [vmem:[%s1 + $0xa4] sm:$0xf]
      %v378 = vld [vmem:[%s1 + $0xa8] sm:$0xf]
      %v379 = vld [vmem:[%s1 + $0xac] sm:$0xf]
      %v380 = vld [vmem:[%s1 + $0xb0] sm:$0xf]
      %v381 = vld [vmem:[%s1 + $0xb4] sm:$0xf]
      %v382 = vld [vmem:[%s1 + $0xb8] sm:$0xf]
      %v383 = vld [vmem:[%s1 + $0xbc] sm:$0xf]
      %v384 = vld [vmem:[%s1 + $0xc0] sm:$0xf]
      %v385 = vld [vmem:[%s1 + $0xc4] sm:$0xf]
      %v386 = vld [vmem:[%s1 + $0xc8] sm:$0xf]
      %v387 = vld [vmem:[%s1 + $0xcc] sm:$0xf]
      %v388 = vld [vmem:[%s1 + $0xd0] sm:$0xf]
      %v389 = vld [vmem:[%s1 + $0xd4] sm:$0xf]
      %v390 = vld [vmem:[%s1 + $0xd8] sm:$0xf]
      %v391 = vld [vmem:[%s1 + $0xdc] sm:$0xf]
      %v392 = vld [vmem:[%s1 + $0xe0] sm:$0xf]
      %v393 = vld [vmem:[%s1 + $0xe4] sm:$0xf]
      %v394 = vld [vmem:[%s1 + $0xe8] sm:$0xf]
      %v395 = vld [vmem:[%s1 + $0xec] sm:$0xf]
      %v396 = vld [vmem:[%s1 + $0xf0] sm:$0xf]
      %v397 = vld [vmem:[%s1 + $0xf4] sm:$0xf]
      %v398 = vld [vmem:[%s1 + $0xf8] sm:$0xf]
      %v399 = vld [vmem:[%s1 + $0xfc] sm:$0xf]
      %v400 = vld [vmem:[%s328] sm:$0xf]
      %v401 = vld [vmem:[%s328 + $0x4] sm:$0xf]
      %v402 = vld [vmem:[%s328 + $0x8] sm:$0xf]
      %v403 = vld [vmem:[%s328 + $0xc] sm:$0xf]
      %v404 = vld [vmem:[%s328 + $0x10] sm:$0xf]
      %v405 = vld [vmem:[%s328 + $0x14] sm:$0xf]
      %v406 = vld [vmem:[%s328 + $0x18] sm:$0xf]
      %v407 = vld [vmem:[%s328 + $0x1c] sm:$0xf]
      %v408 = vld [vmem:[%s328 + $0x20] sm:$0xf]
      %v409 = vld [vmem:[%s328 + $0x24] sm:$0xf]
      %v410 = vld [vmem:[%s328 + $0x28] sm:$0xf]
      %v411 = vld [vmem:[%s328 + $0x2c] sm:$0xf]
      %v412 = vld [vmem:[%s328 + $0x30] sm:$0xf]
      %v413 = vld [vmem:[%s328 + $0x34] sm:$0xf]
      %v414 = vld [vmem:[%s328 + $0x38] sm:$0xf]
      %v415 = vld [vmem:[%s328 + $0x3c] sm:$0xf]
      %v416 = vld [vmem:[%s328 + $0x40] sm:$0xf]
      %v417 = vld [vmem:[%s328 + $0x44] sm:$0xf]
      %v418 = vld [vmem:[%s328 + $0x48] sm:$0xf]
      %v419 = vld [vmem:[%s328 + $0x4c] sm:$0xf]
      %v420 = vld [vmem:[%s328 + $0x50] sm:$0xf]
      %v421 = vld [vmem:[%s328 + $0x54] sm:$0xf]
      %v422 = vld [vmem:[%s328 + $0x58] sm:$0xf]
      %v423 = vld [vmem:[%s328 + $0x5c] sm:$0xf]
      %v424 = vld [vmem:[%s328 + $0x60] sm:$0xf]
      %v425 = vld [vmem:[%s328 + $0x64] sm:$0xf]
      %v426 = vld [vmem:[%s328 + $0x68] sm:$0xf]
      %v427 = vld [vmem:[%s328 + $0x6c] sm:$0xf]
      %v428 = vld [vmem:[%s328 + $0x70] sm:$0xf]
      %v429 = vld [vmem:[%s328 + $0x74] sm:$0xf]
      %v430 = vld [vmem:[%s328 + $0x78] sm:$0xf]
      %v431 = vld [vmem:[%s328 + $0x7c] sm:$0xf]
      %v432 = vld [vmem:[%s328 + $0x80] sm:$0xf]
      %v433 = vld [vmem:[%s328 + $0x84] sm:$0xf]
      %v434 = vld [vmem:[%s328 + $0x88] sm:$0xf]
      %v435 = vld [vmem:[%s328 + $0x8c] sm:$0xf]
      %v436 = vld [vmem:[%s328 + $0x90] sm:$0xf]
      %v437 = vld [vmem:[%s328 + $0x94] sm:$0xf]
      %v438 = vld [vmem:[%s328 + $0x98] sm:$0xf]
      %v439 = vld [vmem:[%s328 + $0x9c] sm:$0xf]
      %v440 = vld [vmem:[%s328 + $0xa0] sm:$0xf]
      %v441 = vld [vmem:[%s328 + $0xa4] sm:$0xf]
      %v442 = vld [vmem:[%s328 + $0xa8] sm:$0xf]
      %v443 = vld [vmem:[%s328 + $0xac] sm:$0xf]
      %v444 = vld [vmem:[%s328 + $0xb0] sm:$0xf]
      %v445 = vld [vmem:[%s328 + $0xb4] sm:$0xf]
      %v446 = vld [vmem:[%s328 + $0xb8] sm:$0xf]
      %v447 = vld [vmem:[%s328 + $0xbc] sm:$0xf]
      %v448 = vld [vmem:[%s328 + $0xc0] sm:$0xf]
      %v449 = vld [vmem:[%s328 + $0xc4] sm:$0xf]
      %v450 = vld [vmem:[%s328 + $0xc8] sm:$0xf]
      %v451 = vld [vmem:[%s328 + $0xcc] sm:$0xf]
      %v452 = vld [vmem:[%s328 + $0xd0] sm:$0xf]
      %v453 = vld [vmem:[%s328 + $0xd4] sm:$0xf]
      %v454 = vld [vmem:[%s328 + $0xd8] sm:$0xf]
      %v455 = vld [vmem:[%s328 + $0xdc] sm:$0xf]
      %v456 = vld [vmem:[%s328 + $0xe0] sm:$0xf]
      %v457 = vld [vmem:[%s328 + $0xe4] sm:$0xf]
      %v458 = vld [vmem:[%s328 + $0xe8] sm:$0xf]
      %v459 = vld [vmem:[%s328 + $0xec] sm:$0xf]
      %v460 = vld [vmem:[%s328 + $0xf0] sm:$0xf]
      %v461 = vld [vmem:[%s328 + $0xf4] sm:$0xf]
      %v462 = vld [vmem:[%s328 + $0xf8] sm:$0xf]
      %v463 = vld [vmem:[%s328 + $0xfc] sm:$0xf]
      %v464 = vld [vmem:[%s2] sm:$0xff]
      %v465 = vld [vmem:[%s2 + $0x8] sm:$0xff]
      %v466 = vld [vmem:[%s2 + $0x10] sm:$0xff]
      %v467 = vld [vmem:[%s2 + $0x18] sm:$0xff]
      %v468 = vld [vmem:[%s2 + $0x20] sm:$0xff]
      %v469 = vld [vmem:[%s2 + $0x28] sm:$0xff]
      %v470 = vld [vmem:[%s2 + $0x30] sm:$0xff]
      %v471 = vld [vmem:[%s2 + $0x38] sm:$0xff]
      %v472 = vld [vmem:[%s2 + $0x40] sm:$0xff]
      %v473 = vld [vmem:[%s2 + $0x48] sm:$0xff]
      %v474 = vld [vmem:[%s2 + $0x50] sm:$0xff]
      %v475 = vld [vmem:[%s2 + $0x58] sm:$0xff]
      %v476 = vld [vmem:[%s2 + $0x60] sm:$0xff]
      %v477 = vld [vmem:[%s2 + $0x68] sm:$0xff]
      %v478 = vld [vmem:[%s2 + $0x70] sm:$0xff]
      %v479 = vld [vmem:[%s2 + $0x78] sm:$0xff]
      %v480 = vld [vmem:[%s2 + $0x80] sm:$0xff]
      %v481 = vld [vmem:[%s2 + $0x88] sm:$0xff]
      %v482 = vld [vmem:[%s2 + $0x90] sm:$0xff]
      %v483 = vld [vmem:[%s2 + $0x98] sm:$0xff]
      %v484 = vld [vmem:[%s2 + $0xa0] sm:$0xff]
      %v485 = vld [vmem:[%s2 + $0xa8] sm:$0xff]
      %v486 = vld [vmem:[%s2 + $0xb0] sm:$0xff]
      %v487 = vld [vmem:[%s2 + $0xb8] sm:$0xff]
      %v488 = vld [vmem:[%s2 + $0xc0] sm:$0xff]
      %v489 = vld [vmem:[%s2 + $0xc8] sm:$0xff]
      %v490 = vld [vmem:[%s2 + $0xd0] sm:$0xff]
      %v491 = vld [vmem:[%s2 + $0xd8] sm:$0xff]
      %v492 = vld [vmem:[%s2 + $0xe0] sm:$0xff]
      %v493 = vld [vmem:[%s2 + $0xe8] sm:$0xff]
      %v494 = vld [vmem:[%s2 + $0xf0] sm:$0xff]
      %v495 = vld [vmem:[%s2 + $0xf8] sm:$0xff]
      %v496 = vld [vmem:[%s2 + $0x100] sm:$0xff]
      %v497 = vld [vmem:[%s2 + $0x108] sm:$0xff]
      %v498 = vld [vmem:[%s2 + $0x110] sm:$0xff]
      %v499 = vld [vmem:[%s2 + $0x118] sm:$0xff]
      %v500 = vld [vmem:[%s2 + $0x120] sm:$0xff]
      %v501 = vld [vmem:[%s2 + $0x128] sm:$0xff]
      %v502 = vld [vmem:[%s2 + $0x130] sm:$0xff]
      %v503 = vld [vmem:[%s2 + $0x138] sm:$0xff]
      %v504 = vld [vmem:[%s2 + $0x140] sm:$0xff]
      %v505 = vld [vmem:[%s2 + $0x148] sm:$0xff]
      %v506 = vld [vmem:[%s2 + $0x150] sm:$0xff]
      %v507 = vld [vmem:[%s2 + $0x158] sm:$0xff]
      %v508 = vld [vmem:[%s2 + $0x160] sm:$0xff]
      %v509 = vld [vmem:[%s2 + $0x168] sm:$0xff]
      %v510 = vld [vmem:[%s2 + $0x170] sm:$0xff]
      %v511 = vld [vmem:[%s2 + $0x178] sm:$0xff]
      %v512 = vld [vmem:[%s2 + $0x180] sm:$0xff]
      %v513 = vld [vmem:[%s2 + $0x188] sm:$0xff]
      %v514 = vld [vmem:[%s2 + $0x190] sm:$0xff]
      %v515 = vld [vmem:[%s2 + $0x198] sm:$0xff]
      %v516 = vld [vmem:[%s2 + $0x1a0] sm:$0xff]
      %v517 = vld [vmem:[%s2 + $0x1a8] sm:$0xff]
      %v518 = vld [vmem:[%s2 + $0x1b0] sm:$0xff]
      %v519 = vld [vmem:[%s2 + $0x1b8] sm:$0xff]
      %v520 = vld [vmem:[%s2 + $0x1c0] sm:$0xff]
      %v521 = vld [vmem:[%s2 + $0x1c8] sm:$0xff]
      %v522 = vld [vmem:[%s2 + $0x1d0] sm:$0xff]
      %v523 = vld [vmem:[%s2 + $0x1d8] sm:$0xff]
      %v524 = vld [vmem:[%s2 + $0x1e0] sm:$0xff]
      %v525 = vld [vmem:[%s2 + $0x1e8] sm:$0xff]
      %v526 = vld [vmem:[%s2 + $0x1f0] sm:$0xff]
      %v527 = vld [vmem:[%s2 + $0x1f8] sm:$0xff]
      %529 = vset.pattern.permute.xlu0 0
      %530 = vperm.xlu0 %529, %v464
      %v531 = vpop.permute.xlu0 %530
      %534 = vset.pattern.permute.xlu0 0
      %535 = vperm.xlu0 %534, %v465
      %v536 = vpop.permute.xlu0 %535
      %539 = vset.pattern.permute.xlu0 0
      %540 = vperm.xlu0 %539, %v466
      %v541 = vpop.permute.xlu0 %540
      %544 = vset.pattern.permute.xlu0 0
      %545 = vperm.xlu0 %544, %v467
      %v546 = vpop.permute.xlu0 %545
      %549 = vset.pattern.permute.xlu0 0
      %550 = vperm.xlu0 %549, %v468
      %v551 = vpop.permute.xlu0 %550
      %554 = vset.pattern.permute.xlu0 0
      %555 = vperm.xlu0 %554, %v469
      %v556 = vpop.permute.xlu0 %555
      %559 = vset.pattern.permute.xlu0 0
      %560 = vperm.xlu0 %559, %v470
      %v561 = vpop.permute.xlu0 %560
      %564 = vset.pattern.permute.xlu0 0
      %565 = vperm.xlu0 %564, %v471
      %v566 = vpop.permute.xlu0 %565
      %569 = vset.pattern.permute.xlu0 0
      %570 = vperm.xlu0 %569, %v472
      %v571 = vpop.permute.xlu0 %570
      %574 = vset.pattern.permute.xlu0 0
      %575 = vperm.xlu0 %574, %v473
      %v576 = vpop.permute.xlu0 %575
      %579 = vset.pattern.permute.xlu0 0
      %580 = vperm.xlu0 %579, %v474
      %v581 = vpop.permute.xlu0 %580
      %584 = vset.pattern.permute.xlu0 0
      %585 = vperm.xlu0 %584, %v475
      %v586 = vpop.permute.xlu0 %585
      %589 = vset.pattern.permute.xlu0 0
      %590 = vperm.xlu0 %589, %v476
      %v591 = vpop.permute.xlu0 %590
      %594 = vset.pattern.permute.xlu0 0
      %595 = vperm.xlu0 %594, %v477
      %v596 = vpop.permute.xlu0 %595
      %599 = vset.pattern.permute.xlu0 0
      %600 = vperm.xlu0 %599, %v478
      %v601 = vpop.permute.xlu0 %600
      %604 = vset.pattern.permute.xlu0 0
      %605 = vperm.xlu0 %604, %v479
      %v606 = vpop.permute.xlu0 %605
      %609 = vset.pattern.permute.xlu0 0
      %610 = vperm.xlu0 %609, %v480
      %v611 = vpop.permute.xlu0 %610
      %614 = vset.pattern.permute.xlu0 0
      %615 = vperm.xlu0 %614, %v481
      %v616 = vpop.permute.xlu0 %615
      %619 = vset.pattern.permute.xlu0 0
      %620 = vperm.xlu0 %619, %v482
      %v621 = vpop.permute.xlu0 %620
      %624 = vset.pattern.permute.xlu0 0
      %625 = vperm.xlu0 %624, %v483
      %v626 = vpop.permute.xlu0 %625
      %629 = vset.pattern.permute.xlu0 0
      %630 = vperm.xlu0 %629, %v484
      %v631 = vpop.permute.xlu0 %630
      %634 = vset.pattern.permute.xlu0 0
      %635 = vperm.xlu0 %634, %v485
      %v636 = vpop.permute.xlu0 %635
      %639 = vset.pattern.permute.xlu0 0
      %640 = vperm.xlu0 %639, %v486
      %v641 = vpop.permute.xlu0 %640
      %644 = vset.pattern.permute.xlu0 0
      %645 = vperm.xlu0 %644, %v487
      %v646 = vpop.permute.xlu0 %645
      %649 = vset.pattern.permute.xlu0 0
      %650 = vperm.xlu0 %649, %v488
      %v651 = vpop.permute.xlu0 %650
      %654 = vset.pattern.permute.xlu0 0
      %655 = vperm.xlu0 %654, %v489
      %v656 = vpop.permute.xlu0 %655
      %659 = vset.pattern.permute.xlu0 0
      %660 = vperm.xlu0 %659, %v490
      %v661 = vpop.permute.xlu0 %660
      %664 = vset.pattern.permute.xlu0 0
      %665 = vperm.xlu0 %664, %v491
      %v666 = vpop.permute.xlu0 %665
      %669 = vset.pattern.permute.xlu0 0
      %670 = vperm.xlu0 %669, %v492
      %v671 = vpop.permute.xlu0 %670
      %674 = vset.pattern.permute.xlu0 0
      %675 = vperm.xlu0 %674, %v493
      %v676 = vpop.permute.xlu0 %675
      %679 = vset.pattern.permute.xlu0 0
      %680 = vperm.xlu0 %679, %v494
      %v681 = vpop.permute.xlu0 %680
      %684 = vset.pattern.permute.xlu0 0
      %685 = vperm.xlu0 %684, %v495
      %v686 = vpop.permute.xlu0 %685
      %689 = vset.pattern.permute.xlu0 0
      %690 = vperm.xlu0 %689, %v496
      %v691 = vpop.permute.xlu0 %690
      %694 = vset.pattern.permute.xlu0 0
      %695 = vperm.xlu0 %694, %v497
      %v696 = vpop.permute.xlu0 %695
      %699 = vset.pattern.permute.xlu0 0
      %700 = vperm.xlu0 %699, %v498
      %v701 = vpop.permute.xlu0 %700
      %704 = vset.pattern.permute.xlu0 0
      %705 = vperm.xlu0 %704, %v499
      %v706 = vpop.permute.xlu0 %705
      %709 = vset.pattern.permute.xlu0 0
      %710 = vperm.xlu0 %709, %v500
      %v711 = vpop.permute.xlu0 %710
      %714 = vset.pattern.permute.xlu0 0
      %715 = vperm.xlu0 %714, %v501
      %v716 = vpop.permute.xlu0 %715
      %719 = vset.pattern.permute.xlu0 0
      %720 = vperm.xlu0 %719, %v502
      %v721 = vpop.permute.xlu0 %720
      %724 = vset.pattern.permute.xlu0 0
      %725 = vperm.xlu0 %724, %v503
      %v726 = vpop.permute.xlu0 %725
      %729 = vset.pattern.permute.xlu0 0
      %730 = vperm.xlu0 %729, %v504
      %v731 = vpop.permute.xlu0 %730
      %734 = vset.pattern.permute.xlu0 0
      %735 = vperm.xlu0 %734, %v505
      %v736 = vpop.permute.xlu0 %735
      %739 = vset.pattern.permute.xlu0 0
      %740 = vperm.xlu0 %739, %v506
      %v741 = vpop.permute.xlu0 %740
      %744 = vset.pattern.permute.xlu0 0
      %745 = vperm.xlu0 %744, %v507
      %v746 = vpop.permute.xlu0 %745
      %749 = vset.pattern.permute.xlu0 0
      %750 = vperm.xlu0 %749, %v508
      %v751 = vpop.permute.xlu0 %750
      %754 = vset.pattern.permute.xlu0 0
      %755 = vperm.xlu0 %754, %v509
      %v756 = vpop.permute.xlu0 %755
      %759 = vset.pattern.permute.xlu0 0
      %760 = vperm.xlu0 %759, %v510
      %v761 = vpop.permute.xlu0 %760
      %764 = vset.pattern.permute.xlu0 0
      %765 = vperm.xlu0 %764, %v511
      %v766 = vpop.permute.xlu0 %765
      %769 = vset.pattern.permute.xlu0 0
      %770 = vperm.xlu0 %769, %v512
      %v771 = vpop.permute.xlu0 %770
      %774 = vset.pattern.permute.xlu0 0
      %775 = vperm.xlu0 %774, %v513
      %v776 = vpop.permute.xlu0 %775
      %779 = vset.pattern.permute.xlu0 0
      %780 = vperm.xlu0 %779, %v514
      %v781 = vpop.permute.xlu0 %780
      %784 = vset.pattern.permute.xlu0 0
      %785 = vperm.xlu0 %784, %v515
      %v786 = vpop.permute.xlu0 %785
      %789 = vset.pattern.permute.xlu0 0
      %790 = vperm.xlu0 %789, %v516
      %v791 = vpop.permute.xlu0 %790
      %794 = vset.pattern.permute.xlu0 0
      %795 = vperm.xlu0 %794, %v517
      %v796 = vpop.permute.xlu0 %795
      %799 = vset.pattern.permute.xlu0 0
      %800 = vperm.xlu0 %799, %v518
      %v801 = vpop.permute.xlu0 %800
      %804 = vset.pattern.permute.xlu0 0
      %805 = vperm.xlu0 %804, %v519
      %v806 = vpop.permute.xlu0 %805
      %809 = vset.pattern.permute.xlu0 0
      %810 = vperm.xlu0 %809, %v520
      %v811 = vpop.permute.xlu0 %810
      %814 = vset.pattern.permute.xlu0 0
      %815 = vperm.xlu0 %814, %v521
      %v816 = vpop.permute.xlu0 %815
      %819 = vset.pattern.permute.xlu0 0
      %820 = vperm.xlu0 %819, %v522
      %v821 = vpop.permute.xlu0 %820
      %824 = vset.pattern.permute.xlu0 0
      %825 = vperm.xlu0 %824, %v523
      %v826 = vpop.permute.xlu0 %825
      %829 = vset.pattern.permute.xlu0 0
      %830 = vperm.xlu0 %829, %v524
      %v831 = vpop.permute.xlu0 %830
      %834 = vset.pattern.permute.xlu0 0
      %835 = vperm.xlu0 %834, %v525
      %v836 = vpop.permute.xlu0 %835
      %839 = vset.pattern.permute.xlu0 0
      %840 = vperm.xlu0 %839, %v526
      %v841 = vpop.permute.xlu0 %840
      %844 = vset.pattern.permute.xlu0 0
      %845 = vperm.xlu0 %844, %v527
      %v846 = vpop.permute.xlu0 %845
      %v912 = vunpack.c.l.b16 %v336
      %v913 = vunpack.c.l.b16 %v337
      %v914 = vunpack.c.l.b16 %v338
      %v915 = vunpack.c.l.b16 %v339
      %v916 = vunpack.c.l.b16 %v340
      %v917 = vunpack.c.l.b16 %v341
      %v918 = vunpack.c.l.b16 %v342
      %v919 = vunpack.c.l.b16 %v343
      %v920 = vunpack.c.l.b16 %v344
      %v921 = vunpack.c.l.b16 %v345
      %v922 = vunpack.c.l.b16 %v346
      %v923 = vunpack.c.l.b16 %v347
      %v924 = vunpack.c.l.b16 %v348
      %v925 = vunpack.c.l.b16 %v349
      %v926 = vunpack.c.l.b16 %v350
      %v927 = vunpack.c.l.b16 %v351
      %v928 = vunpack.c.l.b16 %v352
      %v929 = vunpack.c.l.b16 %v353
      %v930 = vunpack.c.l.b16 %v354
      %v931 = vunpack.c.l.b16 %v355
      %v932 = vunpack.c.l.b16 %v356
      %v933 = vunpack.c.l.b16 %v357
      %v934 = vunpack.c.l.b16 %v358
      %v935 = vunpack.c.l.b16 %v359
      %v936 = vunpack.c.l.b16 %v360
      %v937 = vunpack.c.l.b16 %v361
      %v938 = vunpack.c.l.b16 %v362
      %v939 = vunpack.c.l.b16 %v363
      %v940 = vunpack.c.l.b16 %v364
      %v941 = vunpack.c.l.b16 %v365
      %v942 = vunpack.c.l.b16 %v366
      %v943 = vunpack.c.l.b16 %v367
      %v944 = vunpack.c.l.b16 %v368
      %v945 = vunpack.c.l.b16 %v369
      %v946 = vunpack.c.l.b16 %v370
      %v947 = vunpack.c.l.b16 %v371
      %v948 = vunpack.c.l.b16 %v372
      %v949 = vunpack.c.l.b16 %v373
      %v950 = vunpack.c.l.b16 %v374
      %v951 = vunpack.c.l.b16 %v375
      %v952 = vunpack.c.l.b16 %v376
      %v953 = vunpack.c.l.b16 %v377
      %v954 = vunpack.c.l.b16 %v378
      %v955 = vunpack.c.l.b16 %v379
      %v956 = vunpack.c.l.b16 %v380
      %v957 = vunpack.c.l.b16 %v381
      %v958 = vunpack.c.l.b16 %v382
      %v959 = vunpack.c.l.b16 %v383
      %v960 = vunpack.c.l.b16 %v384
      %v961 = vunpack.c.l.b16 %v385
      %v962 = vunpack.c.l.b16 %v386
      %v963 = vunpack.c.l.b16 %v387
      %v964 = vunpack.c.l.b16 %v388
      %v965 = vunpack.c.l.b16 %v389
      %v966 = vunpack.c.l.b16 %v390
      %v967 = vunpack.c.l.b16 %v391
      %v968 = vunpack.c.l.b16 %v392
      %v969 = vunpack.c.l.b16 %v393
      %v970 = vunpack.c.l.b16 %v394
      %v971 = vunpack.c.l.b16 %v395
      %v972 = vunpack.c.l.b16 %v396
      %v973 = vunpack.c.l.b16 %v397
      %v974 = vunpack.c.l.b16 %v398
      %v975 = vunpack.c.l.b16 %v399
      %v976 = vpack.c.b16 %v913, %v912
      %v977 = vpack.c.b16 %v915, %v914
      %v978 = vpack.c.b16 %v917, %v916
      %v979 = vpack.c.b16 %v919, %v918
      %v980 = vpack.c.b16 %v921, %v920
      %v981 = vpack.c.b16 %v923, %v922
      %v982 = vpack.c.b16 %v925, %v924
      %v983 = vpack.c.b16 %v927, %v926
      %v984 = vpack.c.b16 %v929, %v928
      %v985 = vpack.c.b16 %v931, %v930
      %v986 = vpack.c.b16 %v933, %v932
      %v987 = vpack.c.b16 %v935, %v934
      %v988 = vpack.c.b16 %v937, %v936
      %v989 = vpack.c.b16 %v939, %v938
      %v990 = vpack.c.b16 %v941, %v940
      %v991 = vpack.c.b16 %v943, %v942
      %v992 = vpack.c.b16 %v945, %v944
      %v993 = vpack.c.b16 %v947, %v946
      %v994 = vpack.c.b16 %v949, %v948
      %v995 = vpack.c.b16 %v951, %v950
      %v996 = vpack.c.b16 %v953, %v952
      %v997 = vpack.c.b16 %v955, %v954
      %v998 = vpack.c.b16 %v957, %v956
      %v999 = vpack.c.b16 %v959, %v958
      %v1000 = vpack.c.b16 %v961, %v960
      %v1001 = vpack.c.b16 %v963, %v962
      %v1002 = vpack.c.b16 %v965, %v964
      %v1003 = vpack.c.b16 %v967, %v966
      %v1004 = vpack.c.b16 %v969, %v968
      %v1005 = vpack.c.b16 %v971, %v970
      %v1006 = vpack.c.b16 %v973, %v972
      %v1007 = vpack.c.b16 %v975, %v974
      %v1104 = vunpack.c.l.b16 %v400
      %v1105 = vunpack.c.l.b16 %v401
      %v1106 = vunpack.c.l.b16 %v402
      %v1107 = vunpack.c.l.b16 %v403
      %v1108 = vunpack.c.l.b16 %v404
      %v1109 = vunpack.c.l.b16 %v405
      %v1110 = vunpack.c.l.b16 %v406
      %v1111 = vunpack.c.l.b16 %v407
      %v1112 = vunpack.c.l.b16 %v408
      %v1113 = vunpack.c.l.b16 %v409
      %v1114 = vunpack.c.l.b16 %v410
      %v1115 = vunpack.c.l.b16 %v411
      %v1116 = vunpack.c.l.b16 %v412
      %v1117 = vunpack.c.l.b16 %v413
      %v1118 = vunpack.c.l.b16 %v414
      %v1119 = vunpack.c.l.b16 %v415
      %v1120 = vunpack.c.l.b16 %v416
      %v1121 = vunpack.c.l.b16 %v417
      %v1122 = vunpack.c.l.b16 %v418
      %v1123 = vunpack.c.l.b16 %v419
      %v1124 = vunpack.c.l.b16 %v420
      %v1125 = vunpack.c.l.b16 %v421
      %v1126 = vunpack.c.l.b16 %v422
      %v1127 = vunpack.c.l.b16 %v423
      %v1128 = vunpack.c.l.b16 %v424
      %v1129 = vunpack.c.l.b16 %v425
      %v1130 = vunpack.c.l.b16 %v426
      %v1131 = vunpack.c.l.b16 %v427
      %v1132 = vunpack.c.l.b16 %v428
      %v1133 = vunpack.c.l.b16 %v429
      %v1134 = vunpack.c.l.b16 %v430
      %v1135 = vunpack.c.l.b16 %v431
      %v1136 = vunpack.c.l.b16 %v432
      %v1137 = vunpack.c.l.b16 %v433
      %v1138 = vunpack.c.l.b16 %v434
      %v1139 = vunpack.c.l.b16 %v435
      %v1140 = vunpack.c.l.b16 %v436
      %v1141 = vunpack.c.l.b16 %v437
      %v1142 = vunpack.c.l.b16 %v438
      %v1143 = vunpack.c.l.b16 %v439
      %v1144 = vunpack.c.l.b16 %v440
      %v1145 = vunpack.c.l.b16 %v441
      %v1146 = vunpack.c.l.b16 %v442
      %v1147 = vunpack.c.l.b16 %v443
      %v1148 = vunpack.c.l.b16 %v444
      %v1149 = vunpack.c.l.b16 %v445
      %v1150 = vunpack.c.l.b16 %v446
      %v1151 = vunpack.c.l.b16 %v447
      %v1152 = vunpack.c.l.b16 %v448
      %v1153 = vunpack.c.l.b16 %v449
      %v1154 = vunpack.c.l.b16 %v450
      %v1155 = vunpack.c.l.b16 %v451
      %v1156 = vunpack.c.l.b16 %v452
      %v1157 = vunpack.c.l.b16 %v453
      %v1158 = vunpack.c.l.b16 %v454
      %v1159 = vunpack.c.l.b16 %v455
      %v1160 = vunpack.c.l.b16 %v456
      %v1161 = vunpack.c.l.b16 %v457
      %v1162 = vunpack.c.l.b16 %v458
      %v1163 = vunpack.c.l.b16 %v459
      %v1164 = vunpack.c.l.b16 %v460
      %v1165 = vunpack.c.l.b16 %v461
      %v1166 = vunpack.c.l.b16 %v462
      %v1167 = vunpack.c.l.b16 %v463
      %v1168 = vpack.c.b16 %v1105, %v1104
      %v1169 = vpack.c.b16 %v1107, %v1106
      %v1170 = vpack.c.b16 %v1109, %v1108
      %v1171 = vpack.c.b16 %v1111, %v1110
      %v1172 = vpack.c.b16 %v1113, %v1112
      %v1173 = vpack.c.b16 %v1115, %v1114
      %v1174 = vpack.c.b16 %v1117, %v1116
      %v1175 = vpack.c.b16 %v1119, %v1118
      %v1176 = vpack.c.b16 %v1121, %v1120
      %v1177 = vpack.c.b16 %v1123, %v1122
      %v1178 = vpack.c.b16 %v1125, %v1124
      %v1179 = vpack.c.b16 %v1127, %v1126
      %v1180 = vpack.c.b16 %v1129, %v1128
      %v1181 = vpack.c.b16 %v1131, %v1130
      %v1182 = vpack.c.b16 %v1133, %v1132
      %v1183 = vpack.c.b16 %v1135, %v1134
      %v1184 = vpack.c.b16 %v1137, %v1136
      %v1185 = vpack.c.b16 %v1139, %v1138
      %v1186 = vpack.c.b16 %v1141, %v1140
      %v1187 = vpack.c.b16 %v1143, %v1142
      %v1188 = vpack.c.b16 %v1145, %v1144
      %v1189 = vpack.c.b16 %v1147, %v1146
      %v1190 = vpack.c.b16 %v1149, %v1148
      %v1191 = vpack.c.b16 %v1151, %v1150
      %v1192 = vpack.c.b16 %v1153, %v1152
      %v1193 = vpack.c.b16 %v1155, %v1154
      %v1194 = vpack.c.b16 %v1157, %v1156
      %v1195 = vpack.c.b16 %v1159, %v1158
      %v1196 = vpack.c.b16 %v1161, %v1160
      %v1197 = vpack.c.b16 %v1163, %v1162
      %v1198 = vpack.c.b16 %v1165, %v1164
      %v1199 = vpack.c.b16 %v1167, %v1166
      %1232 = vmatprep.subr.bf16.mxu0 0
      %1233 = vmatpush1.bf16.xpose.msra.mxu0 %v1175
      %1234 = vmatprep.subr.bf16.mxu0 0
      %1235 = vmatpush1.bf16.xpose.msra.mxu0 %v1174
      %1236 = vmatprep.subr.bf16.mxu0 0
      %1237 = vmatpush1.bf16.xpose.msra.mxu0 %v1173
      %1238 = vmatprep.subr.bf16.mxu0 0
      %1239 = vmatpush1.bf16.xpose.msra.mxu0 %v1172
      %1240 = vmatprep.subr.bf16.mxu0 0
      %1241 = vmatpush1.bf16.xpose.msra.mxu0 %v1171
      %1242 = vmatprep.subr.bf16.mxu0 0
      %1243 = vmatpush1.bf16.xpose.msra.mxu0 %v1170
      %1244 = vmatprep.subr.bf16.mxu0 0
      %1245 = vmatpush1.bf16.xpose.msra.mxu0 %v1169
      %1246 = vmatprep.subr.bf16.mxu0 0
      %1247 = vmatpush1.bf16.xpose.msra.mxu0 %v1168
      %1248 = vmatprep.subr.bf16.mxu0 0
      %1249 = vmatpush2.bf16.xpose.msra.mxu0 %v1183
      %1250 = vmatprep.subr.bf16.mxu0 0
      %1251 = vmatpush2.bf16.xpose.msra.mxu0 %v1182
      %1252 = vmatprep.subr.bf16.mxu0 0
      %1253 = vmatpush2.bf16.xpose.msra.mxu0 %v1181
      %1254 = vmatprep.subr.bf16.mxu0 0
      %1255 = vmatpush2.bf16.xpose.msra.mxu0 %v1180
      %1256 = vmatprep.subr.bf16.mxu0 0
      %1257 = vmatpush2.bf16.xpose.msra.mxu0 %v1179
      %1258 = vmatprep.subr.bf16.mxu0 0
      %1259 = vmatpush2.bf16.xpose.msra.mxu0 %v1178
      %1260 = vmatprep.subr.bf16.mxu0 0
      %1261 = vmatpush2.bf16.xpose.msra.mxu0 %v1177
      %1262 = vmatprep.subr.bf16.mxu0 0
      %1263 = vmatpush2.bf16.xpose.msra.mxu0 %v1176
      %1264 = vmatprep.mubr.bf16.mxu0 0
      %1265 = vmatmul.mubr.bf16.gmra.mxu0 %v976
      %v1266 = vpop.f32.mrf.mxu0
      %v1267 = vadd.f32 %v531, %v1266
      %v1268 = vpop.f32.mrf.mxu0
      %v1269 = vadd.f32 %v531, %v1268
      %v1270 = vpop.f32.mrf.mxu0
      %v1271 = vadd.f32 %v536, %v1270
      %v1272 = vpop.f32.mrf.mxu0
      %v1273 = vadd.f32 %v536, %v1272
      %1274 = vmatprep.mubr.bf16.mxu0 0
      %1275 = vmatmul.mubr.bf16.gmra.mxu0 %v977
      %v1276 = vpop.f32.mrf.mxu0
      %v1277 = vadd.f32 %v541, %v1276
      %v1278 = vpop.f32.mrf.mxu0
      %v1279 = vadd.f32 %v541, %v1278
      %v1280 = vpop.f32.mrf.mxu0
      %v1281 = vadd.f32 %v546, %v1280
      %v1282 = vpop.f32.mrf.mxu0
      %v1283 = vadd.f32 %v546, %v1282
      %1284 = vmatprep.mubr.bf16.mxu0 0
      %1285 = vmatmul.mubr.bf16.gmra.mxu0 %v978
      %v1286 = vpop.f32.mrf.mxu0
      %v1287 = vadd.f32 %v551, %v1286
      %v1288 = vpop.f32.mrf.mxu0
      %v1289 = vadd.f32 %v551, %v1288
      %v1290 = vpop.f32.mrf.mxu0
      %v1291 = vadd.f32 %v556, %v1290
      %v1292 = vpop.f32.mrf.mxu0
      %v1293 = vadd.f32 %v556, %v1292
      %1294 = vmatprep.mubr.bf16.mxu0 0
      %1295 = vmatmul.mubr.bf16.gmra.mxu0 %v979
      %v1296 = vpop.f32.mrf.mxu0
      %v1297 = vadd.f32 %v561, %v1296
      %v1298 = vpop.f32.mrf.mxu0
      %v1299 = vadd.f32 %v561, %v1298
      %v1300 = vpop.f32.mrf.mxu0
      %v1301 = vadd.f32 %v566, %v1300
      %v1302 = vpop.f32.mrf.mxu0
      %v1303 = vadd.f32 %v566, %v1302
      %1304 = vmatprep.mubr.bf16.mxu0 0
      %1305 = vmatmul.mubr.bf16.gmra.mxu0 %v980
      %v1306 = vpop.f32.mrf.mxu0
      %v1307 = vadd.f32 %v571, %v1306
      %v1308 = vpop.f32.mrf.mxu0
      %v1309 = vadd.f32 %v571, %v1308
      %v1310 = vpop.f32.mrf.mxu0
      %v1311 = vadd.f32 %v576, %v1310
      %v1312 = vpop.f32.mrf.mxu0
      %v1313 = vadd.f32 %v576, %v1312
      %1314 = vmatprep.mubr.bf16.mxu0 0
      %1315 = vmatmul.mubr.bf16.gmra.mxu0 %v981
      %v1316 = vpop.f32.mrf.mxu0
      %v1317 = vadd.f32 %v581, %v1316
      %v1318 = vpop.f32.mrf.mxu0
      %v1319 = vadd.f32 %v581, %v1318
      %v1320 = vpop.f32.mrf.mxu0
      %v1321 = vadd.f32 %v586, %v1320
      %v1322 = vpop.f32.mrf.mxu0
      %v1323 = vadd.f32 %v586, %v1322
      %1324 = vmatprep.mubr.bf16.mxu0 0
      %1325 = vmatmul.mubr.bf16.gmra.mxu0 %v982
      %v1326 = vpop.f32.mrf.mxu0
      %v1327 = vadd.f32 %v591, %v1326
      %v1328 = vpop.f32.mrf.mxu0
      %v1329 = vadd.f32 %v591, %v1328
      %v1330 = vpop.f32.mrf.mxu0
      %v1331 = vadd.f32 %v596, %v1330
      %v1332 = vpop.f32.mrf.mxu0
      %v1333 = vadd.f32 %v596, %v1332
      %1334 = vmatprep.mubr.bf16.mxu0 0
      %1335 = vmatmul.mubr.bf16.gmra.mxu0 %v983
      %v1336 = vpop.f32.mrf.mxu0
      %v1337 = vadd.f32 %v601, %v1336
      %v1338 = vpop.f32.mrf.mxu0
      %v1339 = vadd.f32 %v601, %v1338
      %v1340 = vpop.f32.mrf.mxu0
      %v1341 = vadd.f32 %v606, %v1340
      %v1342 = vpop.f32.mrf.mxu0
      %v1343 = vadd.f32 %v606, %v1342
      %1344 = vmatprep.mubr.bf16.mxu0 0
      %1345 = vmatmul.mubr.bf16.gmra.mxu0 %v984
      %v1346 = vpop.f32.mrf.mxu0
      %v1347 = vadd.f32 %v611, %v1346
      %v1348 = vpop.f32.mrf.mxu0
      %v1349 = vadd.f32 %v611, %v1348
      %v1350 = vpop.f32.mrf.mxu0
      %v1351 = vadd.f32 %v616, %v1350
      %v1352 = vpop.f32.mrf.mxu0
      %v1353 = vadd.f32 %v616, %v1352
      %1354 = vmatprep.mubr.bf16.mxu0 0
      %1355 = vmatmul.mubr.bf16.gmra.mxu0 %v985
      %v1356 = vpop.f32.mrf.mxu0
      %v1357 = vadd.f32 %v621, %v1356
      %v1358 = vpop.f32.mrf.mxu0
      %v1359 = vadd.f32 %v621, %v1358
      %v1360 = vpop.f32.mrf.mxu0
      %v1361 = vadd.f32 %v626, %v1360
      %v1362 = vpop.f32.mrf.mxu0
      %v1363 = vadd.f32 %v626, %v1362
      %1364 = vmatprep.mubr.bf16.mxu0 0
      %1365 = vmatmul.mubr.bf16.gmra.mxu0 %v986
      %v1366 = vpop.f32.mrf.mxu0
      %v1367 = vadd.f32 %v631, %v1366
      %v1368 = vpop.f32.mrf.mxu0
      %v1369 = vadd.f32 %v631, %v1368
      %v1370 = vpop.f32.mrf.mxu0
      %v1371 = vadd.f32 %v636, %v1370
      %v1372 = vpop.f32.mrf.mxu0
      %v1373 = vadd.f32 %v636, %v1372
      %1374 = vmatprep.mubr.bf16.mxu0 0
      %1375 = vmatmul.mubr.bf16.gmra.mxu0 %v987
      %v1376 = vpop.f32.mrf.mxu0
      %v1377 = vadd.f32 %v641, %v1376
      %v1378 = vpop.f32.mrf.mxu0
      %v1379 = vadd.f32 %v641, %v1378
      %v1380 = vpop.f32.mrf.mxu0
      %v1381 = vadd.f32 %v646, %v1380
      %v1382 = vpop.f32.mrf.mxu0
      %v1383 = vadd.f32 %v646, %v1382
      %1384 = vmatprep.mubr.bf16.mxu0 0
      %1385 = vmatmul.mubr.bf16.gmra.mxu0 %v988
      %v1386 = vpop.f32.mrf.mxu0
      %v1387 = vadd.f32 %v651, %v1386
      %v1388 = vpop.f32.mrf.mxu0
      %v1389 = vadd.f32 %v651, %v1388
      %v1390 = vpop.f32.mrf.mxu0
      %v1391 = vadd.f32 %v656, %v1390
      %v1392 = vpop.f32.mrf.mxu0
      %v1393 = vadd.f32 %v656, %v1392
      %1394 = vmatprep.mubr.bf16.mxu0 0
      %1395 = vmatmul.mubr.bf16.gmra.mxu0 %v989
      %v1396 = vpop.f32.mrf.mxu0
      %v1397 = vadd.f32 %v661, %v1396
      %v1398 = vpop.f32.mrf.mxu0
      %v1399 = vadd.f32 %v661, %v1398
      %v1400 = vpop.f32.mrf.mxu0
      %v1401 = vadd.f32 %v666, %v1400
      %v1402 = vpop.f32.mrf.mxu0
      %v1403 = vadd.f32 %v666, %v1402
      %1404 = vmatprep.mubr.bf16.mxu0 0
      %1405 = vmatmul.mubr.bf16.gmra.mxu0 %v990
      %v1406 = vpop.f32.mrf.mxu0
      %v1407 = vadd.f32 %v671, %v1406
      %v1408 = vpop.f32.mrf.mxu0
      %v1409 = vadd.f32 %v671, %v1408
      %v1410 = vpop.f32.mrf.mxu0
      %v1411 = vadd.f32 %v676, %v1410
      %v1412 = vpop.f32.mrf.mxu0
      %v1413 = vadd.f32 %v676, %v1412
      %1414 = vmatprep.mubr.bf16.mxu0 0
      %1415 = vmatmul.mubr.bf16.gmra.mxu0 %v991
      %v1416 = vpop.f32.mrf.mxu0
      %v1417 = vadd.f32 %v681, %v1416
      %v1418 = vpop.f32.mrf.mxu0
      %v1419 = vadd.f32 %v681, %v1418
      %v1420 = vpop.f32.mrf.mxu0
      %v1421 = vadd.f32 %v686, %v1420
      %v1422 = vpop.f32.mrf.mxu0
      %v1423 = vadd.f32 %v686, %v1422
      %1424 = vmatprep.mubr.bf16.mxu0 0
      %1425 = vmatmul.mubr.bf16.gmra.mxu0 %v992
      %v1426 = vpop.f32.mrf.mxu0
      %v1427 = vadd.f32 %v691, %v1426
      %v1428 = vpop.f32.mrf.mxu0
      %v1429 = vadd.f32 %v691, %v1428
      %v1430 = vpop.f32.mrf.mxu0
      %v1431 = vadd.f32 %v696, %v1430
      %v1432 = vpop.f32.mrf.mxu0
      %v1433 = vadd.f32 %v696, %v1432
      %1434 = vmatprep.mubr.bf16.mxu0 0
      %1435 = vmatmul.mubr.bf16.gmra.mxu0 %v993
      %v1436 = vpop.f32.mrf.mxu0
      %v1437 = vadd.f32 %v701, %v1436
      %v1438 = vpop.f32.mrf.mxu0
      %v1439 = vadd.f32 %v701, %v1438
      %v1440 = vpop.f32.mrf.mxu0
      %v1441 = vadd.f32 %v706, %v1440
      %v1442 = vpop.f32.mrf.mxu0
      %v1443 = vadd.f32 %v706, %v1442
      %1444 = vmatprep.mubr.bf16.mxu0 0
      %1445 = vmatmul.mubr.bf16.gmra.mxu0 %v994
      %v1446 = vpop.f32.mrf.mxu0
      %v1447 = vadd.f32 %v711, %v1446
      %v1448 = vpop.f32.mrf.mxu0
      %v1449 = vadd.f32 %v711, %v1448
      %v1450 = vpop.f32.mrf.mxu0
      %v1451 = vadd.f32 %v716, %v1450
      %v1452 = vpop.f32.mrf.mxu0
      %v1453 = vadd.f32 %v716, %v1452
      %1454 = vmatprep.mubr.bf16.mxu0 0
      %1455 = vmatmul.mubr.bf16.gmra.mxu0 %v995
      %v1456 = vpop.f32.mrf.mxu0
      %v1457 = vadd.f32 %v721, %v1456
      %v1458 = vpop.f32.mrf.mxu0
      %v1459 = vadd.f32 %v721, %v1458
      %v1460 = vpop.f32.mrf.mxu0
      %v1461 = vadd.f32 %v726, %v1460
      %v1462 = vpop.f32.mrf.mxu0
      %v1463 = vadd.f32 %v726, %v1462
      %1464 = vmatprep.mubr.bf16.mxu0 0
      %1465 = vmatmul.mubr.bf16.gmra.mxu0 %v996
      %v1466 = vpop.f32.mrf.mxu0
      %v1467 = vadd.f32 %v731, %v1466
      %v1468 = vpop.f32.mrf.mxu0
      %v1469 = vadd.f32 %v731, %v1468
      %v1470 = vpop.f32.mrf.mxu0
      %v1471 = vadd.f32 %v736, %v1470
      %v1472 = vpop.f32.mrf.mxu0
      %v1473 = vadd.f32 %v736, %v1472
      %1474 = vmatprep.mubr.bf16.mxu0 0
      %1475 = vmatmul.mubr.bf16.gmra.mxu0 %v997
      %v1476 = vpop.f32.mrf.mxu0
      %v1477 = vadd.f32 %v741, %v1476
      %v1478 = vpop.f32.mrf.mxu0
      %v1479 = vadd.f32 %v741, %v1478
      %v1480 = vpop.f32.mrf.mxu0
      %v1481 = vadd.f32 %v746, %v1480
      %v1482 = vpop.f32.mrf.mxu0
      %v1483 = vadd.f32 %v746, %v1482
      %1484 = vmatprep.mubr.bf16.mxu0 0
      %1485 = vmatmul.mubr.bf16.gmra.mxu0 %v998
      %v1486 = vpop.f32.mrf.mxu0
      %v1487 = vadd.f32 %v751, %v1486
      %v1488 = vpop.f32.mrf.mxu0
      %v1489 = vadd.f32 %v751, %v1488
      %v1490 = vpop.f32.mrf.mxu0
      %v1491 = vadd.f32 %v756, %v1490
      %v1492 = vpop.f32.mrf.mxu0
      %v1493 = vadd.f32 %v756, %v1492
      %1494 = vmatprep.mubr.bf16.mxu0 0
      %1495 = vmatmul.mubr.bf16.gmra.mxu0 %v999
      %v1496 = vpop.f32.mrf.mxu0
      %v1497 = vadd.f32 %v761, %v1496
      %v1498 = vpop.f32.mrf.mxu0
      %v1499 = vadd.f32 %v761, %v1498
      %v1500 = vpop.f32.mrf.mxu0
      %v1501 = vadd.f32 %v766, %v1500
      %v1502 = vpop.f32.mrf.mxu0
      %v1503 = vadd.f32 %v766, %v1502
      %1504 = vmatprep.mubr.bf16.mxu0 0
      %1505 = vmatmul.mubr.bf16.gmra.mxu0 %v1000
      %v1506 = vpop.f32.mrf.mxu0
      %v1507 = vadd.f32 %v771, %v1506
      %v1508 = vpop.f32.mrf.mxu0
      %v1509 = vadd.f32 %v771, %v1508
      %v1510 = vpop.f32.mrf.mxu0
      %v1511 = vadd.f32 %v776, %v1510
      %v1512 = vpop.f32.mrf.mxu0
      %v1513 = vadd.f32 %v776, %v1512
      %1514 = vmatprep.mubr.bf16.mxu0 0
      %1515 = vmatmul.mubr.bf16.gmra.mxu0 %v1001
      %v1516 = vpop.f32.mrf.mxu0
      %v1517 = vadd.f32 %v781, %v1516
      %v1518 = vpop.f32.mrf.mxu0
      %v1519 = vadd.f32 %v781, %v1518
      %v1520 = vpop.f32.mrf.mxu0
      %v1521 = vadd.f32 %v786, %v1520
      %v1522 = vpop.f32.mrf.mxu0
      %v1523 = vadd.f32 %v786, %v1522
      %1524 = vmatprep.mubr.bf16.mxu0 0
      %1525 = vmatmul.mubr.bf16.gmra.mxu0 %v1002
      %v1526 = vpop.f32.mrf.mxu0
      %v1527 = vadd.f32 %v791, %v1526
      %v1528 = vpop.f32.mrf.mxu0
      %v1529 = vadd.f32 %v791, %v1528
      %v1530 = vpop.f32.mrf.mxu0
      %v1531 = vadd.f32 %v796, %v1530
      %v1532 = vpop.f32.mrf.mxu0
      %v1533 = vadd.f32 %v796, %v1532
      %1534 = vmatprep.mubr.bf16.mxu0 0
      %1535 = vmatmul.mubr.bf16.gmra.mxu0 %v1003
      %v1536 = vpop.f32.mrf.mxu0
      %v1537 = vadd.f32 %v801, %v1536
      %v1538 = vpop.f32.mrf.mxu0
      %v1539 = vadd.f32 %v801, %v1538
      %v1540 = vpop.f32.mrf.mxu0
      %v1541 = vadd.f32 %v806, %v1540
      %v1542 = vpop.f32.mrf.mxu0
      %v1543 = vadd.f32 %v806, %v1542
      %1544 = vmatprep.mubr.bf16.mxu0 0
      %1545 = vmatmul.mubr.bf16.gmra.mxu0 %v1004
      %v1546 = vpop.f32.mrf.mxu0
      %v1547 = vadd.f32 %v811, %v1546
      %v1548 = vpop.f32.mrf.mxu0
      %v1549 = vadd.f32 %v811, %v1548
      %v1550 = vpop.f32.mrf.mxu0
      %v1551 = vadd.f32 %v816, %v1550
      %v1552 = vpop.f32.mrf.mxu0
      %v1553 = vadd.f32 %v816, %v1552
      %1554 = vmatprep.mubr.bf16.mxu0 0
      %1555 = vmatmul.mubr.bf16.gmra.mxu0 %v1005
      %v1556 = vpop.f32.mrf.mxu0
      %v1557 = vadd.f32 %v821, %v1556
      %v1558 = vpop.f32.mrf.mxu0
      %v1559 = vadd.f32 %v821, %v1558
      %v1560 = vpop.f32.mrf.mxu0
      %v1561 = vadd.f32 %v826, %v1560
      %v1562 = vpop.f32.mrf.mxu0
      %v1563 = vadd.f32 %v826, %v1562
      %1564 = vmatprep.mubr.bf16.mxu0 0
      %1565 = vmatmul.mubr.bf16.gmra.mxu0 %v1006
      %v1566 = vpop.f32.mrf.mxu0
      %v1567 = vadd.f32 %v831, %v1566
      %v1568 = vpop.f32.mrf.mxu0
      %v1569 = vadd.f32 %v831, %v1568
      %v1570 = vpop.f32.mrf.mxu0
      %v1571 = vadd.f32 %v836, %v1570
      %v1572 = vpop.f32.mrf.mxu0
      %v1573 = vadd.f32 %v836, %v1572
      %1574 = vmatprep.mubr.bf16.mxu0 0
      %1575 = vmatmul.mubr.bf16.gmra.mxu0 %v1007
      %v1576 = vpop.f32.mrf.mxu0
      %v1577 = vadd.f32 %v841, %v1576
      %v1578 = vpop.f32.mrf.mxu0
      %v1579 = vadd.f32 %v841, %v1578
      %v1580 = vpop.f32.mrf.mxu0
      %v1581 = vadd.f32 %v846, %v1580
      %v1582 = vpop.f32.mrf.mxu0
      %v1583 = vadd.f32 %v846, %v1582
      %1584 = vdwg.mxu0
      %1585 = vmatprep.subr.bf16.mxu0 0
      %1586 = vmatpush1.bf16.xpose.msra.mxu0 %v1191
      %1587 = vmatprep.subr.bf16.mxu0 0
      %1588 = vmatpush1.bf16.xpose.msra.mxu0 %v1190
      %1589 = vmatprep.subr.bf16.mxu0 0
      %1590 = vmatpush1.bf16.xpose.msra.mxu0 %v1189
      %1591 = vmatprep.subr.bf16.mxu0 0
      %1592 = vmatpush1.bf16.xpose.msra.mxu0 %v1188
      %1593 = vmatprep.subr.bf16.mxu0 0
      %1594 = vmatpush1.bf16.xpose.msra.mxu0 %v1187
      %1595 = vmatprep.subr.bf16.mxu0 0
      %1596 = vmatpush1.bf16.xpose.msra.mxu0 %v1186
      %1597 = vmatprep.subr.bf16.mxu0 0
      %1598 = vmatpush1.bf16.xpose.msra.mxu0 %v1185
      %1599 = vmatprep.subr.bf16.mxu0 0
      %1600 = vmatpush1.bf16.xpose.msra.mxu0 %v1184
      %1601 = vmatprep.subr.bf16.mxu0 0
      %1602 = vmatpush2.bf16.xpose.msra.mxu0 %v1199
      %1603 = vmatprep.subr.bf16.mxu0 0
      %1604 = vmatpush2.bf16.xpose.msra.mxu0 %v1198
      %1605 = vmatprep.subr.bf16.mxu0 0
      %1606 = vmatpush2.bf16.xpose.msra.mxu0 %v1197
      %1607 = vmatprep.subr.bf16.mxu0 0
      %1608 = vmatpush2.bf16.xpose.msra.mxu0 %v1196
      %1609 = vmatprep.subr.bf16.mxu0 0
      %1610 = vmatpush2.bf16.xpose.msra.mxu0 %v1195
      %1611 = vmatprep.subr.bf16.mxu0 0
      %1612 = vmatpush2.bf16.xpose.msra.mxu0 %v1194
      %1613 = vmatprep.subr.bf16.mxu0 0
      %1614 = vmatpush2.bf16.xpose.msra.mxu0 %v1193
      %1615 = vmatprep.subr.bf16.mxu0 0
      %1616 = vmatpush2.bf16.xpose.msra.mxu0 %v1192
      %1617 = vmatprep.mubr.bf16.mxu0 0
      %1618 = vmatmul.mubr.bf16.gmra.mxu0 %v976
      %v1619 = vpop.f32.mrf.mxu0
      %v1620 = vadd.f32 %v531, %v1619
      %v1621 = vpop.f32.mrf.mxu0
      %v1622 = vadd.f32 %v531, %v1621
      %v1623 = vpop.f32.mrf.mxu0
      %v1624 = vadd.f32 %v536, %v1623
      %v1625 = vpop.f32.mrf.mxu0
      %v1626 = vadd.f32 %v536, %v1625
      %1627 = vmatprep.mubr.bf16.mxu0 0
      %1628 = vmatmul.mubr.bf16.gmra.mxu0 %v977
      %v1629 = vpop.f32.mrf.mxu0
      %v1630 = vadd.f32 %v541, %v1629
      %v1631 = vpop.f32.mrf.mxu0
      %v1632 = vadd.f32 %v541, %v1631
      %v1633 = vpop.f32.mrf.mxu0
      %v1634 = vadd.f32 %v546, %v1633
      %v1635 = vpop.f32.mrf.mxu0
      %v1636 = vadd.f32 %v546, %v1635
      %1637 = vmatprep.mubr.bf16.mxu0 0
      %1638 = vmatmul.mubr.bf16.gmra.mxu0 %v978
      %v1639 = vpop.f32.mrf.mxu0
      %v1640 = vadd.f32 %v551, %v1639
      %v1641 = vpop.f32.mrf.mxu0
      %v1642 = vadd.f32 %v551, %v1641
      %v1643 = vpop.f32.mrf.mxu0
      %v1644 = vadd.f32 %v556, %v1643
      %v1645 = vpop.f32.mrf.mxu0
      %v1646 = vadd.f32 %v556, %v1645
      %1647 = vmatprep.mubr.bf16.mxu0 0
      %1648 = vmatmul.mubr.bf16.gmra.mxu0 %v979
      %v1649 = vpop.f32.mrf.mxu0
      %v1650 = vadd.f32 %v561, %v1649
      %v1651 = vpop.f32.mrf.mxu0
      %v1652 = vadd.f32 %v561, %v1651
      %v1653 = vpop.f32.mrf.mxu0
      %v1654 = vadd.f32 %v566, %v1653
      %v1655 = vpop.f32.mrf.mxu0
      %v1656 = vadd.f32 %v566, %v1655
      %1657 = vmatprep.mubr.bf16.mxu0 0
      %1658 = vmatmul.mubr.bf16.gmra.mxu0 %v980
      %v1659 = vpop.f32.mrf.mxu0
      %v1660 = vadd.f32 %v571, %v1659
      %v1661 = vpop.f32.mrf.mxu0
      %v1662 = vadd.f32 %v571, %v1661
      %v1663 = vpop.f32.mrf.mxu0
      %v1664 = vadd.f32 %v576, %v1663
      %v1665 = vpop.f32.mrf.mxu0
      %v1666 = vadd.f32 %v576, %v1665
      %1667 = vmatprep.mubr.bf16.mxu0 0
      %1668 = vmatmul.mubr.bf16.gmra.mxu0 %v981
      %v1669 = vpop.f32.mrf.mxu0
      %v1670 = vadd.f32 %v581, %v1669
      %v1671 = vpop.f32.mrf.mxu0
      %v1672 = vadd.f32 %v581, %v1671
      %v1673 = vpop.f32.mrf.mxu0
      %v1674 = vadd.f32 %v586, %v1673
      %v1675 = vpop.f32.mrf.mxu0
      %v1676 = vadd.f32 %v586, %v1675
      %1677 = vmatprep.mubr.bf16.mxu0 0
      %1678 = vmatmul.mubr.bf16.gmra.mxu0 %v982
      %v1679 = vpop.f32.mrf.mxu0
      %v1680 = vadd.f32 %v591, %v1679
      %v1681 = vpop.f32.mrf.mxu0
      %v1682 = vadd.f32 %v591, %v1681
      %v1683 = vpop.f32.mrf.mxu0
      %v1684 = vadd.f32 %v596, %v1683
      %v1685 = vpop.f32.mrf.mxu0
      %v1686 = vadd.f32 %v596, %v1685
      %1687 = vmatprep.mubr.bf16.mxu0 0
      %1688 = vmatmul.mubr.bf16.gmra.mxu0 %v983
      %v1689 = vpop.f32.mrf.mxu0
      %v1690 = vadd.f32 %v601, %v1689
      %v1691 = vpop.f32.mrf.mxu0
      %v1692 = vadd.f32 %v601, %v1691
      %v1693 = vpop.f32.mrf.mxu0
      %v1694 = vadd.f32 %v606, %v1693
      %v1695 = vpop.f32.mrf.mxu0
      %v1696 = vadd.f32 %v606, %v1695
      %1697 = vmatprep.mubr.bf16.mxu0 0
      %1698 = vmatmul.mubr.bf16.gmra.mxu0 %v984
      %v1699 = vpop.f32.mrf.mxu0
      %v1700 = vadd.f32 %v611, %v1699
      %v1701 = vpop.f32.mrf.mxu0
      %v1702 = vadd.f32 %v611, %v1701
      %v1703 = vpop.f32.mrf.mxu0
      %v1704 = vadd.f32 %v616, %v1703
      %v1705 = vpop.f32.mrf.mxu0
      %v1706 = vadd.f32 %v616, %v1705
      %1707 = vmatprep.mubr.bf16.mxu0 0
      %1708 = vmatmul.mubr.bf16.gmra.mxu0 %v985
      %v1709 = vpop.f32.mrf.mxu0
      %v1710 = vadd.f32 %v621, %v1709
      %v1711 = vpop.f32.mrf.mxu0
      %v1712 = vadd.f32 %v621, %v1711
      %v1713 = vpop.f32.mrf.mxu0
      %v1714 = vadd.f32 %v626, %v1713
      %v1715 = vpop.f32.mrf.mxu0
      %v1716 = vadd.f32 %v626, %v1715
      %1717 = vmatprep.mubr.bf16.mxu0 0
      %1718 = vmatmul.mubr.bf16.gmra.mxu0 %v986
      %v1719 = vpop.f32.mrf.mxu0
      %v1720 = vadd.f32 %v631, %v1719
      %v1721 = vpop.f32.mrf.mxu0
      %v1722 = vadd.f32 %v631, %v1721
      %v1723 = vpop.f32.mrf.mxu0
      %v1724 = vadd.f32 %v636, %v1723
      %v1725 = vpop.f32.mrf.mxu0
      %v1726 = vadd.f32 %v636, %v1725
      %1727 = vmatprep.mubr.bf16.mxu0 0
      %1728 = vmatmul.mubr.bf16.gmra.mxu0 %v987
      %v1729 = vpop.f32.mrf.mxu0
      %v1730 = vadd.f32 %v641, %v1729
      %v1731 = vpop.f32.mrf.mxu0
      %v1732 = vadd.f32 %v641, %v1731
      %v1733 = vpop.f32.mrf.mxu0
      %v1734 = vadd.f32 %v646, %v1733
      %v1735 = vpop.f32.mrf.mxu0
      %v1736 = vadd.f32 %v646, %v1735
      %1737 = vmatprep.mubr.bf16.mxu0 0
      %1738 = vmatmul.mubr.bf16.gmra.mxu0 %v988
      %v1739 = vpop.f32.mrf.mxu0
      %v1740 = vadd.f32 %v651, %v1739
      %v1741 = vpop.f32.mrf.mxu0
      %v1742 = vadd.f32 %v651, %v1741
      %v1743 = vpop.f32.mrf.mxu0
      %v1744 = vadd.f32 %v656, %v1743
      %v1745 = vpop.f32.mrf.mxu0
      %v1746 = vadd.f32 %v656, %v1745
      %1747 = vmatprep.mubr.bf16.mxu0 0
      %1748 = vmatmul.mubr.bf16.gmra.mxu0 %v989
      %v1749 = vpop.f32.mrf.mxu0
      %v1750 = vadd.f32 %v661, %v1749
      %v1751 = vpop.f32.mrf.mxu0
      %v1752 = vadd.f32 %v661, %v1751
      %v1753 = vpop.f32.mrf.mxu0
      %v1754 = vadd.f32 %v666, %v1753
      %v1755 = vpop.f32.mrf.mxu0
      %v1756 = vadd.f32 %v666, %v1755
      %1757 = vmatprep.mubr.bf16.mxu0 0
      %1758 = vmatmul.mubr.bf16.gmra.mxu0 %v990
      %v1759 = vpop.f32.mrf.mxu0
      %v1760 = vadd.f32 %v671, %v1759
      %v1761 = vpop.f32.mrf.mxu0
      %v1762 = vadd.f32 %v671, %v1761
      %v1763 = vpop.f32.mrf.mxu0
      %v1764 = vadd.f32 %v676, %v1763
      %v1765 = vpop.f32.mrf.mxu0
      %v1766 = vadd.f32 %v676, %v1765
      %1767 = vmatprep.mubr.bf16.mxu0 0
      %1768 = vmatmul.mubr.bf16.gmra.mxu0 %v991
      %v1769 = vpop.f32.mrf.mxu0
      %v1770 = vadd.f32 %v681, %v1769
      %v1771 = vpop.f32.mrf.mxu0
      %v1772 = vadd.f32 %v681, %v1771
      %v1773 = vpop.f32.mrf.mxu0
      %v1774 = vadd.f32 %v686, %v1773
      %v1775 = vpop.f32.mrf.mxu0
      %v1776 = vadd.f32 %v686, %v1775
      %1777 = vmatprep.mubr.bf16.mxu0 0
      %1778 = vmatmul.mubr.bf16.gmra.mxu0 %v992
      %v1779 = vpop.f32.mrf.mxu0
      %v1780 = vadd.f32 %v691, %v1779
      %v1781 = vpop.f32.mrf.mxu0
      %v1782 = vadd.f32 %v691, %v1781
      %v1783 = vpop.f32.mrf.mxu0
      %v1784 = vadd.f32 %v696, %v1783
      %v1785 = vpop.f32.mrf.mxu0
      %v1786 = vadd.f32 %v696, %v1785
      %1787 = vmatprep.mubr.bf16.mxu0 0
      %1788 = vmatmul.mubr.bf16.gmra.mxu0 %v993
      %v1789 = vpop.f32.mrf.mxu0
      %v1790 = vadd.f32 %v701, %v1789
      %v1791 = vpop.f32.mrf.mxu0
      %v1792 = vadd.f32 %v701, %v1791
      %v1793 = vpop.f32.mrf.mxu0
      %v1794 = vadd.f32 %v706, %v1793
      %v1795 = vpop.f32.mrf.mxu0
      %v1796 = vadd.f32 %v706, %v1795
      %1797 = vmatprep.mubr.bf16.mxu0 0
      %1798 = vmatmul.mubr.bf16.gmra.mxu0 %v994
      %v1799 = vpop.f32.mrf.mxu0
      %v1800 = vadd.f32 %v711, %v1799
      %v1801 = vpop.f32.mrf.mxu0
      %v1802 = vadd.f32 %v711, %v1801
      %v1803 = vpop.f32.mrf.mxu0
      %v1804 = vadd.f32 %v716, %v1803
      %v1805 = vpop.f32.mrf.mxu0
      %v1806 = vadd.f32 %v716, %v1805
      %1807 = vmatprep.mubr.bf16.mxu0 0
      %1808 = vmatmul.mubr.bf16.gmra.mxu0 %v995
      %v1809 = vpop.f32.mrf.mxu0
      %v1810 = vadd.f32 %v721, %v1809
      %v1811 = vpop.f32.mrf.mxu0
      %v1812 = vadd.f32 %v721, %v1811
      %v1813 = vpop.f32.mrf.mxu0
      %v1814 = vadd.f32 %v726, %v1813
      %v1815 = vpop.f32.mrf.mxu0
      %v1816 = vadd.f32 %v726, %v1815
      %1817 = vmatprep.mubr.bf16.mxu0 0
      %1818 = vmatmul.mubr.bf16.gmra.mxu0 %v996
      %v1819 = vpop.f32.mrf.mxu0
      %v1820 = vadd.f32 %v731, %v1819
      %v1821 = vpop.f32.mrf.mxu0
      %v1822 = vadd.f32 %v731, %v1821
      %v1823 = vpop.f32.mrf.mxu0
      %v1824 = vadd.f32 %v736, %v1823
      %v1825 = vpop.f32.mrf.mxu0
      %v1826 = vadd.f32 %v736, %v1825
      %1827 = vmatprep.mubr.bf16.mxu0 0
      %1828 = vmatmul.mubr.bf16.gmra.mxu0 %v997
      %v1829 = vpop.f32.mrf.mxu0
      %v1830 = vadd.f32 %v741, %v1829
      %v1831 = vpop.f32.mrf.mxu0
      %v1832 = vadd.f32 %v741, %v1831
      %v1833 = vpop.f32.mrf.mxu0
      %v1834 = vadd.f32 %v746, %v1833
      %v1835 = vpop.f32.mrf.mxu0
      %v1836 = vadd.f32 %v746, %v1835
      %1837 = vmatprep.mubr.bf16.mxu0 0
      %1838 = vmatmul.mubr.bf16.gmra.mxu0 %v998
      %v1839 = vpop.f32.mrf.mxu0
      %v1840 = vadd.f32 %v751, %v1839
      %v1841 = vpop.f32.mrf.mxu0
      %v1842 = vadd.f32 %v751, %v1841
      %v1843 = vpop.f32.mrf.mxu0
      %v1844 = vadd.f32 %v756, %v1843
      %v1845 = vpop.f32.mrf.mxu0
      %v1846 = vadd.f32 %v756, %v1845
      %1847 = vmatprep.mubr.bf16.mxu0 0
      %1848 = vmatmul.mubr.bf16.gmra.mxu0 %v999
      %v1849 = vpop.f32.mrf.mxu0
      %v1850 = vadd.f32 %v761, %v1849
      %v1851 = vpop.f32.mrf.mxu0
      %v1852 = vadd.f32 %v761, %v1851
      %v1853 = vpop.f32.mrf.mxu0
      %v1854 = vadd.f32 %v766, %v1853
      %v1855 = vpop.f32.mrf.mxu0
      %v1856 = vadd.f32 %v766, %v1855
      %1857 = vmatprep.mubr.bf16.mxu0 0
      %1858 = vmatmul.mubr.bf16.gmra.mxu0 %v1000
      %v1859 = vpop.f32.mrf.mxu0
      %v1860 = vadd.f32 %v771, %v1859
      %v1861 = vpop.f32.mrf.mxu0
      %v1862 = vadd.f32 %v771, %v1861
      %v1863 = vpop.f32.mrf.mxu0
      %v1864 = vadd.f32 %v776, %v1863
      %v1865 = vpop.f32.mrf.mxu0
      %v1866 = vadd.f32 %v776, %v1865
      %1867 = vmatprep.mubr.bf16.mxu0 0
      %1868 = vmatmul.mubr.bf16.gmra.mxu0 %v1001
      %v1869 = vpop.f32.mrf.mxu0
      %v1870 = vadd.f32 %v781, %v1869
      %v1871 = vpop.f32.mrf.mxu0
      %v1872 = vadd.f32 %v781, %v1871
      %v1873 = vpop.f32.mrf.mxu0
      %v1874 = vadd.f32 %v786, %v1873
      %v1875 = vpop.f32.mrf.mxu0
      %v1876 = vadd.f32 %v786, %v1875
      %1877 = vmatprep.mubr.bf16.mxu0 0
      %1878 = vmatmul.mubr.bf16.gmra.mxu0 %v1002
      %v1879 = vpop.f32.mrf.mxu0
      %v1880 = vadd.f32 %v791, %v1879
      %v1881 = vpop.f32.mrf.mxu0
      %v1882 = vadd.f32 %v791, %v1881
      %v1883 = vpop.f32.mrf.mxu0
      %v1884 = vadd.f32 %v796, %v1883
      %v1885 = vpop.f32.mrf.mxu0
      %v1886 = vadd.f32 %v796, %v1885
      %1887 = vmatprep.mubr.bf16.mxu0 0
      %1888 = vmatmul.mubr.bf16.gmra.mxu0 %v1003
      %v1889 = vpop.f32.mrf.mxu0
      %v1890 = vadd.f32 %v801, %v1889
      %v1891 = vpop.f32.mrf.mxu0
      %v1892 = vadd.f32 %v801, %v1891
      %v1893 = vpop.f32.mrf.mxu0
      %v1894 = vadd.f32 %v806, %v1893
      %v1895 = vpop.f32.mrf.mxu0
      %v1896 = vadd.f32 %v806, %v1895
      %1897 = vmatprep.mubr.bf16.mxu0 0
      %1898 = vmatmul.mubr.bf16.gmra.mxu0 %v1004
      %v1899 = vpop.f32.mrf.mxu0
      %v1900 = vadd.f32 %v811, %v1899
      %v1901 = vpop.f32.mrf.mxu0
      %v1902 = vadd.f32 %v811, %v1901
      %v1903 = vpop.f32.mrf.mxu0
      %v1904 = vadd.f32 %v816, %v1903
      %v1905 = vpop.f32.mrf.mxu0
      %v1906 = vadd.f32 %v816, %v1905
      %1907 = vmatprep.mubr.bf16.mxu0 0
      %1908 = vmatmul.mubr.bf16.gmra.mxu0 %v1005
      %v1909 = vpop.f32.mrf.mxu0
      %v1910 = vadd.f32 %v821, %v1909
      %v1911 = vpop.f32.mrf.mxu0
      %v1912 = vadd.f32 %v821, %v1911
      %v1913 = vpop.f32.mrf.mxu0
      %v1914 = vadd.f32 %v826, %v1913
      %v1915 = vpop.f32.mrf.mxu0
      %v1916 = vadd.f32 %v826, %v1915
      %1917 = vmatprep.mubr.bf16.mxu0 0
      %1918 = vmatmul.mubr.bf16.gmra.mxu0 %v1006
      %v1919 = vpop.f32.mrf.mxu0
      %v1920 = vadd.f32 %v831, %v1919
      %v1921 = vpop.f32.mrf.mxu0
      %v1922 = vadd.f32 %v831, %v1921
      %v1923 = vpop.f32.mrf.mxu0
      %v1924 = vadd.f32 %v836, %v1923
      %v1925 = vpop.f32.mrf.mxu0
      %v1926 = vadd.f32 %v836, %v1925
      %1927 = vmatprep.mubr.bf16.mxu0 0
      %1928 = vmatmul.mubr.bf16.gmra.mxu0 %v1007
      %v1929 = vpop.f32.mrf.mxu0
      %v1930 = vadd.f32 %v841, %v1929
      %v1931 = vpop.f32.mrf.mxu0
      %v1932 = vadd.f32 %v841, %v1931
      %v1933 = vpop.f32.mrf.mxu0
      %v1934 = vadd.f32 %v846, %v1933
      %v1935 = vpop.f32.mrf.mxu0
      %v1936 = vadd.f32 %v846, %v1935
      %1937 = vdwg.mxu0
      %v1938 = vmax.f32 %v1267, 0.0
      %v1939 = vmax.f32 %v1269, 0.0
      %v1940 = vmax.f32 %v1620, 0.0
      %v1941 = vmax.f32 %v1622, 0.0
      %v1942 = vmax.f32 %v1271, 0.0
      %v1943 = vmax.f32 %v1273, 0.0
      %v1944 = vmax.f32 %v1624, 0.0
      %v1945 = vmax.f32 %v1626, 0.0
      %v1946 = vmax.f32 %v1277, 0.0
      %v1947 = vmax.f32 %v1279, 0.0
      %v1948 = vmax.f32 %v1630, 0.0
      %v1949 = vmax.f32 %v1632, 0.0
      %v1950 = vmax.f32 %v1281, 0.0
      %v1951 = vmax.f32 %v1283, 0.0
      %v1952 = vmax.f32 %v1634, 0.0
      %v1953 = vmax.f32 %v1636, 0.0
      %v1954 = vmax.f32 %v1287, 0.0
      %v1955 = vmax.f32 %v1289, 0.0
      %v1956 = vmax.f32 %v1640, 0.0
      %v1957 = vmax.f32 %v1642, 0.0
      %v1958 = vmax.f32 %v1291, 0.0
      %v1959 = vmax.f32 %v1293, 0.0
      %v1960 = vmax.f32 %v1644, 0.0
      %v1961 = vmax.f32 %v1646, 0.0
      %v1962 = vmax.f32 %v1297, 0.0
      %v1963 = vmax.f32 %v1299, 0.0
      %v1964 = vmax.f32 %v1650, 0.0
      %v1965 = vmax.f32 %v1652, 0.0
      %v1966 = vmax.f32 %v1301, 0.0
      %v1967 = vmax.f32 %v1303, 0.0
      %v1968 = vmax.f32 %v1654, 0.0
      %v1969 = vmax.f32 %v1656, 0.0
      %v1970 = vmax.f32 %v1307, 0.0
      %v1971 = vmax.f32 %v1309, 0.0
      %v1972 = vmax.f32 %v1660, 0.0
      %v1973 = vmax.f32 %v1662, 0.0
      %v1974 = vmax.f32 %v1311, 0.0
      %v1975 = vmax.f32 %v1313, 0.0
      %v1976 = vmax.f32 %v1664, 0.0
      %v1977 = vmax.f32 %v1666, 0.0
      %v1978 = vmax.f32 %v1317, 0.0
      %v1979 = vmax.f32 %v1319, 0.0
      %v1980 = vmax.f32 %v1670, 0.0
      %v1981 = vmax.f32 %v1672, 0.0
      %v1982 = vmax.f32 %v1321, 0.0
      %v1983 = vmax.f32 %v1323, 0.0
      %v1984 = vmax.f32 %v1674, 0.0
      %v1985 = vmax.f32 %v1676, 0.0
      %v1986 = vmax.f32 %v1327, 0.0
      %v1987 = vmax.f32 %v1329, 0.0
      %v1988 = vmax.f32 %v1680, 0.0
      %v1989 = vmax.f32 %v1682, 0.0
      %v1990 = vmax.f32 %v1331, 0.0
      %v1991 = vmax.f32 %v1333, 0.0
      %v1992 = vmax.f32 %v1684, 0.0
      %v1993 = vmax.f32 %v1686, 0.0
      %v1994 = vmax.f32 %v1337, 0.0
      %v1995 = vmax.f32 %v1339, 0.0
      %v1996 = vmax.f32 %v1690, 0.0
      %v1997 = vmax.f32 %v1692, 0.0
      %v1998 = vmax.f32 %v1341, 0.0
      %v1999 = vmax.f32 %v1343, 0.0
      %v2000 = vmax.f32 %v1694, 0.0
      %v2001 = vmax.f32 %v1696, 0.0
      %v2002 = vmax.f32 %v1347, 0.0
      %v2003 = vmax.f32 %v1349, 0.0
      %v2004 = vmax.f32 %v1700, 0.0
      %v2005 = vmax.f32 %v1702, 0.0
      %v2006 = vmax.f32 %v1351, 0.0
      %v2007 = vmax.f32 %v1353, 0.0
      %v2008 = vmax.f32 %v1704, 0.0
      %v2009 = vmax.f32 %v1706, 0.0
      %v2010 = vmax.f32 %v1357, 0.0
      %v2011 = vmax.f32 %v1359, 0.0
      %v2012 = vmax.f32 %v1710, 0.0
      %v2013 = vmax.f32 %v1712, 0.0
      %v2014 = vmax.f32 %v1361, 0.0
      %v2015 = vmax.f32 %v1363, 0.0
      %v2016 = vmax.f32 %v1714, 0.0
      %v2017 = vmax.f32 %v1716, 0.0
      %v2018 = vmax.f32 %v1367, 0.0
      %v2019 = vmax.f32 %v1369, 0.0
      %v2020 = vmax.f32 %v1720, 0.0
      %v2021 = vmax.f32 %v1722, 0.0
      %v2022 = vmax.f32 %v1371, 0.0
      %v2023 = vmax.f32 %v1373, 0.0
      %v2024 = vmax.f32 %v1724, 0.0
      %v2025 = vmax.f32 %v1726, 0.0
      %v2026 = vmax.f32 %v1377, 0.0
      %v2027 = vmax.f32 %v1379, 0.0
      %v2028 = vmax.f32 %v1730, 0.0
      %v2029 = vmax.f32 %v1732, 0.0
      %v2030 = vmax.f32 %v1381, 0.0
      %v2031 = vmax.f32 %v1383, 0.0
      %v2032 = vmax.f32 %v1734, 0.0
      %v2033 = vmax.f32 %v1736, 0.0
      %v2034 = vmax.f32 %v1387, 0.0
      %v2035 = vmax.f32 %v1389, 0.0
      %v2036 = vmax.f32 %v1740, 0.0
      %v2037 = vmax.f32 %v1742, 0.0
      %v2038 = vmax.f32 %v1391, 0.0
      %v2039 = vmax.f32 %v1393, 0.0
      %v2040 = vmax.f32 %v1744, 0.0
      %v2041 = vmax.f32 %v1746, 0.0
      %v2042 = vmax.f32 %v1397, 0.0
      %v2043 = vmax.f32 %v1399, 0.0
      %v2044 = vmax.f32 %v1750, 0.0
      %v2045 = vmax.f32 %v1752, 0.0
      %v2046 = vmax.f32 %v1401, 0.0
      %v2047 = vmax.f32 %v1403, 0.0
      %v2048 = vmax.f32 %v1754, 0.0
      %v2049 = vmax.f32 %v1756, 0.0
      %v2050 = vmax.f32 %v1407, 0.0
      %v2051 = vmax.f32 %v1409, 0.0
      %v2052 = vmax.f32 %v1760, 0.0
      %v2053 = vmax.f32 %v1762, 0.0
      %v2054 = vmax.f32 %v1411, 0.0
      %v2055 = vmax.f32 %v1413, 0.0
      %v2056 = vmax.f32 %v1764, 0.0
      %v2057 = vmax.f32 %v1766, 0.0
      %v2058 = vmax.f32 %v1417, 0.0
      %v2059 = vmax.f32 %v1419, 0.0
      %v2060 = vmax.f32 %v1770, 0.0
      %v2061 = vmax.f32 %v1772, 0.0
      %v2062 = vmax.f32 %v1421, 0.0
      %v2063 = vmax.f32 %v1423, 0.0
      %v2064 = vmax.f32 %v1774, 0.0
      %v2065 = vmax.f32 %v1776, 0.0
      %v2066 = vmax.f32 %v1427, 0.0
      %v2067 = vmax.f32 %v1429, 0.0
      %v2068 = vmax.f32 %v1780, 0.0
      %v2069 = vmax.f32 %v1782, 0.0
      %v2070 = vmax.f32 %v1431, 0.0
      %v2071 = vmax.f32 %v1433, 0.0
      %v2072 = vmax.f32 %v1784, 0.0
      %v2073 = vmax.f32 %v1786, 0.0
      %v2074 = vmax.f32 %v1437, 0.0
      %v2075 = vmax.f32 %v1439, 0.0
      %v2076 = vmax.f32 %v1790, 0.0
      %v2077 = vmax.f32 %v1792, 0.0
      %v2078 = vmax.f32 %v1441, 0.0
      %v2079 = vmax.f32 %v1443, 0.0
      %v2080 = vmax.f32 %v1794, 0.0
      %v2081 = vmax.f32 %v1796, 0.0
      %v2082 = vmax.f32 %v1447, 0.0
      %v2083 = vmax.f32 %v1449, 0.0
      %v2084 = vmax.f32 %v1800, 0.0
      %v2085 = vmax.f32 %v1802, 0.0
      %v2086 = vmax.f32 %v1451, 0.0
      %v2087 = vmax.f32 %v1453, 0.0
      %v2088 = vmax.f32 %v1804, 0.0
      %v2089 = vmax.f32 %v1806, 0.0
      %v2090 = vmax.f32 %v1457, 0.0
      %v2091 = vmax.f32 %v1459, 0.0
      %v2092 = vmax.f32 %v1810, 0.0
      %v2093 = vmax.f32 %v1812, 0.0
      %v2094 = vmax.f32 %v1461, 0.0
      %v2095 = vmax.f32 %v1463, 0.0
      %v2096 = vmax.f32 %v1814, 0.0
      %v2097 = vmax.f32 %v1816, 0.0
      %v2098 = vmax.f32 %v1467, 0.0
      %v2099 = vmax.f32 %v1469, 0.0
      %v2100 = vmax.f32 %v1820, 0.0
      %v2101 = vmax.f32 %v1822, 0.0
      %v2102 = vmax.f32 %v1471, 0.0
      %v2103 = vmax.f32 %v1473, 0.0
      %v2104 = vmax.f32 %v1824, 0.0
      %v2105 = vmax.f32 %v1826, 0.0
      %v2106 = vmax.f32 %v1477, 0.0
      %v2107 = vmax.f32 %v1479, 0.0
      %v2108 = vmax.f32 %v1830, 0.0
      %v2109 = vmax.f32 %v1832, 0.0
      %v2110 = vmax.f32 %v1481, 0.0
      %v2111 = vmax.f32 %v1483, 0.0
      %v2112 = vmax.f32 %v1834, 0.0
      %v2113 = vmax.f32 %v1836, 0.0
      %v2114 = vmax.f32 %v1487, 0.0
      %v2115 = vmax.f32 %v1489, 0.0
      %v2116 = vmax.f32 %v1840, 0.0
      %v2117 = vmax.f32 %v1842, 0.0
      %v2118 = vmax.f32 %v1491, 0.0
      %v2119 = vmax.f32 %v1493, 0.0
      %v2120 = vmax.f32 %v1844, 0.0
      %v2121 = vmax.f32 %v1846, 0.0
      %v2122 = vmax.f32 %v1497, 0.0
      %v2123 = vmax.f32 %v1499, 0.0
      %v2124 = vmax.f32 %v1850, 0.0
      %v2125 = vmax.f32 %v1852, 0.0
      %v2126 = vmax.f32 %v1501, 0.0
      %v2127 = vmax.f32 %v1503, 0.0
      %v2128 = vmax.f32 %v1854, 0.0
      %v2129 = vmax.f32 %v1856, 0.0
      %v2130 = vmax.f32 %v1507, 0.0
      %v2131 = vmax.f32 %v1509, 0.0
      %v2132 = vmax.f32 %v1860, 0.0
      %v2133 = vmax.f32 %v1862, 0.0
      %v2134 = vmax.f32 %v1511, 0.0
      %v2135 = vmax.f32 %v1513, 0.0
      %v2136 = vmax.f32 %v1864, 0.0
      %v2137 = vmax.f32 %v1866, 0.0
      %v2138 = vmax.f32 %v1517, 0.0
      %v2139 = vmax.f32 %v1519, 0.0
      %v2140 = vmax.f32 %v1870, 0.0
      %v2141 = vmax.f32 %v1872, 0.0
      %v2142 = vmax.f32 %v1521, 0.0
      %v2143 = vmax.f32 %v1523, 0.0
      %v2144 = vmax.f32 %v1874, 0.0
      %v2145 = vmax.f32 %v1876, 0.0
      %v2146 = vmax.f32 %v1527, 0.0
      %v2147 = vmax.f32 %v1529, 0.0
      %v2148 = vmax.f32 %v1880, 0.0
      %v2149 = vmax.f32 %v1882, 0.0
      %v2150 = vmax.f32 %v1531, 0.0
      %v2151 = vmax.f32 %v1533, 0.0
      %v2152 = vmax.f32 %v1884, 0.0
      %v2153 = vmax.f32 %v1886, 0.0
      %v2154 = vmax.f32 %v1537, 0.0
      %v2155 = vmax.f32 %v1539, 0.0
      %v2156 = vmax.f32 %v1890, 0.0
      %v2157 = vmax.f32 %v1892, 0.0
      %v2158 = vmax.f32 %v1541, 0.0
      %v2159 = vmax.f32 %v1543, 0.0
      %v2160 = vmax.f32 %v1894, 0.0
      %v2161 = vmax.f32 %v1896, 0.0
      %v2162 = vmax.f32 %v1547, 0.0
      %v2163 = vmax.f32 %v1549, 0.0
      %v2164 = vmax.f32 %v1900, 0.0
      %v2165 = vmax.f32 %v1902, 0.0
      %v2166 = vmax.f32 %v1551, 0.0
      %v2167 = vmax.f32 %v1553, 0.0
      %v2168 = vmax.f32 %v1904, 0.0
      %v2169 = vmax.f32 %v1906, 0.0
      %v2170 = vmax.f32 %v1557, 0.0
      %v2171 = vmax.f32 %v1559, 0.0
      %v2172 = vmax.f32 %v1910, 0.0
      %v2173 = vmax.f32 %v1912, 0.0
      %v2174 = vmax.f32 %v1561, 0.0
      %v2175 = vmax.f32 %v1563, 0.0
      %v2176 = vmax.f32 %v1914, 0.0
      %v2177 = vmax.f32 %v1916, 0.0
      %v2178 = vmax.f32 %v1567, 0.0
      %v2179 = vmax.f32 %v1569, 0.0
      %v2180 = vmax.f32 %v1920, 0.0
      %v2181 = vmax.f32 %v1922, 0.0
      %v2182 = vmax.f32 %v1571, 0.0
      %v2183 = vmax.f32 %v1573, 0.0
      %v2184 = vmax.f32 %v1924, 0.0
      %v2185 = vmax.f32 %v1926, 0.0
      %v2186 = vmax.f32 %v1577, 0.0
      %v2187 = vmax.f32 %v1579, 0.0
      %v2188 = vmax.f32 %v1930, 0.0
      %v2189 = vmax.f32 %v1932, 0.0
      %v2190 = vmax.f32 %v1581, 0.0
      %v2191 = vmax.f32 %v1583, 0.0
      %v2192 = vmax.f32 %v1934, 0.0
      %v2193 = vmax.f32 %v1936, 0.0
      %v2194 = vld [vmem:[%s3] sm:$0xff]
      %v2195 = vld [vmem:[%s3 + $0x8] sm:$0xff]
      %v2196 = vld [vmem:[%s3 + $0x10] sm:$0xff]
      %v2197 = vld [vmem:[%s3 + $0x18] sm:$0xff]
      %v2198 = vld [vmem:[%s3 + $0x20] sm:$0xff]
      %v2199 = vld [vmem:[%s3 + $0x28] sm:$0xff]
      %v2200 = vld [vmem:[%s3 + $0x30] sm:$0xff]
      %v2201 = vld [vmem:[%s3 + $0x38] sm:$0xff]
      %v2202 = vld [vmem:[%s3 + $0x40] sm:$0xff]
      %v2203 = vld [vmem:[%s3 + $0x48] sm:$0xff]
      %v2204 = vld [vmem:[%s3 + $0x50] sm:$0xff]
      %v2205 = vld [vmem:[%s3 + $0x58] sm:$0xff]
      %v2206 = vld [vmem:[%s3 + $0x60] sm:$0xff]
      %v2207 = vld [vmem:[%s3 + $0x68] sm:$0xff]
      %v2208 = vld [vmem:[%s3 + $0x70] sm:$0xff]
      %v2209 = vld [vmem:[%s3 + $0x78] sm:$0xff]
      %v2210 = vld [vmem:[%s3 + $0x80] sm:$0xff]
      %v2211 = vld [vmem:[%s3 + $0x88] sm:$0xff]
      %v2212 = vld [vmem:[%s3 + $0x90] sm:$0xff]
      %v2213 = vld [vmem:[%s3 + $0x98] sm:$0xff]
      %v2214 = vld [vmem:[%s3 + $0xa0] sm:$0xff]
      %v2215 = vld [vmem:[%s3 + $0xa8] sm:$0xff]
      %v2216 = vld [vmem:[%s3 + $0xb0] sm:$0xff]
      %v2217 = vld [vmem:[%s3 + $0xb8] sm:$0xff]
      %v2218 = vld [vmem:[%s3 + $0xc0] sm:$0xff]
      %v2219 = vld [vmem:[%s3 + $0xc8] sm:$0xff]
      %v2220 = vld [vmem:[%s3 + $0xd0] sm:$0xff]
      %v2221 = vld [vmem:[%s3 + $0xd8] sm:$0xff]
      %v2222 = vld [vmem:[%s3 + $0xe0] sm:$0xff]
      %v2223 = vld [vmem:[%s3 + $0xe8] sm:$0xff]
      %v2224 = vld [vmem:[%s3 + $0xf0] sm:$0xff]
      %v2225 = vld [vmem:[%s3 + $0xf8] sm:$0xff]
      %v2226 = vpack.c.bf16 %v1942, %v1938
      %v2227 = vpack.c.bf16 %v1943, %v1939
      %v2228 = vpack.c.bf16 %v1944, %v1940
      %v2229 = vpack.c.bf16 %v1945, %v1941
      %v2230 = vpack.c.bf16 %v1950, %v1946
      %v2231 = vpack.c.bf16 %v1951, %v1947
      %v2232 = vpack.c.bf16 %v1952, %v1948
      %v2233 = vpack.c.bf16 %v1953, %v1949
      %v2234 = vpack.c.bf16 %v1958, %v1954
      %v2235 = vpack.c.bf16 %v1959, %v1955
      %v2236 = vpack.c.bf16 %v1960, %v1956
      %v2237 = vpack.c.bf16 %v1961, %v1957
      %v2238 = vpack.c.bf16 %v1966, %v1962
      %v2239 = vpack.c.bf16 %v1967, %v1963
      %v2240 = vpack.c.bf16 %v1968, %v1964
      %v2241 = vpack.c.bf16 %v1969, %v1965
      %v2242 = vpack.c.bf16 %v1974, %v1970
      %v2243 = vpack.c.bf16 %v1975, %v1971
      %v2244 = vpack.c.bf16 %v1976, %v1972
      %v2245 = vpack.c.bf16 %v1977, %v1973
      %v2246 = vpack.c.bf16 %v1982, %v1978
      %v2247 = vpack.c.bf16 %v1983, %v1979
      %v2248 = vpack.c.bf16 %v1984, %v1980
      %v2249 = vpack.c.bf16 %v1985, %v1981
      %v2250 = vpack.c.bf16 %v1990, %v1986
      %v2251 = vpack.c.bf16 %v1991, %v1987
      %v2252 = vpack.c.bf16 %v1992, %v1988
      %v2253 = vpack.c.bf16 %v1993, %v1989
      %v2254 = vpack.c.bf16 %v1998, %v1994
      %v2255 = vpack.c.bf16 %v1999, %v1995
      %v2256 = vpack.c.bf16 %v2000, %v1996
      %v2257 = vpack.c.bf16 %v2001, %v1997
      %v2258 = vpack.c.bf16 %v2006, %v2002
      %v2259 = vpack.c.bf16 %v2007, %v2003
      %v2260 = vpack.c.bf16 %v2008, %v2004
      %v2261 = vpack.c.bf16 %v2009, %v2005
      %v2262 = vpack.c.bf16 %v2014, %v2010
      %v2263 = vpack.c.bf16 %v2015, %v2011
      %v2264 = vpack.c.bf16 %v2016, %v2012
      %v2265 = vpack.c.bf16 %v2017, %v2013
      %v2266 = vpack.c.bf16 %v2022, %v2018
      %v2267 = vpack.c.bf16 %v2023, %v2019
      %v2268 = vpack.c.bf16 %v2024, %v2020
      %v2269 = vpack.c.bf16 %v2025, %v2021
      %v2270 = vpack.c.bf16 %v2030, %v2026
      %v2271 = vpack.c.bf16 %v2031, %v2027
      %v2272 = vpack.c.bf16 %v2032, %v2028
      %v2273 = vpack.c.bf16 %v2033, %v2029
      %v2274 = vpack.c.bf16 %v2038, %v2034
      %v2275 = vpack.c.bf16 %v2039, %v2035
      %v2276 = vpack.c.bf16 %v2040, %v2036
      %v2277 = vpack.c.bf16 %v2041, %v2037
      %v2278 = vpack.c.bf16 %v2046, %v2042
      %v2279 = vpack.c.bf16 %v2047, %v2043
      %v2280 = vpack.c.bf16 %v2048, %v2044
      %v2281 = vpack.c.bf16 %v2049, %v2045
      %v2282 = vpack.c.bf16 %v2054, %v2050
      %v2283 = vpack.c.bf16 %v2055, %v2051
      %v2284 = vpack.c.bf16 %v2056, %v2052
      %v2285 = vpack.c.bf16 %v2057, %v2053
      %v2286 = vpack.c.bf16 %v2062, %v2058
      %v2287 = vpack.c.bf16 %v2063, %v2059
      %v2288 = vpack.c.bf16 %v2064, %v2060
      %v2289 = vpack.c.bf16 %v2065, %v2061
      %v2290 = vpack.c.bf16 %v2070, %v2066
      %v2291 = vpack.c.bf16 %v2071, %v2067
      %v2292 = vpack.c.bf16 %v2072, %v2068
      %v2293 = vpack.c.bf16 %v2073, %v2069
      %v2294 = vpack.c.bf16 %v2078, %v2074
      %v2295 = vpack.c.bf16 %v2079, %v2075
      %v2296 = vpack.c.bf16 %v2080, %v2076
      %v2297 = vpack.c.bf16 %v2081, %v2077
      %v2298 = vpack.c.bf16 %v2086, %v2082
      %v2299 = vpack.c.bf16 %v2087, %v2083
      %v2300 = vpack.c.bf16 %v2088, %v2084
      %v2301 = vpack.c.bf16 %v2089, %v2085
      %v2302 = vpack.c.bf16 %v2094, %v2090
      %v2303 = vpack.c.bf16 %v2095, %v2091
      %v2304 = vpack.c.bf16 %v2096, %v2092
      %v2305 = vpack.c.bf16 %v2097, %v2093
      %v2306 = vpack.c.bf16 %v2102, %v2098
      %v2307 = vpack.c.bf16 %v2103, %v2099
      %v2308 = vpack.c.bf16 %v2104, %v2100
      %v2309 = vpack.c.bf16 %v2105, %v2101
      %v2310 = vpack.c.bf16 %v2110, %v2106
      %v2311 = vpack.c.bf16 %v2111, %v2107
      %v2312 = vpack.c.bf16 %v2112, %v2108
      %v2313 = vpack.c.bf16 %v2113, %v2109
      %v2314 = vpack.c.bf16 %v2118, %v2114
      %v2315 = vpack.c.bf16 %v2119, %v2115
      %v2316 = vpack.c.bf16 %v2120, %v2116
      %v2317 = vpack.c.bf16 %v2121, %v2117
      %v2318 = vpack.c.bf16 %v2126, %v2122
      %v2319 = vpack.c.bf16 %v2127, %v2123
      %v2320 = vpack.c.bf16 %v2128, %v2124
      %v2321 = vpack.c.bf16 %v2129, %v2125
      %v2322 = vpack.c.bf16 %v2134, %v2130
      %v2323 = vpack.c.bf16 %v2135, %v2131
      %v2324 = vpack.c.bf16 %v2136, %v2132
      %v2325 = vpack.c.bf16 %v2137, %v2133
      %v2326 = vpack.c.bf16 %v2142, %v2138
      %v2327 = vpack.c.bf16 %v2143, %v2139
      %v2328 = vpack.c.bf16 %v2144, %v2140
      %v2329 = vpack.c.bf16 %v2145, %v2141
      %v2330 = vpack.c.bf16 %v2150, %v2146
      %v2331 = vpack.c.bf16 %v2151, %v2147
      %v2332 = vpack.c.bf16 %v2152, %v2148
      %v2333 = vpack.c.bf16 %v2153, %v2149
      %v2334 = vpack.c.bf16 %v2158, %v2154
      %v2335 = vpack.c.bf16 %v2159, %v2155
      %v2336 = vpack.c.bf16 %v2160, %v2156
      %v2337 = vpack.c.bf16 %v2161, %v2157
      %v2338 = vpack.c.bf16 %v2166, %v2162
      %v2339 = vpack.c.bf16 %v2167, %v2163
      %v2340 = vpack.c.bf16 %v2168, %v2164
      %v2341 = vpack.c.bf16 %v2169, %v2165
      %v2342 = vpack.c.bf16 %v2174, %v2170
      %v2343 = vpack.c.bf16 %v2175, %v2171
      %v2344 = vpack.c.bf16 %v2176, %v2172
      %v2345 = vpack.c.bf16 %v2177, %v2173
      %v2346 = vpack.c.bf16 %v2182, %v2178
      %v2347 = vpack.c.bf16 %v2183, %v2179
      %v2348 = vpack.c.bf16 %v2184, %v2180
      %v2349 = vpack.c.bf16 %v2185, %v2181
      %v2350 = vpack.c.bf16 %v2190, %v2186
      %v2351 = vpack.c.bf16 %v2191, %v2187
      %v2352 = vpack.c.bf16 %v2192, %v2188
      %v2353 = vpack.c.bf16 %v2193, %v2189
      %v2354 = vld [vmem:[%s4] sm:$0xff]
      %v2355 = vld [vmem:[%s4 + $0x8] sm:$0xff]
      %v2356 = vld [vmem:[%s4 + $0x10] sm:$0xff]
      %v2357 = vld [vmem:[%s4 + $0x18] sm:$0xff]
      %v2358 = vld [vmem:[%s4 + $0x20] sm:$0xff]
      %v2359 = vld [vmem:[%s4 + $0x28] sm:$0xff]
      %v2360 = vld [vmem:[%s4 + $0x30] sm:$0xff]
      %v2361 = vld [vmem:[%s4 + $0x38] sm:$0xff]
      %v2362 = vld [vmem:[%s4 + $0x40] sm:$0xff]
      %v2363 = vld [vmem:[%s4 + $0x48] sm:$0xff]
      %v2364 = vld [vmem:[%s4 + $0x50] sm:$0xff]
      %v2365 = vld [vmem:[%s4 + $0x58] sm:$0xff]
      %v2366 = vld [vmem:[%s4 + $0x60] sm:$0xff]
      %v2367 = vld [vmem:[%s4 + $0x68] sm:$0xff]
      %v2368 = vld [vmem:[%s4 + $0x70] sm:$0xff]
      %v2369 = vld [vmem:[%s4 + $0x78] sm:$0xff]
      %2371 = vset.pattern.permute.xlu0 0
      %2372 = vperm.xlu0 %2371, %v2354
      %v2373 = vpop.permute.xlu0 %2372
      %2376 = vset.pattern.permute.xlu0 0
      %2377 = vperm.xlu0 %2376, %v2355
      %v2378 = vpop.permute.xlu0 %2377
      %2381 = vset.pattern.permute.xlu0 0
      %2382 = vperm.xlu0 %2381, %v2356
      %v2383 = vpop.permute.xlu0 %2382
      %2386 = vset.pattern.permute.xlu0 0
      %2387 = vperm.xlu0 %2386, %v2357
      %v2388 = vpop.permute.xlu0 %2387
      %2391 = vset.pattern.permute.xlu0 0
      %2392 = vperm.xlu0 %2391, %v2358
      %v2393 = vpop.permute.xlu0 %2392
      %2396 = vset.pattern.permute.xlu0 0
      %2397 = vperm.xlu0 %2396, %v2359
      %v2398 = vpop.permute.xlu0 %2397
      %2401 = vset.pattern.permute.xlu0 0
      %2402 = vperm.xlu0 %2401, %v2360
      %v2403 = vpop.permute.xlu0 %2402
      %2406 = vset.pattern.permute.xlu0 0
      %2407 = vperm.xlu0 %2406, %v2361
      %v2408 = vpop.permute.xlu0 %2407
      %2411 = vset.pattern.permute.xlu0 0
      %2412 = vperm.xlu0 %2411, %v2362
      %v2413 = vpop.permute.xlu0 %2412
      %2416 = vset.pattern.permute.xlu0 0
      %2417 = vperm.xlu0 %2416, %v2363
      %v2418 = vpop.permute.xlu0 %2417
      %2421 = vset.pattern.permute.xlu0 0
      %2422 = vperm.xlu0 %2421, %v2364
      %v2423 = vpop.permute.xlu0 %2422
      %2426 = vset.pattern.permute.xlu0 0
      %2427 = vperm.xlu0 %2426, %v2365
      %v2428 = vpop.permute.xlu0 %2427
      %2431 = vset.pattern.permute.xlu0 0
      %2432 = vperm.xlu0 %2431, %v2366
      %v2433 = vpop.permute.xlu0 %2432
      %2436 = vset.pattern.permute.xlu0 0
      %2437 = vperm.xlu0 %2436, %v2367
      %v2438 = vpop.permute.xlu0 %2437
      %2441 = vset.pattern.permute.xlu0 0
      %2442 = vperm.xlu0 %2441, %v2368
      %v2443 = vpop.permute.xlu0 %2442
      %2446 = vset.pattern.permute.xlu0 0
      %2447 = vperm.xlu0 %2446, %v2369
      %v2448 = vpop.permute.xlu0 %2447
      %v2482 = vunpack.c.l.b16 %v2194
      %v2483 = vunpack.c.h.b16 %v2194
      %v2484 = vunpack.c.l.b16 %v2195
      %v2485 = vunpack.c.h.b16 %v2195
      %v2486 = vunpack.c.l.b16 %v2196
      %v2487 = vunpack.c.h.b16 %v2196
      %v2488 = vunpack.c.l.b16 %v2197
      %v2489 = vunpack.c.h.b16 %v2197
      %v2490 = vunpack.c.l.b16 %v2198
      %v2491 = vunpack.c.h.b16 %v2198
      %v2492 = vunpack.c.l.b16 %v2199
      %v2493 = vunpack.c.h.b16 %v2199
      %v2494 = vunpack.c.l.b16 %v2200
      %v2495 = vunpack.c.h.b16 %v2200
      %v2496 = vunpack.c.l.b16 %v2201
      %v2497 = vunpack.c.h.b16 %v2201
      %v2498 = vunpack.c.l.b16 %v2202
      %v2499 = vunpack.c.h.b16 %v2202
      %v2500 = vunpack.c.l.b16 %v2203
      %v2501 = vunpack.c.h.b16 %v2203
      %v2502 = vunpack.c.l.b16 %v2204
      %v2503 = vunpack.c.h.b16 %v2204
      %v2504 = vunpack.c.l.b16 %v2205
      %v2505 = vunpack.c.h.b16 %v2205
      %v2506 = vunpack.c.l.b16 %v2206
      %v2507 = vunpack.c.h.b16 %v2206
      %v2508 = vunpack.c.l.b16 %v2207
      %v2509 = vunpack.c.h.b16 %v2207
      %v2510 = vunpack.c.l.b16 %v2208
      %v2511 = vunpack.c.h.b16 %v2208
      %v2512 = vunpack.c.l.b16 %v2209
      %v2513 = vunpack.c.h.b16 %v2209
      %v2514 = vunpack.c.l.b16 %v2210
      %v2515 = vunpack.c.h.b16 %v2210
      %v2516 = vunpack.c.l.b16 %v2211
      %v2517 = vunpack.c.h.b16 %v2211
      %v2518 = vunpack.c.l.b16 %v2212
      %v2519 = vunpack.c.h.b16 %v2212
      %v2520 = vunpack.c.l.b16 %v2213
      %v2521 = vunpack.c.h.b16 %v2213
      %v2522 = vunpack.c.l.b16 %v2214
      %v2523 = vunpack.c.h.b16 %v2214
      %v2524 = vunpack.c.l.b16 %v2215
      %v2525 = vunpack.c.h.b16 %v2215
      %v2526 = vunpack.c.l.b16 %v2216
      %v2527 = vunpack.c.h.b16 %v2216
      %v2528 = vunpack.c.l.b16 %v2217
      %v2529 = vunpack.c.h.b16 %v2217
      %v2530 = vunpack.c.l.b16 %v2218
      %v2531 = vunpack.c.h.b16 %v2218
      %v2532 = vunpack.c.l.b16 %v2219
      %v2533 = vunpack.c.h.b16 %v2219
      %v2534 = vunpack.c.l.b16 %v2220
      %v2535 = vunpack.c.h.b16 %v2220
      %v2536 = vunpack.c.l.b16 %v2221
      %v2537 = vunpack.c.h.b16 %v2221
      %v2538 = vunpack.c.l.b16 %v2222
      %v2539 = vunpack.c.h.b16 %v2222
      %v2540 = vunpack.c.l.b16 %v2223
      %v2541 = vunpack.c.h.b16 %v2223
      %v2542 = vunpack.c.l.b16 %v2224
      %v2543 = vunpack.c.h.b16 %v2224
      %v2544 = vunpack.c.l.b16 %v2225
      %v2545 = vunpack.c.h.b16 %v2225
      %v2546 = vpack.c.b16 %v2486, %v2482
      %v2547 = vpack.c.b16 %v2487, %v2483
      %v2548 = vpack.c.b16 %v2488, %v2484
      %v2549 = vpack.c.b16 %v2489, %v2485
      %v2550 = vpack.c.b16 %v2494, %v2490
      %v2551 = vpack.c.b16 %v2495, %v2491
      %v2552 = vpack.c.b16 %v2496, %v2492
      %v2553 = vpack.c.b16 %v2497, %v2493
      %v2554 = vpack.c.b16 %v2502, %v2498
      %v2555 = vpack.c.b16 %v2503, %v2499
      %v2556 = vpack.c.b16 %v2504, %v2500
      %v2557 = vpack.c.b16 %v2505, %v2501
      %v2558 = vpack.c.b16 %v2510, %v2506
      %v2559 = vpack.c.b16 %v2511, %v2507
      %v2560 = vpack.c.b16 %v2512, %v2508
      %v2561 = vpack.c.b16 %v2513, %v2509
      %v2562 = vpack.c.b16 %v2518, %v2514
      %v2563 = vpack.c.b16 %v2519, %v2515
      %v2564 = vpack.c.b16 %v2520, %v2516
      %v2565 = vpack.c.b16 %v2521, %v2517
      %v2566 = vpack.c.b16 %v2526, %v2522
      %v2567 = vpack.c.b16 %v2527, %v2523
      %v2568 = vpack.c.b16 %v2528, %v2524
      %v2569 = vpack.c.b16 %v2529, %v2525
      %v2570 = vpack.c.b16 %v2534, %v2530
      %v2571 = vpack.c.b16 %v2535, %v2531
      %v2572 = vpack.c.b16 %v2536, %v2532
      %v2573 = vpack.c.b16 %v2537, %v2533
      %v2574 = vpack.c.b16 %v2542, %v2538
      %v2575 = vpack.c.b16 %v2543, %v2539
      %v2576 = vpack.c.b16 %v2544, %v2540
      %v2577 = vpack.c.b16 %v2545, %v2541
      %2610 = vmatprep.subr.bf16.mxu0 %v2255
      %2611 = vmatpush1.bf16.msra.mxu0 %v2254
      %2612 = vmatprep.subr.bf16.mxu0 %v2251
      %2613 = vmatpush1.bf16.msra.mxu0 %v2250
      %2614 = vmatprep.subr.bf16.mxu0 %v2247
      %2615 = vmatpush1.bf16.msra.mxu0 %v2246
      %2616 = vmatprep.subr.bf16.mxu0 %v2243
      %2617 = vmatpush1.bf16.msra.mxu0 %v2242
      %2618 = vmatprep.subr.bf16.mxu0 %v2239
      %2619 = vmatpush1.bf16.msra.mxu0 %v2238
      %2620 = vmatprep.subr.bf16.mxu0 %v2235
      %2621 = vmatpush1.bf16.msra.mxu0 %v2234
      %2622 = vmatprep.subr.bf16.mxu0 %v2231
      %2623 = vmatpush1.bf16.msra.mxu0 %v2230
      %2624 = vmatprep.subr.bf16.mxu0 %v2227
      %2625 = vmatpush1.bf16.msra.mxu0 %v2226
      %2626 = vmatprep.subr.bf16.mxu0 %v2287
      %2627 = vmatpush2.bf16.msra.mxu0 %v2286
      %2628 = vmatprep.subr.bf16.mxu0 %v2283
      %2629 = vmatpush2.bf16.msra.mxu0 %v2282
      %2630 = vmatprep.subr.bf16.mxu0 %v2279
      %2631 = vmatpush2.bf16.msra.mxu0 %v2278
      %2632 = vmatprep.subr.bf16.mxu0 %v2275
      %2633 = vmatpush2.bf16.msra.mxu0 %v2274
      %2634 = vmatprep.subr.bf16.mxu0 %v2271
      %2635 = vmatpush2.bf16.msra.mxu0 %v2270
      %2636 = vmatprep.subr.bf16.mxu0 %v2267
      %2637 = vmatpush2.bf16.msra.mxu0 %v2266
      %2638 = vmatprep.subr.bf16.mxu0 %v2263
      %2639 = vmatpush2.bf16.msra.mxu0 %v2262
      %2640 = vmatprep.subr.bf16.mxu0 %v2259
      %2641 = vmatpush2.bf16.msra.mxu0 %v2258
      %2642 = vmatprep.mubr.bf16.mxu0 %v2547
      %2643 = vmatmul.mubr.bf16.gmra.mxu0 %v2546
      %v2644 = vpop.f32.mrf.mxu0
      %v2645 = vadd.f32 %v2373, %v2644
      %v2646 = vpop.f32.mrf.mxu0
      %v2647 = vadd.f32 %v2373, %v2646
      %v2648 = vpop.f32.mrf.mxu0
      %v2649 = vadd.f32 %v2378, %v2648
      %v2650 = vpop.f32.mrf.mxu0
      %v2651 = vadd.f32 %v2378, %v2650
      %2652 = vmatprep.mubr.bf16.mxu0 %v2551
      %2653 = vmatmul.mubr.bf16.gmra.mxu0 %v2550
      %v2654 = vpop.f32.mrf.mxu0
      %v2655 = vadd.f32 %v2383, %v2654
      %v2656 = vpop.f32.mrf.mxu0
      %v2657 = vadd.f32 %v2383, %v2656
      %v2658 = vpop.f32.mrf.mxu0
      %v2659 = vadd.f32 %v2388, %v2658
      %v2660 = vpop.f32.mrf.mxu0
      %v2661 = vadd.f32 %v2388, %v2660
      %2662 = vmatprep.mubr.bf16.mxu0 %v2555
      %2663 = vmatmul.mubr.bf16.gmra.mxu0 %v2554
      %v2664 = vpop.f32.mrf.mxu0
      %v2665 = vadd.f32 %v2393, %v2664
      %v2666 = vpop.f32.mrf.mxu0
      %v2667 = vadd.f32 %v2393, %v2666
      %v2668 = vpop.f32.mrf.mxu0
      %v2669 = vadd.f32 %v2398, %v2668
      %v2670 = vpop.f32.mrf.mxu0
      %v2671 = vadd.f32 %v2398, %v2670
      %2672 = vmatprep.mubr.bf16.mxu0 %v2559
      %2673 = vmatmul.mubr.bf16.gmra.mxu0 %v2558
      %v2674 = vpop.f32.mrf.mxu0
      %v2675 = vadd.f32 %v2403, %v2674
      %v2676 = vpop.f32.mrf.mxu0
      %v2677 = vadd.f32 %v2403, %v2676
      %v2678 = vpop.f32.mrf.mxu0
      %v2679 = vadd.f32 %v2408, %v2678
      %v2680 = vpop.f32.mrf.mxu0
      %v2681 = vadd.f32 %v2408, %v2680
      %2682 = vmatprep.mubr.bf16.mxu0 %v2563
      %2683 = vmatmul.mubr.bf16.gmra.mxu0 %v2562
      %v2684 = vpop.f32.mrf.mxu0
      %v2685 = vadd.f32 %v2413, %v2684
      %v2686 = vpop.f32.mrf.mxu0
      %v2687 = vadd.f32 %v2413, %v2686
      %v2688 = vpop.f32.mrf.mxu0
      %v2689 = vadd.f32 %v2418, %v2688
      %v2690 = vpop.f32.mrf.mxu0
      %v2691 = vadd.f32 %v2418, %v2690
      %2692 = vmatprep.mubr.bf16.mxu0 %v2567
      %2693 = vmatmul.mubr.bf16.gmra.mxu0 %v2566
      %v2694 = vpop.f32.mrf.mxu0
      %v2695 = vadd.f32 %v2423, %v2694
      %v2696 = vpop.f32.mrf.mxu0
      %v2697 = vadd.f32 %v2423, %v2696
      %v2698 = vpop.f32.mrf.mxu0
      %v2699 = vadd.f32 %v2428, %v2698
      %v2700 = vpop.f32.mrf.mxu0
      %v2701 = vadd.f32 %v2428, %v2700
      %2702 = vmatprep.mubr.bf16.mxu0 %v2571
      %2703 = vmatmul.mubr.bf16.gmra.mxu0 %v2570
      %v2704 = vpop.f32.mrf.mxu0
      %v2705 = vadd.f32 %v2433, %v2704
      %v2706 = vpop.f32.mrf.mxu0
      %v2707 = vadd.f32 %v2433, %v2706
      %v2708 = vpop.f32.mrf.mxu0
      %v2709 = vadd.f32 %v2438, %v2708
      %v2710 = vpop.f32.mrf.mxu0
      %v2711 = vadd.f32 %v2438, %v2710
      %2712 = vmatprep.mubr.bf16.mxu0 %v2575
      %2713 = vmatmul.mubr.bf16.gmra.mxu0 %v2574
      %v2714 = vpop.f32.mrf.mxu0
      %v2715 = vadd.f32 %v2443, %v2714
      %v2716 = vpop.f32.mrf.mxu0
      %v2717 = vadd.f32 %v2443, %v2716
      %v2718 = vpop.f32.mrf.mxu0
      %v2719 = vadd.f32 %v2448, %v2718
      %v2720 = vpop.f32.mrf.mxu0
      %v2721 = vadd.f32 %v2448, %v2720
      %2722 = vdwg.mxu0
      %2723 = vmatprep.subr.bf16.mxu0 %v2319
      %2724 = vmatpush1.bf16.msra.mxu0 %v2318
      %2725 = vmatprep.subr.bf16.mxu0 %v2315
      %2726 = vmatpush1.bf16.msra.mxu0 %v2314
      %2727 = vmatprep.subr.bf16.mxu0 %v2311
      %2728 = vmatpush1.bf16.msra.mxu0 %v2310
      %2729 = vmatprep.subr.bf16.mxu0 %v2307
      %2730 = vmatpush1.bf16.msra.mxu0 %v2306
      %2731 = vmatprep.subr.bf16.mxu0 %v2303
      %2732 = vmatpush1.bf16.msra.mxu0 %v2302
      %2733 = vmatprep.subr.bf16.mxu0 %v2299
      %2734 = vmatpush1.bf16.msra.mxu0 %v2298
      %2735 = vmatprep.subr.bf16.mxu0 %v2295
      %2736 = vmatpush1.bf16.msra.mxu0 %v2294
      %2737 = vmatprep.subr.bf16.mxu0 %v2291
      %2738 = vmatpush1.bf16.msra.mxu0 %v2290
      %2739 = vmatprep.subr.bf16.mxu0 %v2351
      %2740 = vmatpush2.bf16.msra.mxu0 %v2350
      %2741 = vmatprep.subr.bf16.mxu0 %v2347
      %2742 = vmatpush2.bf16.msra.mxu0 %v2346
      %2743 = vmatprep.subr.bf16.mxu0 %v2343
      %2744 = vmatpush2.bf16.msra.mxu0 %v2342
      %2745 = vmatprep.subr.bf16.mxu0 %v2339
      %2746 = vmatpush2.bf16.msra.mxu0 %v2338
      %2747 = vmatprep.subr.bf16.mxu0 %v2335
      %2748 = vmatpush2.bf16.msra.mxu0 %v2334
      %2749 = vmatprep.subr.bf16.mxu0 %v2331
      %2750 = vmatpush2.bf16.msra.mxu0 %v2330
      %2751 = vmatprep.subr.bf16.mxu0 %v2327
      %2752 = vmatpush2.bf16.msra.mxu0 %v2326
      %2753 = vmatprep.subr.bf16.mxu0 %v2323
      %2754 = vmatpush2.bf16.msra.mxu0 %v2322
      %2755 = vmatprep.mubr.bf16.mxu0 %v2549
      %2756 = vmatmul.mubr.bf16.gmra.mxu0 %v2548
      %v2757 = vpop.f32.mrf.mxu0
      %v2758 = vadd.f32 %v2645, %v2757
      %v2759 = vpop.f32.mrf.mxu0
      %v2760 = vadd.f32 %v2647, %v2759
      %v2761 = vpop.f32.mrf.mxu0
      %v2762 = vadd.f32 %v2649, %v2761
      %v2763 = vpop.f32.mrf.mxu0
      %v2764 = vadd.f32 %v2651, %v2763
      %2765 = vmatprep.mubr.bf16.mxu0 %v2553
      %2766 = vmatmul.mubr.bf16.gmra.mxu0 %v2552
      %v2767 = vpop.f32.mrf.mxu0
      %v2768 = vadd.f32 %v2655, %v2767
      %v2769 = vpop.f32.mrf.mxu0
      %v2770 = vadd.f32 %v2657, %v2769
      %v2771 = vpop.f32.mrf.mxu0
      %v2772 = vadd.f32 %v2659, %v2771
      %v2773 = vpop.f32.mrf.mxu0
      %v2774 = vadd.f32 %v2661, %v2773
      %2775 = vmatprep.mubr.bf16.mxu0 %v2557
      %2776 = vmatmul.mubr.bf16.gmra.mxu0 %v2556
      %v2777 = vpop.f32.mrf.mxu0
      %v2778 = vadd.f32 %v2665, %v2777
      %v2779 = vpop.f32.mrf.mxu0
      %v2780 = vadd.f32 %v2667, %v2779
      %v2781 = vpop.f32.mrf.mxu0
      %v2782 = vadd.f32 %v2669, %v2781
      %v2783 = vpop.f32.mrf.mxu0
      %v2784 = vadd.f32 %v2671, %v2783
      %2785 = vmatprep.mubr.bf16.mxu0 %v2561
      %2786 = vmatmul.mubr.bf16.gmra.mxu0 %v2560
      %v2787 = vpop.f32.mrf.mxu0
      %v2788 = vadd.f32 %v2675, %v2787
      %v2789 = vpop.f32.mrf.mxu0
      %v2790 = vadd.f32 %v2677, %v2789
      %v2791 = vpop.f32.mrf.mxu0
      %v2792 = vadd.f32 %v2679, %v2791
      %v2793 = vpop.f32.mrf.mxu0
      %v2794 = vadd.f32 %v2681, %v2793
      %2795 = vmatprep.mubr.bf16.mxu0 %v2565
      %2796 = vmatmul.mubr.bf16.gmra.mxu0 %v2564
      %v2797 = vpop.f32.mrf.mxu0
      %v2798 = vadd.f32 %v2685, %v2797
      %v2799 = vpop.f32.mrf.mxu0
      %v2800 = vadd.f32 %v2687, %v2799
      %v2801 = vpop.f32.mrf.mxu0
      %v2802 = vadd.f32 %v2689, %v2801
      %v2803 = vpop.f32.mrf.mxu0
      %v2804 = vadd.f32 %v2691, %v2803
      %2805 = vmatprep.mubr.bf16.mxu0 %v2569
      %2806 = vmatmul.mubr.bf16.gmra.mxu0 %v2568
      %v2807 = vpop.f32.mrf.mxu0
      %v2808 = vadd.f32 %v2695, %v2807
      %v2809 = vpop.f32.mrf.mxu0
      %v2810 = vadd.f32 %v2697, %v2809
      %v2811 = vpop.f32.mrf.mxu0
      %v2812 = vadd.f32 %v2699, %v2811
      %v2813 = vpop.f32.mrf.mxu0
      %v2814 = vadd.f32 %v2701, %v2813
      %2815 = vmatprep.mubr.bf16.mxu0 %v2573
      %2816 = vmatmul.mubr.bf16.gmra.mxu0 %v2572
      %v2817 = vpop.f32.mrf.mxu0
      %v2818 = vadd.f32 %v2705, %v2817
      %v2819 = vpop.f32.mrf.mxu0
      %v2820 = vadd.f32 %v2707, %v2819
      %v2821 = vpop.f32.mrf.mxu0
      %v2822 = vadd.f32 %v2709, %v2821
      %v2823 = vpop.f32.mrf.mxu0
      %v2824 = vadd.f32 %v2711, %v2823
      %2825 = vmatprep.mubr.bf16.mxu0 %v2577
      %2826 = vmatmul.mubr.bf16.gmra.mxu0 %v2576
      %v2827 = vpop.f32.mrf.mxu0
      %v2828 = vadd.f32 %v2715, %v2827
      %v2829 = vpop.f32.mrf.mxu0
      %v2830 = vadd.f32 %v2717, %v2829
      %v2831 = vpop.f32.mrf.mxu0
      %v2832 = vadd.f32 %v2719, %v2831
      %v2833 = vpop.f32.mrf.mxu0
      %v2834 = vadd.f32 %v2721, %v2833
      %2835 = vdwg.mxu0
      %2836 = vmatprep.subr.bf16.mxu0 %v2257
      %2837 = vmatpush1.bf16.msra.mxu0 %v2256
      %2838 = vmatprep.subr.bf16.mxu0 %v2253
      %2839 = vmatpush1.bf16.msra.mxu0 %v2252
      %2840 = vmatprep.subr.bf16.mxu0 %v2249
      %2841 = vmatpush1.bf16.msra.mxu0 %v2248
      %2842 = vmatprep.subr.bf16.mxu0 %v2245
      %2843 = vmatpush1.bf16.msra.mxu0 %v2244
      %2844 = vmatprep.subr.bf16.mxu0 %v2241
      %2845 = vmatpush1.bf16.msra.mxu0 %v2240
      %2846 = vmatprep.subr.bf16.mxu0 %v2237
      %2847 = vmatpush1.bf16.msra.mxu0 %v2236
      %2848 = vmatprep.subr.bf16.mxu0 %v2233
      %2849 = vmatpush1.bf16.msra.mxu0 %v2232
      %2850 = vmatprep.subr.bf16.mxu0 %v2229
      %2851 = vmatpush1.bf16.msra.mxu0 %v2228
      %2852 = vmatprep.subr.bf16.mxu0 %v2289
      %2853 = vmatpush2.bf16.msra.mxu0 %v2288
      %2854 = vmatprep.subr.bf16.mxu0 %v2285
      %2855 = vmatpush2.bf16.msra.mxu0 %v2284
      %2856 = vmatprep.subr.bf16.mxu0 %v2281
      %2857 = vmatpush2.bf16.msra.mxu0 %v2280
      %2858 = vmatprep.subr.bf16.mxu0 %v2277
      %2859 = vmatpush2.bf16.msra.mxu0 %v2276
      %2860 = vmatprep.subr.bf16.mxu0 %v2273
      %2861 = vmatpush2.bf16.msra.mxu0 %v2272
      %2862 = vmatprep.subr.bf16.mxu0 %v2269
      %2863 = vmatpush2.bf16.msra.mxu0 %v2268
      %2864 = vmatprep.subr.bf16.mxu0 %v2265
      %2865 = vmatpush2.bf16.msra.mxu0 %v2264
      %2866 = vmatprep.subr.bf16.mxu0 %v2261
      %2867 = vmatpush2.bf16.msra.mxu0 %v2260
      %2868 = vmatprep.mubr.bf16.mxu0 %v2547
      %2869 = vmatmul.mubr.bf16.gmra.mxu0 %v2546
      %v2870 = vpop.f32.mrf.mxu0
      %v2871 = vadd.f32 %v2373, %v2870
      %v2872 = vpop.f32.mrf.mxu0
      %v2873 = vadd.f32 %v2373, %v2872
      %v2874 = vpop.f32.mrf.mxu0
      %v2875 = vadd.f32 %v2378, %v2874
      %v2876 = vpop.f32.mrf.mxu0
      %v2877 = vadd.f32 %v2378, %v2876
      %2878 = vmatprep.mubr.bf16.mxu0 %v2551
      %2879 = vmatmul.mubr.bf16.gmra.mxu0 %v2550
      %v2880 = vpop.f32.mrf.mxu0
      %v2881 = vadd.f32 %v2383, %v2880
      %v2882 = vpop.f32.mrf.mxu0
      %v2883 = vadd.f32 %v2383, %v2882
      %v2884 = vpop.f32.mrf.mxu0
      %v2885 = vadd.f32 %v2388, %v2884
      %v2886 = vpop.f32.mrf.mxu0
      %v2887 = vadd.f32 %v2388, %v2886
      %2888 = vmatprep.mubr.bf16.mxu0 %v2555
      %2889 = vmatmul.mubr.bf16.gmra.mxu0 %v2554
      %v2890 = vpop.f32.mrf.mxu0
      %v2891 = vadd.f32 %v2393, %v2890
      %v2892 = vpop.f32.mrf.mxu0
      %v2893 = vadd.f32 %v2393, %v2892
      %v2894 = vpop.f32.mrf.mxu0
      %v2895 = vadd.f32 %v2398, %v2894
      %v2896 = vpop.f32.mrf.mxu0
      %v2897 = vadd.f32 %v2398, %v2896
      %2898 = vmatprep.mubr.bf16.mxu0 %v2559
      %2899 = vmatmul.mubr.bf16.gmra.mxu0 %v2558
      %v2900 = vpop.f32.mrf.mxu0
      %v2901 = vadd.f32 %v2403, %v2900
      %v2902 = vpop.f32.mrf.mxu0
      %v2903 = vadd.f32 %v2403, %v2902
      %v2904 = vpop.f32.mrf.mxu0
      %v2905 = vadd.f32 %v2408, %v2904
      %v2906 = vpop.f32.mrf.mxu0
      %v2907 = vadd.f32 %v2408, %v2906
      %2908 = vmatprep.mubr.bf16.mxu0 %v2563
      %2909 = vmatmul.mubr.bf16.gmra.mxu0 %v2562
      %v2910 = vpop.f32.mrf.mxu0
      %v2911 = vadd.f32 %v2413, %v2910
      %v2912 = vpop.f32.mrf.mxu0
      %v2913 = vadd.f32 %v2413, %v2912
      %v2914 = vpop.f32.mrf.mxu0
      %v2915 = vadd.f32 %v2418, %v2914
      %v2916 = vpop.f32.mrf.mxu0
      %v2917 = vadd.f32 %v2418, %v2916
      %2918 = vmatprep.mubr.bf16.mxu0 %v2567
      %2919 = vmatmul.mubr.bf16.gmra.mxu0 %v2566
      %v2920 = vpop.f32.mrf.mxu0
      %v2921 = vadd.f32 %v2423, %v2920
      %v2922 = vpop.f32.mrf.mxu0
      %v2923 = vadd.f32 %v2423, %v2922
      %v2924 = vpop.f32.mrf.mxu0
      %v2925 = vadd.f32 %v2428, %v2924
      %v2926 = vpop.f32.mrf.mxu0
      %v2927 = vadd.f32 %v2428, %v2926
      %2928 = vmatprep.mubr.bf16.mxu0 %v2571
      %2929 = vmatmul.mubr.bf16.gmra.mxu0 %v2570
      %v2930 = vpop.f32.mrf.mxu0
      %v2931 = vadd.f32 %v2433, %v2930
      %v2932 = vpop.f32.mrf.mxu0
      %v2933 = vadd.f32 %v2433, %v2932
      %v2934 = vpop.f32.mrf.mxu0
      %v2935 = vadd.f32 %v2438, %v2934
      %v2936 = vpop.f32.mrf.mxu0
      %v2937 = vadd.f32 %v2438, %v2936
      %2938 = vmatprep.mubr.bf16.mxu0 %v2575
      %2939 = vmatmul.mubr.bf16.gmra.mxu0 %v2574
      %v2940 = vpop.f32.mrf.mxu0
      %v2941 = vadd.f32 %v2443, %v2940
      %v2942 = vpop.f32.mrf.mxu0
      %v2943 = vadd.f32 %v2443, %v2942
      %v2944 = vpop.f32.mrf.mxu0
      %v2945 = vadd.f32 %v2448, %v2944
      %v2946 = vpop.f32.mrf.mxu0
      %v2947 = vadd.f32 %v2448, %v2946
      %2948 = vdwg.mxu0
      %2949 = vmatprep.subr.bf16.mxu0 %v2321
      %2950 = vmatpush1.bf16.msra.mxu0 %v2320
      %2951 = vmatprep.subr.bf16.mxu0 %v2317
      %2952 = vmatpush1.bf16.msra.mxu0 %v2316
      %2953 = vmatprep.subr.bf16.mxu0 %v2313
      %2954 = vmatpush1.bf16.msra.mxu0 %v2312
      %2955 = vmatprep.subr.bf16.mxu0 %v2309
      %2956 = vmatpush1.bf16.msra.mxu0 %v2308
      %2957 = vmatprep.subr.bf16.mxu0 %v2305
      %2958 = vmatpush1.bf16.msra.mxu0 %v2304
      %2959 = vmatprep.subr.bf16.mxu0 %v2301
      %2960 = vmatpush1.bf16.msra.mxu0 %v2300
      %2961 = vmatprep.subr.bf16.mxu0 %v2297
      %2962 = vmatpush1.bf16.msra.mxu0 %v2296
      %2963 = vmatprep.subr.bf16.mxu0 %v2293
      %2964 = vmatpush1.bf16.msra.mxu0 %v2292
      %2965 = vmatprep.subr.bf16.mxu0 %v2353
      %2966 = vmatpush2.bf16.msra.mxu0 %v2352
      %2967 = vmatprep.subr.bf16.mxu0 %v2349
      %2968 = vmatpush2.bf16.msra.mxu0 %v2348
      %2969 = vmatprep.subr.bf16.mxu0 %v2345
      %2970 = vmatpush2.bf16.msra.mxu0 %v2344
      %2971 = vmatprep.subr.bf16.mxu0 %v2341
      %2972 = vmatpush2.bf16.msra.mxu0 %v2340
      %2973 = vmatprep.subr.bf16.mxu0 %v2337
      %2974 = vmatpush2.bf16.msra.mxu0 %v2336
      %2975 = vmatprep.subr.bf16.mxu0 %v2333
      %2976 = vmatpush2.bf16.msra.mxu0 %v2332
      %2977 = vmatprep.subr.bf16.mxu0 %v2329
      %2978 = vmatpush2.bf16.msra.mxu0 %v2328
      %2979 = vmatprep.subr.bf16.mxu0 %v2325
      %2980 = vmatpush2.bf16.msra.mxu0 %v2324
      %2981 = vmatprep.mubr.bf16.mxu0 %v2549
      %2982 = vmatmul.mubr.bf16.gmra.mxu0 %v2548
      %v2983 = vpop.f32.mrf.mxu0
      %v2984 = vadd.f32 %v2871, %v2983
      %v2985 = vpop.f32.mrf.mxu0
      %v2986 = vadd.f32 %v2873, %v2985
      %v2987 = vpop.f32.mrf.mxu0
      %v2988 = vadd.f32 %v2875, %v2987
      %v2989 = vpop.f32.mrf.mxu0
      %v2990 = vadd.f32 %v2877, %v2989
      %2991 = vmatprep.mubr.bf16.mxu0 %v2553
      %2992 = vmatmul.mubr.bf16.gmra.mxu0 %v2552
      %v2993 = vpop.f32.mrf.mxu0
      %v2994 = vadd.f32 %v2881, %v2993
      %v2995 = vpop.f32.mrf.mxu0
      %v2996 = vadd.f32 %v2883, %v2995
      %v2997 = vpop.f32.mrf.mxu0
      %v2998 = vadd.f32 %v2885, %v2997
      %v2999 = vpop.f32.mrf.mxu0
      %v3000 = vadd.f32 %v2887, %v2999
      %3001 = vmatprep.mubr.bf16.mxu0 %v2557
      %3002 = vmatmul.mubr.bf16.gmra.mxu0 %v2556
      %v3003 = vpop.f32.mrf.mxu0
      %v3004 = vadd.f32 %v2891, %v3003
      %v3005 = vpop.f32.mrf.mxu0
      %v3006 = vadd.f32 %v2893, %v3005
      %v3007 = vpop.f32.mrf.mxu0
      %v3008 = vadd.f32 %v2895, %v3007
      %v3009 = vpop.f32.mrf.mxu0
      %v3010 = vadd.f32 %v2897, %v3009
      %3011 = vmatprep.mubr.bf16.mxu0 %v2561
      %3012 = vmatmul.mubr.bf16.gmra.mxu0 %v2560
      %v3013 = vpop.f32.mrf.mxu0
      %v3014 = vadd.f32 %v2901, %v3013
      %v3015 = vpop.f32.mrf.mxu0
      %v3016 = vadd.f32 %v2903, %v3015
      %v3017 = vpop.f32.mrf.mxu0
      %v3018 = vadd.f32 %v2905, %v3017
      %v3019 = vpop.f32.mrf.mxu0
      %v3020 = vadd.f32 %v2907, %v3019
      %3021 = vmatprep.mubr.bf16.mxu0 %v2565
      %3022 = vmatmul.mubr.bf16.gmra.mxu0 %v2564
      %v3023 = vpop.f32.mrf.mxu0
      %v3024 = vadd.f32 %v2911, %v3023
      %v3025 = vpop.f32.mrf.mxu0
      %v3026 = vadd.f32 %v2913, %v3025
      %v3027 = vpop.f32.mrf.mxu0
      %v3028 = vadd.f32 %v2915, %v3027
      %v3029 = vpop.f32.mrf.mxu0
      %v3030 = vadd.f32 %v2917, %v3029
      %3031 = vmatprep.mubr.bf16.mxu0 %v2569
      %3032 = vmatmul.mubr.bf16.gmra.mxu0 %v2568
      %v3033 = vpop.f32.mrf.mxu0
      %v3034 = vadd.f32 %v2921, %v3033
      %v3035 = vpop.f32.mrf.mxu0
      %v3036 = vadd.f32 %v2923, %v3035
      %v3037 = vpop.f32.mrf.mxu0
      %v3038 = vadd.f32 %v2925, %v3037
      %v3039 = vpop.f32.mrf.mxu0
      %v3040 = vadd.f32 %v2927, %v3039
      %3041 = vmatprep.mubr.bf16.mxu0 %v2573
      %3042 = vmatmul.mubr.bf16.gmra.mxu0 %v2572
      %v3043 = vpop.f32.mrf.mxu0
      %v3044 = vadd.f32 %v2931, %v3043
      %v3045 = vpop.f32.mrf.mxu0
      %v3046 = vadd.f32 %v2933, %v3045
      %v3047 = vpop.f32.mrf.mxu0
      %v3048 = vadd.f32 %v2935, %v3047
      %v3049 = vpop.f32.mrf.mxu0
      %v3050 = vadd.f32 %v2937, %v3049
      %3051 = vmatprep.mubr.bf16.mxu0 %v2577
      %3052 = vmatmul.mubr.bf16.gmra.mxu0 %v2576
      %v3053 = vpop.f32.mrf.mxu0
      %v3054 = vadd.f32 %v2941, %v3053
      %v3055 = vpop.f32.mrf.mxu0
      %v3056 = vadd.f32 %v2943, %v3055
      %v3057 = vpop.f32.mrf.mxu0
      %v3058 = vadd.f32 %v2945, %v3057
      %v3059 = vpop.f32.mrf.mxu0
      %v3060 = vadd.f32 %v2947, %v3059
      %3061 = vdwg.mxu0
      %v3062 = vmax.f32 %v2758, 0.0
      %v3063 = vmax.f32 %v2760, 0.0
      %v3064 = vmax.f32 %v2984, 0.0
      %v3065 = vmax.f32 %v2986, 0.0
      %v3066 = vmax.f32 %v2762, 0.0
      %v3067 = vmax.f32 %v2764, 0.0
      %v3068 = vmax.f32 %v2988, 0.0
      %v3069 = vmax.f32 %v2990, 0.0
      %v3070 = vmax.f32 %v2768, 0.0
      %v3071 = vmax.f32 %v2770, 0.0
      %v3072 = vmax.f32 %v2994, 0.0
      %v3073 = vmax.f32 %v2996, 0.0
      %v3074 = vmax.f32 %v2772, 0.0
      %v3075 = vmax.f32 %v2774, 0.0
      %v3076 = vmax.f32 %v2998, 0.0
      %v3077 = vmax.f32 %v3000, 0.0
      %v3078 = vmax.f32 %v2778, 0.0
      %v3079 = vmax.f32 %v2780, 0.0
      %v3080 = vmax.f32 %v3004, 0.0
      %v3081 = vmax.f32 %v3006, 0.0
      %v3082 = vmax.f32 %v2782, 0.0
      %v3083 = vmax.f32 %v2784, 0.0
      %v3084 = vmax.f32 %v3008, 0.0
      %v3085 = vmax.f32 %v3010, 0.0
      %v3086 = vmax.f32 %v2788, 0.0
      %v3087 = vmax.f32 %v2790, 0.0
      %v3088 = vmax.f32 %v3014, 0.0
      %v3089 = vmax.f32 %v3016, 0.0
      %v3090 = vmax.f32 %v2792, 0.0
      %v3091 = vmax.f32 %v2794, 0.0
      %v3092 = vmax.f32 %v3018, 0.0
      %v3093 = vmax.f32 %v3020, 0.0
      %v3094 = vmax.f32 %v2798, 0.0
      %v3095 = vmax.f32 %v2800, 0.0
      %v3096 = vmax.f32 %v3024, 0.0
      %v3097 = vmax.f32 %v3026, 0.0
      %v3098 = vmax.f32 %v2802, 0.0
      %v3099 = vmax.f32 %v2804, 0.0
      %v3100 = vmax.f32 %v3028, 0.0
      %v3101 = vmax.f32 %v3030, 0.0
      %v3102 = vmax.f32 %v2808, 0.0
      %v3103 = vmax.f32 %v2810, 0.0
      %v3104 = vmax.f32 %v3034, 0.0
      %v3105 = vmax.f32 %v3036, 0.0
      %v3106 = vmax.f32 %v2812, 0.0
      %v3107 = vmax.f32 %v2814, 0.0
      %v3108 = vmax.f32 %v3038, 0.0
      %v3109 = vmax.f32 %v3040, 0.0
      %v3110 = vmax.f32 %v2818, 0.0
      %v3111 = vmax.f32 %v2820, 0.0
      %v3112 = vmax.f32 %v3044, 0.0
      %v3113 = vmax.f32 %v3046, 0.0
      %v3114 = vmax.f32 %v2822, 0.0
      %v3115 = vmax.f32 %v2824, 0.0
      %v3116 = vmax.f32 %v3048, 0.0
      %v3117 = vmax.f32 %v3050, 0.0
      %v3118 = vmax.f32 %v2828, 0.0
      %v3119 = vmax.f32 %v2830, 0.0
      %v3120 = vmax.f32 %v3054, 0.0
      %v3121 = vmax.f32 %v3056, 0.0
      %v3122 = vmax.f32 %v2832, 0.0
      %v3123 = vmax.f32 %v2834, 0.0
      %v3124 = vmax.f32 %v3058, 0.0
      %v3125 = vmax.f32 %v3060, 0.0
      %v3126 = vld [vmem:[%s5] sm:$0xf]
      %v3127 = vld [vmem:[%s5 + $0x4] sm:$0xf]
      %v3128 = vpack.c.bf16 %v3066, %v3062
      %v3129 = vpack.c.bf16 %v3067, %v3063
      %v3130 = vpack.c.bf16 %v3068, %v3064
      %v3131 = vpack.c.bf16 %v3069, %v3065
      %v3132 = vpack.c.bf16 %v3074, %v3070
      %v3133 = vpack.c.bf16 %v3075, %v3071
      %v3134 = vpack.c.bf16 %v3076, %v3072
      %v3135 = vpack.c.bf16 %v3077, %v3073
      %v3136 = vpack.c.bf16 %v3082, %v3078
      %v3137 = vpack.c.bf16 %v3083, %v3079
      %v3138 = vpack.c.bf16 %v3084, %v3080
      %v3139 = vpack.c.bf16 %v3085, %v3081
      %v3140 = vpack.c.bf16 %v3090, %v3086
      %v3141 = vpack.c.bf16 %v3091, %v3087
      %v3142 = vpack.c.bf16 %v3092, %v3088
      %v3143 = vpack.c.bf16 %v3093, %v3089
      %v3144 = vpack.c.bf16 %v3098, %v3094
      %v3145 = vpack.c.bf16 %v3099, %v3095
      %v3146 = vpack.c.bf16 %v3100, %v3096
      %v3147 = vpack.c.bf16 %v3101, %v3097
      %v3148 = vpack.c.bf16 %v3106, %v3102
      %v3149 = vpack.c.bf16 %v3107, %v3103
      %v3150 = vpack.c.bf16 %v3108, %v3104
      %v3151 = vpack.c.bf16 %v3109, %v3105
      %v3152 = vpack.c.bf16 %v3114, %v3110
      %v3153 = vpack.c.bf16 %v3115, %v3111
      %v3154 = vpack.c.bf16 %v3116, %v3112
      %v3155 = vpack.c.bf16 %v3117, %v3113
      %v3156 = vpack.c.bf16 %v3122, %v3118
      %v3157 = vpack.c.bf16 %v3123, %v3119
      %v3158 = vpack.c.bf16 %v3124, %v3120
      %v3159 = vpack.c.bf16 %v3125, %v3121
      %v3160 = vld [vmem:[%s6] sm:$0xff]
      %v3161 = vld [vmem:[%s6 + $0x8] sm:$0xff]
      %3163 = vset.pattern.permute.xlu0 0
      %3164 = vperm.xlu0 %3163, %v3160
      %v3165 = vpop.permute.xlu0 %3164
      %3168 = vset.pattern.permute.xlu0 0
      %3169 = vperm.xlu0 %3168, %v3161
      %v3170 = vpop.permute.xlu0 %3169
      %v3174 = vunpack.c.l.b16 %v3126
      %v3175 = vunpack.c.l.b16 %v3127
      %v3176 = vpack.c.b16 %v3175, %v3174
      %3178 = vmatprep.subr.bf16.mxu0 %v3157
      %3179 = vmatpush1.bf16.msra.mxu0 %v3156
      %3180 = vmatprep.subr.bf16.mxu0 %v3153
      %3181 = vmatpush1.bf16.msra.mxu0 %v3152
      %3182 = vmatprep.subr.bf16.mxu0 %v3149
      %3183 = vmatpush1.bf16.msra.mxu0 %v3148
      %3184 = vmatprep.subr.bf16.mxu0 %v3145
      %3185 = vmatpush1.bf16.msra.mxu0 %v3144
      %3186 = vmatprep.subr.bf16.mxu0 %v3141
      %3187 = vmatpush1.bf16.msra.mxu0 %v3140
      %3188 = vmatprep.subr.bf16.mxu0 %v3137
      %3189 = vmatpush1.bf16.msra.mxu0 %v3136
      %3190 = vmatprep.subr.bf16.mxu0 %v3133
      %3191 = vmatpush1.bf16.msra.mxu0 %v3132
      %3192 = vmatprep.subr.bf16.mxu0 %v3129
      %3193 = vmatpush1.bf16.msra.mxu0 %v3128
      %3194 = vmatprep.subr.bf16.mxu0 0
      %3195 = vmatpush2.bf16.msra.mxu0 0
      %3196 = vmatprep.subr.bf16.mxu0 0
      %3197 = vmatpush2.bf16.msra.mxu0 0
      %3198 = vmatprep.subr.bf16.mxu0 0
      %3199 = vmatpush2.bf16.msra.mxu0 0
      %3200 = vmatprep.subr.bf16.mxu0 0
      %3201 = vmatpush2.bf16.msra.mxu0 0
      %3202 = vmatprep.subr.bf16.mxu0 0
      %3203 = vmatpush2.bf16.msra.mxu0 0
      %3204 = vmatprep.subr.bf16.mxu0 0
      %3205 = vmatpush2.bf16.msra.mxu0 0
      %3206 = vmatprep.subr.bf16.mxu0 0
      %3207 = vmatpush2.bf16.msra.mxu0 0
      %3208 = vmatprep.subr.bf16.mxu0 0
      %3209 = vmatpush2.bf16.msra.mxu0 0
      %3210 = vmatprep.mubr.bf16.mxu0 0
      %3211 = vmatmul.mubr.bf16.gmra.mxu0 %v3176
      %v3212 = vpop.f32.mrf.mxu0
      %v3213 = vadd.f32 %v3165, %v3212
      %v3214 = vpop.f32.mrf.mxu0
      %v3215 = vadd.f32 %v3165, %v3214
      %v3216 = vpop.f32.mrf.mxu0
      %v3217 = vadd.f32 %v3170, %v3216
      %v3218 = vpop.f32.mrf.mxu0
      %v3219 = vadd.f32 %v3170, %v3218
      %3220 = vdwg.mxu0
      %3221 = vmatprep.subr.bf16.mxu0 %v3159
      %3222 = vmatpush1.bf16.msra.mxu0 %v3158
      %3223 = vmatprep.subr.bf16.mxu0 %v3155
      %3224 = vmatpush1.bf16.msra.mxu0 %v3154
      %3225 = vmatprep.subr.bf16.mxu0 %v3151
      %3226 = vmatpush1.bf16.msra.mxu0 %v3150
      %3227 = vmatprep.subr.bf16.mxu0 %v3147
      %3228 = vmatpush1.bf16.msra.mxu0 %v3146
      %3229 = vmatprep.subr.bf16.mxu0 %v3143
      %3230 = vmatpush1.bf16.msra.mxu0 %v3142
      %3231 = vmatprep.subr.bf16.mxu0 %v3139
      %3232 = vmatpush1.bf16.msra.mxu0 %v3138
      %3233 = vmatprep.subr.bf16.mxu0 %v3135
      %3234 = vmatpush1.bf16.msra.mxu0 %v3134
      %3235 = vmatprep.subr.bf16.mxu0 %v3131
      %3236 = vmatpush1.bf16.msra.mxu0 %v3130
      %3237 = vmatprep.subr.bf16.mxu0 0
      %3238 = vmatpush2.bf16.msra.mxu0 0
      %3239 = vmatprep.subr.bf16.mxu0 0
      %3240 = vmatpush2.bf16.msra.mxu0 0
      %3241 = vmatprep.subr.bf16.mxu0 0
      %3242 = vmatpush2.bf16.msra.mxu0 0
      %3243 = vmatprep.subr.bf16.mxu0 0
      %3244 = vmatpush2.bf16.msra.mxu0 0
      %3245 = vmatprep.subr.bf16.mxu0 0
      %3246 = vmatpush2.bf16.msra.mxu0 0
      %3247 = vmatprep.subr.bf16.mxu0 0
      %3248 = vmatpush2.bf16.msra.mxu0 0
      %3249 = vmatprep.subr.bf16.mxu0 0
      %3250 = vmatpush2.bf16.msra.mxu0 0
      %3251 = vmatprep.subr.bf16.mxu0 0
      %3252 = vmatpush2.bf16.msra.mxu0 0
      %3253 = vmatprep.mubr.bf16.mxu0 0
      %3254 = vmatmul.mubr.bf16.gmra.mxu0 %v3176
      %v3255 = vpop.f32.mrf.mxu0
      %v3256 = vadd.f32 %v3165, %v3255
      %v3257 = vpop.f32.mrf.mxu0
      %v3258 = vadd.f32 %v3165, %v3257
      %v3259 = vpop.f32.mrf.mxu0
      %v3260 = vadd.f32 %v3170, %v3259
      %v3261 = vpop.f32.mrf.mxu0
      %v3262 = vadd.f32 %v3170, %v3261
      %3263 = vdwg.mxu0
      %v3264 = vmax.f32 %v3213, 0.0
      %v3265 = vmax.f32 %v3215, 0.0
      %v3266 = vmax.f32 %v3256, 0.0
      %v3267 = vmax.f32 %v3258, 0.0
      %v3268 = vmax.f32 %v3217, 0.0
      %v3269 = vmax.f32 %v3219, 0.0
      %v3270 = vmax.f32 %v3260, 0.0
      %v3271 = vmax.f32 %v3262, 0.0
      %v3272 = vld [vmem:[%s7] sm:$0xff]
      %v3273 = vld [vmem:[%s7 + $0x8] sm:$0xff]
      %3275 = vset.pattern.permute.xlu0 0
      %3276 = vperm.xlu0 %3275, %v3272
      %v3277 = vpop.permute.xlu0 %3276
      %3280 = vset.pattern.permute.xlu0 0
      %3281 = vperm.xlu0 %3280, %v3273
      %v3282 = vpop.permute.xlu0 %3281
      %v3284 = vmul.f32 %v3264, %v3277
      %v3285 = vmul.f32 %v3265, %v3277
      %v3286 = vmul.f32 %v3266, %v3277
      %v3287 = vmul.f32 %v3267, %v3277
      %v3288 = vmul.f32 %v3268, %v3282
      %v3289 = vmul.f32 %v3269, %v3282
      %v3290 = vmul.f32 %v3270, %v3282
      %v3291 = vmul.f32 %v3271, %v3282
      %v3292 = vadd.f32 %v3284, %v3288
      %v3293 = vrot.slane %v3292, 4
      %v3294 = vadd.f32 %v3292, %v3293
      %v3295 = vrot.slane %v3294, 2
      %v3296 = vadd.f32 %v3294, %v3295
      %v3297 = vrot.slane %v3296, 1
      %v3298 = vadd.f32 %v3296, %v3297
      %v3299 = vadd.f32 %v3285, %v3289
      %v3300 = vrot.slane %v3299, 4
      %v3301 = vadd.f32 %v3299, %v3300
      %v3302 = vrot.slane %v3301, 2
      %v3303 = vadd.f32 %v3301, %v3302
      %v3304 = vrot.slane %v3303, 1
      %v3305 = vadd.f32 %v3303, %v3304
      %v3306 = vadd.f32 %v3286, %v3290
      %v3307 = vrot.slane %v3306, 4
      %v3308 = vadd.f32 %v3306, %v3307
      %v3309 = vrot.slane %v3308, 2
      %v3310 = vadd.f32 %v3308, %v3309
      %v3311 = vrot.slane %v3310, 1
      %v3312 = vadd.f32 %v3310, %v3311
      %v3313 = vadd.f32 %v3287, %v3291
      %v3314 = vrot.slane %v3313, 4
      %v3315 = vadd.f32 %v3313, %v3314
      %v3316 = vrot.slane %v3315, 2
      %v3317 = vadd.f32 %v3315, %v3316
      %v3318 = vrot.slane %v3317, 1
      %v3319 = vadd.f32 %v3317, %v3318
      %s3320 = sld [smem:[#allocation2]]
      %v3321 = vstv %s3320
      %v3322 = vadd.f32 %v3298, %v3321
      %v3323 = vadd.f32 %v3305, %v3321
      %v3324 = vadd.f32 %v3312, %v3321
      %v3325 = vadd.f32 %v3319, %v3321
      %v3326 = vsub.f32 0.0, %v3322
      %v3327 = vsub.f32 0.0, %v3323
      %v3328 = vsub.f32 0.0, %v3324
      %v3329 = vsub.f32 0.0, %v3325
      %v3330 = vmul.f32 %v3326, 1.442695
      %v3331 = vpow.pop %v3330
      %v3332 = vmul.f32 %v3327, 1.442695
      %v3333 = vpow.pop %v3332
      %v3334 = vmul.f32 %v3328, 1.442695
      %v3335 = vpow.pop %v3334
      %v3336 = vmul.f32 %v3329, 1.442695
      %v3337 = vpow.pop %v3336
      %v3338 = vadd.f32 %v3331, 1.0
      %v3339 = vadd.f32 %v3333, 1.0
      %v3340 = vadd.f32 %v3335, 1.0
      %v3341 = vadd.f32 %v3337, 1.0
      %v3342 = vrcp.pop %v3338
      %v3343 = vrcp.pop %v3339
      %v3344 = vrcp.pop %v3340
      %v3345 = vrcp.pop %v3341
      %v3350 = vcombine.low %v3342, %v3343
      %v3351 = vcombine.low %v3344, %v3345
      %v3353 = vunpack.c.l.s4 1966171168
      %v3354 = vunpack.c.0.s8 %v3353
      %v3355 = vlaneseq
      %v3356 = vshrl.u32 %v3355, 7
      %v3357 = vsub.s32 %v3354, %v3356
      %v3358 = vrot.slane %v3350, %v3357
      %v3360 = vunpack.c.l.s4 1966171168
      %v3361 = vunpack.c.0.s8 %v3360
      %v3362 = vlaneseq
      %v3363 = vshrl.u32 %v3362, 7
      %v3364 = vsub.s32 %v3361, %v3363
      %v3365 = vrot.slane %v3351, %v3364
      %v3366 = vcombine.low %v3358, %v3365
      %v3368 = vunpack.c.l.s4 1966171168
      %v3369 = vunpack.c.0.s8 %v3368
      %v3370 = vlaneseq
      %v3371 = vshrl.u32 %v3370, 7
      %v3372 = vsub.s32 %v3369, %v3371
      %v3373 = vrot.slane %v3366, %v3372
      %v3375 = vlaneseq
      %vm3376 = vcmp.ge.s32.totalorder %v3375, 0
      %vm3377 = vcmp.lt.s32.totalorder %v3375, 512
      %vm3378 = vmand %vm3376, %vm3377
      %3379 = vst.msk [vmem:[%s333] sm:$0xf] %vm3378, %v3373
      %s3380 = smul.u32 4, %s21
      %p3381 = scmp.lt.s32.totalorder %s3380, 7
      %s3382 = scalar_select %p3381, %s3380, 7
      %s3383 = scalar_lea.vmem %s9, %s3382
      // Predicated region
      $region57: #{fraud_detection_forward.1} parent=55 // pred_check
        %p3384 = pneg %p233
      $region58: #{fraud_detection_forward.1} parent=55 // pred_check_branch
        %3386 = sbr.rel (%p3384) target = $region60
      $region59: #{fraud_detection_forward.1} parent=55 // pred_region
        %s3387 = smul.u32 4, %s21
      $region60: #{fraud_detection_forward.1} parent=55 // pred_fallthru
        _
    $region56: #{fraud_detection_forward.1} parent=5 // pred_fallthru
      _
    %p3388 = scmp.le.s32.totalorder 2, %s16
    // Predicated region
    $region61: #{fraud_detection_forward.1} parent=5 // pred_check
      %p3389 = pneg %p3388
    $region62: #{fraud_detection_forward.1} parent=5 // pred_check_branch
      %3391 = sbr.rel (%p3389) target = $region64
    $region63: #{fraud_detection_forward.1} parent=5 // pred_region
      %s3392 = ssub.s32 %s16, 2
      // Predicated region
      $region65: #{fraud_detection_forward.1} parent=63 // pred_check
        %p3393 = pneg %p239
      $region66: #{fraud_detection_forward.1} parent=63 // pred_check_branch
        %3395 = sbr.rel (%p3393) target = $region68
      $region67: #{fraud_detection_forward.1} parent=63 // pred_region
        %s3396 = smul.u32 4, %s22
        %p3397 = scmp.lt.s32.totalorder %s3396, 7
        %s3398 = scalar_select %p3397, %s3396, 7
        %s3399 = scalar_lea.vmem %s9, %s3398
      $region68: #{fraud_detection_forward.1} parent=63 // pred_fallthru
        _
    $region64: #{fraud_detection_forward.1} parent=5 // pred_fallthru
      _
  $region6: #{fraud_detection_forward.1} parent=0 // loop_footer
    %s20 = sadd.s32 1, %s16
  $region7: #{fraud_detection_forward.1} parent=0 // loop_footer_branch
    %15 = sbr.rel target = $region3
  $region8: #{fraud_detection_forward.1} parent=0 // loop_exit
    _

</llo_original>
